<compile_context>
chip_gen: v6e
topology: v6e:2x2x1
jax: 0.10.0
libtpu: 0.0.40
codegen_flags: <defaults>
</compile_context>

<pallas_src>
import functools

import jax
import jax.numpy as jnp
from jax import lax
from jax.experimental import pallas as pl
from jax.experimental.pallas import tpu as pltpu


def _round_up(v, m):
    return (v + m - 1) // m * m


def _vmem_block_bytes(shape, dtype):
    """VMEM footprint of one buffered block, including (sublane, 128) tile padding
    on the last two dims ((8,128) for f32, (16,128) for bf16)."""
    itemsize = jnp.dtype(dtype).itemsize
    sublane = {4: 8, 2: 16, 1: 32}[itemsize]
    if len(shape) == 0:
        return sublane * 128 * itemsize
    if len(shape) == 1:
        return _round_up(shape[0], 128) * sublane * itemsize
    lead = 1
    for d in shape[:-2]:
        lead *= int(d)
    return lead * _round_up(int(shape[-2]), sublane) * _round_up(int(shape[-1]), 128) * itemsize


def _pick_row_tile(oh, owp, *, oc8, contraction_rows,
                   live_budget=128 * 1024, out_tile_budget=2 << 20):
    """Pick TH = output rows per tile.

    Prefer the largest TH such that
      * TS = TH*owp is a multiple of 128 (lane-dense output stores) or TH == OH,
      * the in-flight bf16 patch + f32 matmul result stay well inside the
        64 x 4 KiB register file (no compiler spill storms),
      * the f32 (OC8, TS) output tile stays small enough to double-buffer,
    while minimizing padded (garbage) output rows.
    """
    kpad = _round_up(max(contraction_rows, 1), 16)      # bf16 sublane packing
    candidates = []
    for th in range(1, oh + 1):
        ts = th * owp
        if ts % 128 != 0 and th != oh:
            continue
        live = kpad * ts * 2 + 2 * oc8 * ts * 4         # patch + f32 result (+ temps)
        if live > live_budget:
            continue
        if _round_up(oc8, 8) * _round_up(ts, 128) * 4 > out_tile_budget:
            continue
        candidates.append(th)
    if not candidates:
        candidates = [next(th for th in range(1, oh + 1)
                           if (th * owp) % 128 == 0 or th == oh)]
    # Fewest padded rows first, then biggest tile.
    return min(candidates, key=lambda th: (_round_up(oh, th), -th))


def _row0(th, stride, n_row_tiles):
    if n_row_tiles == 1:
        return 0                                        # fully static slicing
    return pl.multiple_of(pl.program_id(1) * (th * stride), th * stride)


def _tap_slab(x_ref, ro, co, th, owp, stride):
    if stride == 1:
        return x_ref[:, pl.ds(ro, th), pl.ds(co, owp)]
    # Strided vld does the decimation directly (no (rh, rw) over-read + select).
    return x_ref[:, pl.ds(ro, th, stride), pl.ds(co, owp, stride)]


def _fused_conv_bn_relu_kernel(x_ref, w_ref, shift_ref, out_ref, *,
                               kh, kw, stride, dilation, th, owp, oc, n_row_tiles):
    """Shallow-channel path: one (OC8, K) @ (K, TS) matmul, K = KH*KW*C.

    x_ref    : (C, Hpad, Wpad)  bf16 padded NCHW image (resident across row tiles)
    w_ref    : (OC8, K)         bf16 BN-scale-folded weights (tap-major, channel-minor)
    shift_ref: (OC8, 1)         f32 BN shift
    out_ref  : (OC, TH*OWp)     f32 NCHW output tile, flat spatial, lane-dense
    """
    c = x_ref.shape[0]
    ts = th * owp
    row0 = _row0(th, stride, n_row_tiles)

    taps = []
    for i in range(kh):
        for j in range(kw):
            slab = _tap_slab(x_ref, row0 + i * dilation, j * dilation, th, owp, stride)
            taps.append(slab.reshape(c, ts))            # (C, TS)
    patch = jnp.concatenate(taps, axis=0)               # (K, TS) bf16

    y = jnp.dot(w_ref[...], patch, preferred_element_type=jnp.float32)  # (OC8, TS) f32
    y = jnp.maximum(y + shift_ref[...], 0.0)            # BN shift + ReLU
    out_ref[...] = y[:oc, :].astype(out_ref.dtype)


def _tap_conv_bn_relu_kernel(x_ref, w_ref, shift_ref, out_ref, acc_ref, *,
                             kh, kw, stride, dilation, th, owp, oc, n_row_tiles):
    """Deep-channel path: per-tap K=C matmuls accumulated into a VMEM f32 scratch."""
    c = x_ref.shape[0]
    ts = th * owp
    row0 = _row0(th, stride, n_row_tiles)

    acc_ref[...] = jnp.zeros_like(acc_ref)
    for i in range(kh):
        for j in range(kw):
            slab = _tap_slab(x_ref, row0 + i * dilation, j * dilation, th, owp, stride)
            acc_ref[...] += jnp.dot(w_ref[i * kw + j], slab.reshape(c, ts),
                                    preferred_element_type=jnp.float32)
    y = jnp.maximum(acc_ref[...] + shift_ref[...], 0.0)
    out_ref[...] = y[:oc, :].astype(out_ref.dtype)


@functools.partial(
    jax.jit,
    static_argnames=("kernel_size", "stride", "padding", "dilation",
                     "single_buffer_invariant"))
def _basic_conv2d_impl(x, weight, gamma, beta, running_mean, running_var, *,
                       kernel_size, stride, padding, dilation, eps=1e-5,
                       single_buffer_invariant=True):
    N, C, H, W = x.shape
    OC = weight.shape[0]
    kh = kw = int(kernel_size)
    st, pd, dl = int(stride), int(padding), int(dilation)

    OH = (H + 2 * pd - dl * (kh - 1) - 1) // st + 1
    OW = (W + 2 * pd - dl * (kw - 1) - 1) // st + 1

    OC8 = _round_up(OC, 8)              # OC lives on sublanes -> pad to 8, not 128
    OWp = _round_up(OW, 8)              # alignment granularity for the spatial tile
    K = kh * kw * C
    fuse_taps = C < 64                  # fold taps into the contraction when C is shallow

    TH = _pick_row_tile(OH, OWp, oc8=OC8,
                        contraction_rows=(K if fuse_taps else C))
    OHp = _round_up(OH, TH)
    R = OHp // TH
    TS = TH * OWp

    # Zero-pad (conv padding + alignment padding); keep NCHW; cast to bf16.
    Hpad = max(H + 2 * pd, (OHp - 1) * st + dl * (kh - 1) + 1)
    Wpad = max(W + 2 * pd, (OWp - 1) * st + dl * (kw - 1) + 1)
    xp = jnp.pad(x, ((0, 0), (0, 0),
                     (pd, Hpad - H - pd), (pd, Wpad - W - pd))).astype(jnp.bfloat16)

    # Fold eval-mode BN: scale into the weights, shift is the only epilogue add.
    scale = gamma * lax.rsqrt(running_var + eps)                  # (OC,)
    shift = beta - running_mean * scale                           # (OC,)
    wf = weight * scale[:, None, None, None]                      # (OC, C, KH, KW)
    if fuse_taps:
        # (OC8, K), K ordered tap-major: k = (i*KW + j)*C + c  (matches patch build).
        w2 = jnp.transpose(wf, (0, 2, 3, 1)).reshape(OC, K)
        w2 = jnp.pad(w2, ((0, OC8 - OC), (0, 0))).astype(jnp.bfloat16)
        kernel = functools.partial(_fused_conv_bn_relu_kernel, kh=kh, kw=kw,
                                   stride=st, dilation=dl, th=TH, owp=OWp,
                                   oc=OC, n_row_tiles=R)
        scratch_shapes = []
        w_index_map = lambda n, r: (0, 0)
    else:
        w2 = jnp.transpose(wf, (2, 3, 0, 1)).reshape(kh * kw, OC, C)
        w2 = jnp.pad(w2, ((0, 0), (0, OC8 - OC), (0, 0))).astype(jnp.bfloat16)
        kernel = functools.partial(_tap_conv_bn_relu_kernel, kh=kh, kw=kw,
                                   stride=st, dilation=dl, th=TH, owp=OWp,
                                   oc=OC, n_row_tiles=R)
        scratch_shapes = [pltpu.VMEM((OC8, TS), jnp.float32)]     # f32 accumulator in VMEM
        w_index_map = lambda n, r: (0, 0, 0)
    shift2 = jnp.pad(shift, (0, OC8 - OC)).reshape(OC8, 1)        # f32

    # Grid-invariant operands: single-buffer (their block index never changes).
    if single_buffer_invariant:
        w_spec = pl.BlockSpec(w2.shape, w_index_map, pipeline_mode=pl.Buffered(1))
        s_spec = pl.BlockSpec((OC8, 1), lambda n, r: (0, 0), pipeline_mode=pl.Buffered(1))
    else:
        w_spec = pl.BlockSpec(w2.shape, w_index_map)
        s_spec = pl.BlockSpec((OC8, 1), lambda n, r: (0, 0))

    # VMEM accounting with (sublane, 128) tile padding on the last two dims.
    x_blk = _vmem_block_bytes((C, Hpad, Wpad), jnp.bfloat16)
    w_blk = _vmem_block_bytes(w2.shape, jnp.bfloat16)
    sh_blk = _vmem_block_bytes((OC8, 1), jnp.float32)
    out_blk = _vmem_block_bytes((OC, TS), jnp.float32)
    acc_blk = 0 if fuse_taps else _vmem_block_bytes((OC8, TS), jnp.float32)
    n_inv = 1 if single_buffer_invariant else 2
    vmem_need = 2 * x_blk + n_inv * (w_blk + sh_blk) + 2 * out_blk + acc_blk

    # Per-generation cap: never request more than physical VMEM minus headroom.
    try:
        phys_vmem = int(pltpu.get_tpu_info().vmem_capacity_bytes)
    except Exception:
        phys_vmem = 64 * 1024 * 1024          # conservative (v7x per-TensorCore)
    cap = max(phys_vmem - (8 << 20), 16 << 20)
    vmem_limit = int(min(cap, max(32 << 20, 2 * vmem_need, vmem_need + (4 << 20))))

    flops = int(2 * N * OH * OW * C * kh * kw * OC)
    bytes_accessed = int(xp.size * 2 + w2.size * 2 + shift2.size * 4
                         + N * OC * OHp * OWp * 4)

    out = pl.pallas_call(
        kernel,
        out_shape=jax.ShapeDtypeStruct((N, OC, OHp * OWp), jnp.float32),
        grid_spec=pltpu.PrefetchScalarGridSpec(
            num_scalar_prefetch=0,
            grid=(N, R),
            in_specs=[
                # Whole padded image per n, constant in r -> DMA'd once per image.
                pl.BlockSpec((None, C, Hpad, Wpad), lambda n, r: (n, 0, 0, 0)),
                w_spec,
                s_spec,
            ],
            out_specs=pl.BlockSpec((None, OC, TS), lambda n, r: (n, 0, r)),
            scratch_shapes=scratch_shapes,
        ),
        compiler_params=pltpu.CompilerParams(
            # Shard only the batch axis across TensorCores so the resident
            # x block is fetched once per image (row tiles stay on one core).
            dimension_semantics=("parallel", "arbitrary"),
            vmem_limit_bytes=vmem_limit),
        cost_estimate=pl.CostEstimate(flops=flops, transcendentals=0,
                                      bytes_accessed=bytes_accessed),
    )(xp, w2, shift2)

    out = out.reshape(N, OC, OHp, OWp)        # free row-major relabel
    if OHp != OH or OWp != OW:
        out = out[:, :, :OH, :OW]             # crop alignment padding
    return out


def basic_conv2d(x, weight, gamma, beta, running_mean, running_var, *,
                 kernel_size, stride=1, padding=0, dilation=1, eps=1e-5):
    """BasicConv2d forward: Conv2d(bias=False) -> BatchNorm2d(eval) -> ReLU.
    x: (N, C, H, W) float32 -> (N, OC, OH, OW) float32."""
    args = (x, weight, gamma, beta, running_mean, running_var)
    kwargs = dict(kernel_size=kernel_size, stride=stride, padding=padding,
                  dilation=dilation, eps=eps)
    try:
        return _basic_conv2d_impl(*args, single_buffer_invariant=True, **kwargs)
    except Exception:
        # Some JAX builds reject pipeline_mode=pl.Buffered(1) on pallas_call
        # BlockSpecs; fall back to default double-buffering of the invariants.
        return _basic_conv2d_impl(*args, single_buffer_invariant=False, **kwargs)


def _reference(x, weight, gamma, beta, running_mean, running_var,
               *, stride, padding, dilation, eps=1e-5):
    y = lax.conv_general_dilated(
        x, weight, window_strides=(stride, stride),
        padding=[(padding, padding), (padding, padding)],
        rhs_dilation=(dilation, dilation),
        dimension_numbers=("NCHW", "OIHW", "NCHW"),
        precision=lax.Precision.HIGHEST)
    scale = gamma / jnp.sqrt(running_var + eps)
    shift = beta - running_mean * scale
    y = y * scale[None, :, None, None] + shift[None, :, None, None]
    return jnp.maximum(y, 0.0)


if __name__ == "__main__":
    # Module config: BasicConv2d(in_planes=4, out_planes=8, kernel_size=3,
    #                            stride=1, padding=1, dilation=1)
    in_planes, out_planes, ksize, stride, padding, dilation = 4, 8, 3, 1, 1, 1
    N, H, W = 2, 16, 16

    key = jax.random.PRNGKey(0)
    kx, kw_, kg, kb, km, kv = jax.random.split(key, 6)

    x = jax.random.normal(kx, (N, in_planes, H, W), dtype=jnp.float32)
    weight = jax.random.normal(kw_, (out_planes, in_planes, ksize, ksize),
                               dtype=jnp.float32) * 0.1
    gamma = 1.0 + 0.1 * jax.random.normal(kg, (out_planes,), dtype=jnp.float32)
    beta = 0.1 * jax.random.normal(kb, (out_planes,), dtype=jnp.float32)
    running_mean = 0.1 * jax.random.normal(km, (out_planes,), dtype=jnp.float32)
    running_var = jnp.abs(jax.random.normal(kv, (out_planes,), dtype=jnp.float32)) + 0.5

    out = basic_conv2d(x, weight, gamma, beta, running_mean, running_var,
                       kernel_size=ksize, stride=stride,
                       padding=padding, dilation=dilation)
    out = jax.block_until_ready(out)

    ref = _reference(x, weight, gamma, beta, running_mean, running_var,
                     stride=stride, padding=padding, dilation=dilation)
    assert out.shape == (N, out_planes, H, W), out.shape
    # Tolerance reflects the bf16-operand / f32-accumulate precision contract;
    # genuine indexing / BN-fold bugs would produce O(0.1-1) errors.
    err = float(jnp.max(jnp.abs(out - ref)))
    assert jnp.allclose(out, ref, atol=3e-2, rtol=3e-2), err

    print("KERNEL_OK")
</pallas_src>

<mosaic_0001>
module attributes {stable_mosaic.version = 11 : i64} {
  func.func @_fused_conv_bn_relu_kernel(%arg0: i32, %arg1: i32, %arg2: memref<1x4x18x18xbf16, #tpu.memory_space<vmem>>, %arg3: memref<8x36xbf16, #tpu.memory_space<vmem>>, %arg4: memref<8x1xf32, #tpu.memory_space<vmem>>, %arg5: memref<1x8x256xf32, #tpu.memory_space<vmem>>) attributes {dimension_semantics = [#tpu.dimension_semantics<parallel>, #tpu.dimension_semantics<arbitrary>], iteration_bounds = array<i64: 2, 1>, scalar_prefetch = 0 : i64, scratch_operands = 0 : i64, tpu.core_type = #tpu.core_type<tc>, window_params = [{transform_indices = @transform_0, window_bounds = array<i64: 1, 4, 18, 18>}, {pipeline_mode = #tpu.pipeline_mode<synchronous>, transform_indices = @transform_1, window_bounds = array<i64: 8, 36>}, {pipeline_mode = #tpu.pipeline_mode<synchronous>, transform_indices = @transform_2, window_bounds = array<i64: 8, 1>}, {transform_indices = @transform_3, window_bounds = array<i64: 1, 8, 256>}]} {
    %c0 = arith.constant 0 : index
    %c0_0 = arith.constant 0 : index
    %c0_1 = arith.constant 0 : index
    %c0_2 = arith.constant 0 : index
    %0 = vector.load %arg2[%c0, %c0_0, %c0_1, %c0_2] : memref<1x4x18x18xbf16, #tpu.memory_space<vmem>>, vector<1x4x16x16xbf16>
    %1 = vector.shape_cast %0 : vector<1x4x16x16xbf16> to vector<4x16x16xbf16>
    %2 = vector.shape_cast %1 : vector<4x16x16xbf16> to vector<4x256xbf16>
    %c0_3 = arith.constant 0 : index
    %c0_4 = arith.constant 0 : index
    %c0_5 = arith.constant 0 : index
    %c1 = arith.constant 1 : index
    %3 = vector.load %arg2[%c0_3, %c0_4, %c0_5, %c1] : memref<1x4x18x18xbf16, #tpu.memory_space<vmem>>, vector<1x4x16x16xbf16>
    %4 = vector.shape_cast %3 : vector<1x4x16x16xbf16> to vector<4x16x16xbf16>
    %5 = vector.shape_cast %4 : vector<4x16x16xbf16> to vector<4x256xbf16>
    %c0_6 = arith.constant 0 : index
    %c0_7 = arith.constant 0 : index
    %c0_8 = arith.constant 0 : index
    %c2 = arith.constant 2 : index
    %6 = vector.load %arg2[%c0_6, %c0_7, %c0_8, %c2] : memref<1x4x18x18xbf16, #tpu.memory_space<vmem>>, vector<1x4x16x16xbf16>
    %7 = vector.shape_cast %6 : vector<1x4x16x16xbf16> to vector<4x16x16xbf16>
    %8 = vector.shape_cast %7 : vector<4x16x16xbf16> to vector<4x256xbf16>
    %c0_9 = arith.constant 0 : index
    %c0_10 = arith.constant 0 : index
    %c1_11 = arith.constant 1 : index
    %c0_12 = arith.constant 0 : index
    %9 = vector.load %arg2[%c0_9, %c0_10, %c1_11, %c0_12] : memref<1x4x18x18xbf16, #tpu.memory_space<vmem>>, vector<1x4x16x16xbf16>
    %10 = vector.shape_cast %9 : vector<1x4x16x16xbf16> to vector<4x16x16xbf16>
    %11 = vector.shape_cast %10 : vector<4x16x16xbf16> to vector<4x256xbf16>
    %c0_13 = arith.constant 0 : index
    %c0_14 = arith.constant 0 : index
    %c1_15 = arith.constant 1 : index
    %c1_16 = arith.constant 1 : index
    %12 = vector.load %arg2[%c0_13, %c0_14, %c1_15, %c1_16] : memref<1x4x18x18xbf16, #tpu.memory_space<vmem>>, vector<1x4x16x16xbf16>
    %13 = vector.shape_cast %12 : vector<1x4x16x16xbf16> to vector<4x16x16xbf16>
    %14 = vector.shape_cast %13 : vector<4x16x16xbf16> to vector<4x256xbf16>
    %c0_17 = arith.constant 0 : index
    %c0_18 = arith.constant 0 : index
    %c1_19 = arith.constant 1 : index
    %c2_20 = arith.constant 2 : index
    %15 = vector.load %arg2[%c0_17, %c0_18, %c1_19, %c2_20] : memref<1x4x18x18xbf16, #tpu.memory_space<vmem>>, vector<1x4x16x16xbf16>
    %16 = vector.shape_cast %15 : vector<1x4x16x16xbf16> to vector<4x16x16xbf16>
    %17 = vector.shape_cast %16 : vector<4x16x16xbf16> to vector<4x256xbf16>
    %c0_21 = arith.constant 0 : index
    %c0_22 = arith.constant 0 : index
    %c2_23 = arith.constant 2 : index
    %c0_24 = arith.constant 0 : index
    %18 = vector.load %arg2[%c0_21, %c0_22, %c2_23, %c0_24] : memref<1x4x18x18xbf16, #tpu.memory_space<vmem>>, vector<1x4x16x16xbf16>
    %19 = vector.shape_cast %18 : vector<1x4x16x16xbf16> to vector<4x16x16xbf16>
    %20 = vector.shape_cast %19 : vector<4x16x16xbf16> to vector<4x256xbf16>
    %c0_25 = arith.constant 0 : index
    %c0_26 = arith.constant 0 : index
    %c2_27 = arith.constant 2 : index
    %c1_28 = arith.constant 1 : index
    %21 = vector.load %arg2[%c0_25, %c0_26, %c2_27, %c1_28] : memref<1x4x18x18xbf16, #tpu.memory_space<vmem>>, vector<1x4x16x16xbf16>
    %22 = vector.shape_cast %21 : vector<1x4x16x16xbf16> to vector<4x16x16xbf16>
    %23 = vector.shape_cast %22 : vector<4x16x16xbf16> to vector<4x256xbf16>
    %c0_29 = arith.constant 0 : index
    %c0_30 = arith.constant 0 : index
    %c2_31 = arith.constant 2 : index
    %c2_32 = arith.constant 2 : index
    %24 = vector.load %arg2[%c0_29, %c0_30, %c2_31, %c2_32] : memref<1x4x18x18xbf16, #tpu.memory_space<vmem>>, vector<1x4x16x16xbf16>
    %25 = vector.shape_cast %24 : vector<1x4x16x16xbf16> to vector<4x16x16xbf16>
    %26 = vector.shape_cast %25 : vector<4x16x16xbf16> to vector<4x256xbf16>
    %27 = tpu.concatenate %2, %5, %8, %11, %14, %17, %20, %23, %26 in 0 : vector<4x256xbf16>, vector<4x256xbf16>, vector<4x256xbf16>, vector<4x256xbf16>, vector<4x256xbf16>, vector<4x256xbf16>, vector<4x256xbf16>, vector<4x256xbf16>, vector<4x256xbf16> -> vector<36x256xbf16>
    %c0_33 = arith.constant 0 : index
    %c0_34 = arith.constant 0 : index
    %28 = vector.load %arg3[%c0_33, %c0_34] : memref<8x36xbf16, #tpu.memory_space<vmem>>, vector<8x36xbf16>
    %cst = arith.constant dense<0.000000e+00> : vector<8x256xf32>
    %29 = tpu.matmul %28, %27, %cst {dimension_numbers = #tpu.dot_dimension_numbers<[1], [0], [0], [1], [0, 0, 1, 1], [], []>} : vector<8x36xbf16>, vector<36x256xbf16>, vector<8x256xf32> -> vector<8x256xf32>
    %c0_35 = arith.constant 0 : index
    %c0_36 = arith.constant 0 : index
    %30 = vector.load %arg4[%c0_35, %c0_36] : memref<8x1xf32, #tpu.memory_space<vmem>>, vector<8x1xf32>
    %31 = vector.broadcast %30 : vector<8x1xf32> to vector<8x256xf32>
    %32 = arith.addf %29, %31 : vector<8x256xf32>
    %cst_37 = arith.constant 0.000000e+00 : f32
    %33 = vector.broadcast %cst_37 : f32 to vector<8x256xf32>
    %34 = arith.maximumf %32, %33 : vector<8x256xf32>
    %c0_38 = arith.constant 0 : index
    %c0_39 = arith.constant 0 : index
    %c0_40 = arith.constant 0 : index
    %35 = vector.load %arg5[%c0_38, %c0_39, %c0_40] : memref<1x8x256xf32, #tpu.memory_space<vmem>>, vector<1x8x256xf32>
    %36 = vector.shape_cast %35 : vector<1x8x256xf32> to vector<8x256xf32>
    %37 = vector.shape_cast %34 : vector<8x256xf32> to vector<1x8x256xf32>
    tpu.vector_store %arg5[%c0_38, %c0_39, %c0_40], %37 {strides = array<i32>} : memref<1x8x256xf32, #tpu.memory_space<vmem>>, vector<1x8x256xf32>,
    return
  }
  func.func @transform_0(%arg0: i32, %arg1: i32) -> (i32, i32, i32, i32) {
    %c0_i32 = arith.constant 0 : i32
    %c0_i32_0 = arith.constant 0 : i32
    %c0_i32_1 = arith.constant 0 : i32
    %c0_i32_2 = arith.constant 0 : i32
    return %arg0, %c0_i32, %c0_i32_0, %c0_i32_1 : i32, i32, i32, i32
  }
  func.func @transform_1(%arg0: i32, %arg1: i32) -> (i32, i32) {
    %c0_i32 = arith.constant 0 : i32
    %c0_i32_0 = arith.constant 0 : i32
    %c0_i32_1 = arith.constant 0 : i32
    return %c0_i32, %c0_i32_0 : i32, i32
  }
  func.func @transform_2(%arg0: i32, %arg1: i32) -> (i32, i32) {
    %c0_i32 = arith.constant 0 : i32
    %c0_i32_0 = arith.constant 0 : i32
    %c0_i32_1 = arith.constant 0 : i32
    return %c0_i32, %c0_i32_0 : i32, i32
  }
  func.func @transform_3(%arg0: i32, %arg1: i32) -> (i32, i32, i32) {
    %c0_i32 = arith.constant 0 : i32
    %c0_i32_0 = arith.constant 0 : i32
    return %arg0, %c0_i32, %arg1 : i32, i32, i32
  }
}

module attributes {stable_mosaic.version = 11 : i64} {
  func.func @_fused_conv_bn_relu_kernel(%arg0: i32, %arg1: i32, %arg2: memref<1x4x18x18xbf16, #tpu.memory_space<vmem>>, %arg3: memref<8x36xbf16, #tpu.memory_space<vmem>>, %arg4: memref<8x1xf32, #tpu.memory_space<vmem>>, %arg5: memref<1x8x256xf32, #tpu.memory_space<vmem>>) attributes {dimension_semantics = [#tpu.dimension_semantics<parallel>, #tpu.dimension_semantics<arbitrary>], iteration_bounds = array<i64: 2, 1>, scalar_prefetch = 0 : i64, scratch_operands = 0 : i64, tpu.core_type = #tpu.core_type<tc>, window_params = [{transform_indices = @transform_0, window_bounds = array<i64: 1, 4, 18, 18>}, {pipeline_mode = #tpu.pipeline_mode<synchronous>, transform_indices = @transform_1, window_bounds = array<i64: 8, 36>}, {pipeline_mode = #tpu.pipeline_mode<synchronous>, transform_indices = @transform_2, window_bounds = array<i64: 8, 1>}, {transform_indices = @transform_3, window_bounds = array<i64: 1, 8, 256>}]} {
    %c0 = arith.constant 0 : index
    %c0_0 = arith.constant 0 : index
    %c0_1 = arith.constant 0 : index
    %c0_2 = arith.constant 0 : index
    %0 = vector.load %arg2[%c0, %c0_0, %c0_1, %c0_2] : memref<1x4x18x18xbf16, #tpu.memory_space<vmem>>, vector<1x4x16x16xbf16>
    %1 = vector.shape_cast %0 : vector<1x4x16x16xbf16> to vector<4x16x16xbf16>
    %2 = vector.shape_cast %1 : vector<4x16x16xbf16> to vector<4x256xbf16>
    %c0_3 = arith.constant 0 : index
    %c0_4 = arith.constant 0 : index
    %c0_5 = arith.constant 0 : index
    %c1 = arith.constant 1 : index
    %3 = vector.load %arg2[%c0_3, %c0_4, %c0_5, %c1] : memref<1x4x18x18xbf16, #tpu.memory_space<vmem>>, vector<1x4x16x16xbf16>
    %4 = vector.shape_cast %3 : vector<1x4x16x16xbf16> to vector<4x16x16xbf16>
    %5 = vector.shape_cast %4 : vector<4x16x16xbf16> to vector<4x256xbf16>
    %c0_6 = arith.constant 0 : index
    %c0_7 = arith.constant 0 : index
    %c0_8 = arith.constant 0 : index
    %c2 = arith.constant 2 : index
    %6 = vector.load %arg2[%c0_6, %c0_7, %c0_8, %c2] : memref<1x4x18x18xbf16, #tpu.memory_space<vmem>>, vector<1x4x16x16xbf16>
    %7 = vector.shape_cast %6 : vector<1x4x16x16xbf16> to vector<4x16x16xbf16>
    %8 = vector.shape_cast %7 : vector<4x16x16xbf16> to vector<4x256xbf16>
    %c0_9 = arith.constant 0 : index
    %c0_10 = arith.constant 0 : index
    %c1_11 = arith.constant 1 : index
    %c0_12 = arith.constant 0 : index
    %9 = vector.load %arg2[%c0_9, %c0_10, %c1_11, %c0_12] : memref<1x4x18x18xbf16, #tpu.memory_space<vmem>>, vector<1x4x16x16xbf16>
    %10 = vector.shape_cast %9 : vector<1x4x16x16xbf16> to vector<4x16x16xbf16>
    %11 = vector.shape_cast %10 : vector<4x16x16xbf16> to vector<4x256xbf16>
    %c0_13 = arith.constant 0 : index
    %c0_14 = arith.constant 0 : index
    %c1_15 = arith.constant 1 : index
    %c1_16 = arith.constant 1 : index
    %12 = vector.load %arg2[%c0_13, %c0_14, %c1_15, %c1_16] : memref<1x4x18x18xbf16, #tpu.memory_space<vmem>>, vector<1x4x16x16xbf16>
    %13 = vector.shape_cast %12 : vector<1x4x16x16xbf16> to vector<4x16x16xbf16>
    %14 = vector.shape_cast %13 : vector<4x16x16xbf16> to vector<4x256xbf16>
    %c0_17 = arith.constant 0 : index
    %c0_18 = arith.constant 0 : index
    %c1_19 = arith.constant 1 : index
    %c2_20 = arith.constant 2 : index
    %15 = vector.load %arg2[%c0_17, %c0_18, %c1_19, %c2_20] : memref<1x4x18x18xbf16, #tpu.memory_space<vmem>>, vector<1x4x16x16xbf16>
    %16 = vector.shape_cast %15 : vector<1x4x16x16xbf16> to vector<4x16x16xbf16>
    %17 = vector.shape_cast %16 : vector<4x16x16xbf16> to vector<4x256xbf16>
    %c0_21 = arith.constant 0 : index
    %c0_22 = arith.constant 0 : index
    %c2_23 = arith.constant 2 : index
    %c0_24 = arith.constant 0 : index
    %18 = vector.load %arg2[%c0_21, %c0_22, %c2_23, %c0_24] : memref<1x4x18x18xbf16, #tpu.memory_space<vmem>>, vector<1x4x16x16xbf16>
    %19 = vector.shape_cast %18 : vector<1x4x16x16xbf16> to vector<4x16x16xbf16>
    %20 = vector.shape_cast %19 : vector<4x16x16xbf16> to vector<4x256xbf16>
    %c0_25 = arith.constant 0 : index
    %c0_26 = arith.constant 0 : index
    %c2_27 = arith.constant 2 : index
    %c1_28 = arith.constant 1 : index
    %21 = vector.load %arg2[%c0_25, %c0_26, %c2_27, %c1_28] : memref<1x4x18x18xbf16, #tpu.memory_space<vmem>>, vector<1x4x16x16xbf16>
    %22 = vector.shape_cast %21 : vector<1x4x16x16xbf16> to vector<4x16x16xbf16>
    %23 = vector.shape_cast %22 : vector<4x16x16xbf16> to vector<4x256xbf16>
    %c0_29 = arith.constant 0 : index
    %c0_30 = arith.constant 0 : index
    %c2_31 = arith.constant 2 : index
    %c2_32 = arith.constant 2 : index
    %24 = vector.load %arg2[%c0_29, %c0_30, %c2_31, %c2_32] : memref<1x4x18x18xbf16, #tpu.memory_space<vmem>>, vector<1x4x16x16xbf16>
    %25 = vector.shape_cast %24 : vector<1x4x16x16xbf16> to vector<4x16x16xbf16>
    %26 = vector.shape_cast %25 : vector<4x16x16xbf16> to vector<4x256xbf16>
    %27 = tpu.concatenate %2, %5, %8, %11, %14, %17, %20, %23, %26 in 0 : vector<4x256xbf16>, vector<4x256xbf16>, vector<4x256xbf16>, vector<4x256xbf16>, vector<4x256xbf16>, vector<4x256xbf16>, vector<4x256xbf16>, vector<4x256xbf16>, vector<4x256xbf16> -> vector<36x256xbf16>
    %c0_33 = arith.constant 0 : index
    %c0_34 = arith.constant 0 : index
    %28 = vector.load %arg3[%c0_33, %c0_34] : memref<8x36xbf16, #tpu.memory_space<vmem>>, vector<8x36xbf16>
    %cst = arith.constant dense<0.000000e+00> : vector<8x256xf32>
    %29 = tpu.matmul %28, %27, %cst {dimension_numbers = #tpu.dot_dimension_numbers<[1], [0], [0], [1], [0, 0, 1, 1], [], []>} : vector<8x36xbf16>, vector<36x256xbf16>, vector<8x256xf32> -> vector<8x256xf32>
    %c0_35 = arith.constant 0 : index
    %c0_36 = arith.constant 0 : index
    %30 = vector.load %arg4[%c0_35, %c0_36] : memref<8x1xf32, #tpu.memory_space<vmem>>, vector<8x1xf32>
    %31 = vector.broadcast %30 : vector<8x1xf32> to vector<8x256xf32>
    %32 = arith.addf %29, %31 : vector<8x256xf32>
    %cst_37 = arith.constant 0.000000e+00 : f32
    %33 = vector.broadcast %cst_37 : f32 to vector<8x256xf32>
    %34 = arith.maximumf %32, %33 : vector<8x256xf32>
    %c0_38 = arith.constant 0 : index
    %c0_39 = arith.constant 0 : index
    %c0_40 = arith.constant 0 : index
    %35 = vector.load %arg5[%c0_38, %c0_39, %c0_40] : memref<1x8x256xf32, #tpu.memory_space<vmem>>, vector<1x8x256xf32>
    %36 = vector.shape_cast %35 : vector<1x8x256xf32> to vector<8x256xf32>
    %37 = vector.shape_cast %34 : vector<8x256xf32> to vector<1x8x256xf32>
    tpu.vector_store %arg5[%c0_38, %c0_39, %c0_40], %37 {strides = array<i32>} : memref<1x8x256xf32, #tpu.memory_space<vmem>>, vector<1x8x256xf32>,
    return
  }
  func.func @transform_0(%arg0: i32, %arg1: i32) -> (i32, i32, i32, i32) {
    %c0_i32 = arith.constant 0 : i32
    %c0_i32_0 = arith.constant 0 : i32
    %c0_i32_1 = arith.constant 0 : i32
    %c0_i32_2 = arith.constant 0 : i32
    return %arg0, %c0_i32, %c0_i32_0, %c0_i32_1 : i32, i32, i32, i32
  }
  func.func @transform_1(%arg0: i32, %arg1: i32) -> (i32, i32) {
    %c0_i32 = arith.constant 0 : i32
    %c0_i32_0 = arith.constant 0 : i32
    %c0_i32_1 = arith.constant 0 : i32
    return %c0_i32, %c0_i32_0 : i32, i32
  }
  func.func @transform_2(%arg0: i32, %arg1: i32) -> (i32, i32) {
    %c0_i32 = arith.constant 0 : i32
    %c0_i32_0 = arith.constant 0 : i32
    %c0_i32_1 = arith.constant 0 : i32
    return %c0_i32, %c0_i32_0 : i32, i32
  }
  func.func @transform_3(%arg0: i32, %arg1: i32) -> (i32, i32, i32) {
    %c0_i32 = arith.constant 0 : i32
    %c0_i32_0 = arith.constant 0 : i32
    return %arg0, %c0_i32, %arg1 : i32, i32, i32
  }
}

</mosaic_0001>

<llo_original>
// kernel: _basic_conv2d_impl.1
$region0: #{_basic_conv2d_impl.1}
  #allocation0 [shape = 'u32[]', space=smem, size = 0x4, offset = 0x4, fixed_abs, tag = 'smem constant byte address 0x4 - core index']
  #allocation1 [shape = 'u32[144,128]{1,0:T(1,128)}', space=vmem, size = 0x12000, scoped, tag = 'internal scratch']
  %s0 = inlined_call_operand.vmem [shape: bf16[2,4,18,18], index: 0, kind: input, shape index: {}]
  %s1 = inlined_call_operand.vmem [shape: bf16[8,36], index: 1, kind: input, shape index: {}]
  %s2 = inlined_call_operand.vmem [shape: f32[8,1], index: 2, kind: input, shape index: {}]
  %s3 = inlined_call_operand.vmem [shape: f32[2,8,256], index: 3, kind: output, shape index: {}]
  %s4 = sld [smem:[#allocation0]]
  $region45: #{_basic_conv2d_impl.1} parent=0
    _
  %s6 = ssub.s32 1, %s4
  %s7 = scalar_select 0, %s6, %s4
  loop: start=0, step=1, limit=4
  $region2: #{_basic_conv2d_impl.1} parent=0 // loop_pre_header
    _
  $region3: #{_basic_conv2d_impl.1} parent=0 // loop_header
    %s9 = sphi 0, %s13
    %p10 = scmp.ge.s32.totalorder %s9, 4
    %s16 = sphi 0, %s28
    %s17 = sphi 0, %s24
    %s18 = sphi 0, %s16
    %s19 = sphi 0, %s17
    %s20 = sphi 0, %s18
    %s21 = sphi 0, %s19
    %s31 = sphi 0, %s33
    %s34 = sphi 0, %s31
    %s35 = sphi 0, %s34
    %s51 = sphi 0, %s35
    %s55 = sphi 0, %s55
    %s57 = sphi 0, %s55
    %s58 = sphi 0, %s57
    %s72 = sphi 0, %s58
    %s76 = sphi 0, %s76
    %s78 = sphi 0, %s76
    %s79 = sphi 0, %s78
    %s93 = sphi 0, %s79
    %s101 = sphi 0, %s103
    %s104 = sphi 0, %s101
    %s105 = sphi 0, %s104
    %s121 = sphi 0, %s105
  $region4: #{_basic_conv2d_impl.1} parent=0 // loop_header_branch
    %12 = sbr.rel (%p10) target = $region8
  $region5: #{_basic_conv2d_impl.1} parent=0 // loop_body
    %s14 = ssub.s32 %s9, 1
    %s15 = ssub.s32 %s9, 2
    %s22 = sadd.s32 1, %s17
    %p23 = scmp.ge.s32.totalorder %s22, 1
    %s24 = scalar_select %p23, 0, %s22
    %s25 = sadd.s32 1, %s16
    %s26 = scalar_select %p23, %s25, %s16
    %p27 = scmp.ge.s32.totalorder %s26, 2
    %s28 = scalar_select %p27, 0, %s26
    %s29 = ssub.s32 %s16, %s28
    %p30 = scmp.eq.s32.totalorder %s29, 0
    %s32 = sadd.s32 %s31, 1
    %s33 = scalar_select %p30, %s31, %s32
    %p36 = pneg %p30
    %p37 = scmp.eq.s32.totalorder %s9, 1
    %p38 = por %p36, %p37
    %p39 = scmp.ne.s32.totalorder %s31, %s34
    %p40 = scmp.eq.s32.totalorder %s9, 0
    %p41 = por %p39, %p40
    %p42 = scmp.ne.s32.totalorder %s31, %s34
    %p43 = scmp.eq.s32.totalorder %s14, 1
    %p44 = por %p42, %p43
    %p45 = scmp.ne.s32.totalorder %s34, %s35
    %p46 = scmp.eq.s32.totalorder %s14, 0
    %p47 = por %p45, %p46
    %p48 = scmp.ne.s32.totalorder %s34, %s35
    %p49 = scmp.eq.s32.totalorder %s15, 1
    %p50 = por %p48, %p49
    %p52 = scmp.ne.s32.totalorder %s35, %s51
    %p53 = scmp.eq.s32.totalorder %s15, 0
    %p54 = por %p52, %p53
    %s56 = sadd.s32 %s55, 1
    %p59 = scmp.eq.s32.totalorder %s9, 1
    %p60 = scmp.ne.s32.totalorder %s55, %s57
    %p61 = scmp.eq.s32.totalorder %s9, 0
    %p62 = por %p60, %p61
    %p63 = scmp.ne.s32.totalorder %s55, %s57
    %p64 = scmp.eq.s32.totalorder %s14, 1
    %p65 = por %p63, %p64
    %p66 = scmp.ne.s32.totalorder %s57, %s58
    %p67 = scmp.eq.s32.totalorder %s14, 0
    %p68 = por %p66, %p67
    %p69 = scmp.ne.s32.totalorder %s57, %s58
    %p70 = scmp.eq.s32.totalorder %s15, 1
    %p71 = por %p69, %p70
    %p73 = scmp.ne.s32.totalorder %s58, %s72
    %p74 = scmp.eq.s32.totalorder %s15, 0
    %p75 = por %p73, %p74
    %s77 = sadd.s32 %s76, 1
    %p80 = scmp.eq.s32.totalorder %s9, 1
    %p81 = scmp.ne.s32.totalorder %s76, %s78
    %p82 = scmp.eq.s32.totalorder %s9, 0
    %p83 = por %p81, %p82
    %p84 = scmp.ne.s32.totalorder %s76, %s78
    %p85 = scmp.eq.s32.totalorder %s14, 1
    %p86 = por %p84, %p85
    %p87 = scmp.ne.s32.totalorder %s78, %s79
    %p88 = scmp.eq.s32.totalorder %s14, 0
    %p89 = por %p87, %p88
    %p90 = scmp.ne.s32.totalorder %s78, %s79
    %p91 = scmp.eq.s32.totalorder %s15, 1
    %p92 = por %p90, %p91
    %p94 = scmp.ne.s32.totalorder %s79, %s93
    %p95 = scmp.eq.s32.totalorder %s15, 0
    %p96 = por %p94, %p95
    %s97 = ssub.s32 %s16, %s28
    %s98 = ssub.s32 %s17, %s24
    %s99 = sor.u32 %s97, %s98
    %p100 = scmp.eq.s32.totalorder %s99, 0
    %s102 = sadd.s32 %s101, 1
    %s103 = scalar_select %p100, %s101, %s102
    %p106 = pneg %p100
    %p107 = scmp.eq.s32.totalorder %s9, 1
    %p108 = por %p106, %p107
    %p109 = scmp.ne.s32.totalorder %s101, %s104
    %p110 = scmp.eq.s32.totalorder %s9, 0
    %p111 = por %p109, %p110
    %p112 = scmp.ne.s32.totalorder %s101, %s104
    %p113 = scmp.eq.s32.totalorder %s14, 1
    %p114 = por %p112, %p113
    %p115 = scmp.ne.s32.totalorder %s104, %s105
    %p116 = scmp.eq.s32.totalorder %s14, 0
    %p117 = por %p115, %p116
    %p118 = scmp.ne.s32.totalorder %s104, %s105
    %p119 = scmp.eq.s32.totalorder %s15, 1
    %p120 = por %p118, %p119
    %p122 = scmp.ne.s32.totalorder %s105, %s121
    %p123 = scmp.eq.s32.totalorder %s15, 0
    %p124 = por %p122, %p123
    %p125 = scmp.le.s32.totalorder 1, %s9
    %p126 = scmp.lt.s32.totalorder %s9, 3
    %p127 = pnand %p125, %p126
    %p128 = pneg %p127
    // Predicated region
    $region9: #{_basic_conv2d_impl.1} parent=5 // pred_check
      _
    $region10: #{_basic_conv2d_impl.1} parent=5 // pred_check_branch
      %130 = sbr.rel (%p127) target = $region12
    $region11: #{_basic_conv2d_impl.1} parent=5 // pred_region
      %s131 = ssub.s32 %s9, 1
      // Predicated region
      $region13: #{_basic_conv2d_impl.1} parent=11 // pred_check
        %p132 = pneg %p68
      $region14: #{_basic_conv2d_impl.1} parent=11 // pred_check_branch
        %134 = sbr.rel (%p132) target = $region16
      $region15: #{_basic_conv2d_impl.1} parent=11 // pred_region
        _
      $region16: #{_basic_conv2d_impl.1} parent=11 // pred_fallthru
        _
      // Predicated region
      $region17: #{_basic_conv2d_impl.1} parent=11 // pred_check
        %p135 = pneg %p89
      $region18: #{_basic_conv2d_impl.1} parent=11 // pred_check_branch
        %137 = sbr.rel (%p135) target = $region20
      $region19: #{_basic_conv2d_impl.1} parent=11 // pred_region
        _
      $region20: #{_basic_conv2d_impl.1} parent=11 // pred_fallthru
        _
    $region12: #{_basic_conv2d_impl.1} parent=5 // pred_fallthru
      _
    %p138 = scmp.lt.s32.totalorder %s9, 2
    // Predicated region
    $region21: #{_basic_conv2d_impl.1} parent=5 // pred_check
      %p139 = pneg %p138
    $region22: #{_basic_conv2d_impl.1} parent=5 // pred_check_branch
      %141 = sbr.rel (%p139) target = $region24
    $region23: #{_basic_conv2d_impl.1} parent=5 // pred_region
      // Predicated region
      $region25: #{_basic_conv2d_impl.1} parent=23 // pred_check
        %p142 = pneg %p41
      $region26: #{_basic_conv2d_impl.1} parent=23 // pred_check_branch
        %144 = sbr.rel (%p142) target = $region28
      $region27: #{_basic_conv2d_impl.1} parent=23 // pred_region
        %p145 = scmp.lt.s32.totalorder %s16, 1
        %s146 = scalar_select %p145, %s16, 1
        %s147 = smul.addr %s146, 12
        %s148 = smul.addr %s147, 4
        %s149 = scalar_lea.vmem %s0, %s148
      $region28: #{_basic_conv2d_impl.1} parent=23 // pred_fallthru
        _
    $region24: #{_basic_conv2d_impl.1} parent=5 // pred_fallthru
      _
    %p150 = scmp.le.s32.totalorder 1, %s9
    %p151 = scmp.lt.s32.totalorder %s9, 3
    %p152 = pnand %p150, %p151
    %p153 = pneg %p152
    // Predicated region
    $region29: #{_basic_conv2d_impl.1} parent=5 // pred_check
      _
    $region30: #{_basic_conv2d_impl.1} parent=5 // pred_check_branch
      %155 = sbr.rel (%p152) target = $region32
    $region31: #{_basic_conv2d_impl.1} parent=5 // pred_region
      %s156 = ssub.s32 %s9, 1
      %p157 = scmp.lt.s32.totalorder %s18, 1
      %s158 = scalar_select %p157, %s18, 1
      %s159 = smul.addr %s158, 12
      %s160 = smul.addr %s159, 4
      %s161 = scalar_lea.vmem %s0, %s160
      %p162 = pneg %p47
      %p163 = pneg %p44
      %p164 = pneg %p68
      %p165 = pneg %p65
      %p166 = pneg %p89
      %p167 = pneg %p86
      %p168 = pneg %p117
      %p169 = pneg %p114
      %s170 = smul.u32 2, %s19
      %p171 = scmp.lt.s32.totalorder %s18, 1
      %s172 = scalar_select %p171, %s18, 1
      %p173 = scmp.lt.s32.totalorder %s170, 1
      %s174 = scalar_select %p173, %s170, 1
      %s175 = smul.addr %s172, 2
      %s176 = sadd.s32 %s174, %s175
      %s177 = smul.addr %s176, 8
      %s178 = scalar_lea.vmem %s3, %s177
      %p179 = scmp.lt.s32.totalorder %s18, 1
      %s180 = scalar_select %p179, %s18, 1
      %s181 = smul.addr %s180, 12
      %s182 = smul.addr %s181, 4
      %s183 = scalar_lea.vmem %s0, %s182
      %s184 = smul.u32 2, %s19
      %p185 = scmp.lt.s32.totalorder %s18, 1
      %s186 = scalar_select %p185, %s18, 1
      %p187 = scmp.lt.s32.totalorder %s184, 1
      %s188 = scalar_select %p187, %s184, 1
      %s189 = smul.addr %s186, 2
      %s190 = sadd.s32 %s188, %s189
      %s191 = smul.addr %s190, 8
      %s192 = scalar_lea.vmem %s3, %s191
      %s193 = smul.u32 2, %s19
      %v195 = vld [vmem:[%s183] sm:$0xf]
      %v196 = vld [vmem:[%s183 + $0x4] sm:$0xf]
      %v197 = vld [vmem:[%s183 + $0xc] sm:$0xf]
      %v198 = vld [vmem:[%s183 + $0x10] sm:$0xf]
      %v199 = vld [vmem:[%s183 + $0x18] sm:$0xf]
      %v200 = vld [vmem:[%s183 + $0x1c] sm:$0xf]
      %v201 = vld [vmem:[%s183 + $0x24] sm:$0xf]
      %v202 = vld [vmem:[%s183 + $0x28] sm:$0xf]
      %v205 = vpack.i.b16 %v197, %v195
      %v206 = vshrl.u32 %v195, 16
      %v207 = vshrl.u32 %v197, 16
      %v208 = vpack.i.b16 %v207, %v206
      %v211 = vpack.i.b16 %v201, %v199
      %v212 = vshrl.u32 %v199, 16
      %v213 = vshrl.u32 %v201, 16
      %v214 = vpack.i.b16 %v213, %v212
      %v217 = vpack.i.b16 %v198, %v196
      %v218 = vshrl.u32 %v196, 16
      %v219 = vshrl.u32 %v198, 16
      %v220 = vpack.i.b16 %v219, %v218
      %v223 = vpack.i.b16 %v202, %v200
      %v224 = vshrl.u32 %v200, 16
      %v225 = vshrl.u32 %v202, 16
      %v226 = vpack.i.b16 %v225, %v224
      %v229 = vunpack.c.l.s4 1983009808
      %v230 = vunpack.c.0.s8 %v229
      %v231 = vlaneseq
      %v232 = vshrl.u32 %v231, 7
      %v233 = vsub.s32 %v230, %v232
      %v234 = vrot.slane %v205, %v233
      %v237 = vunpack.c.l.s4 1983009808
      %v238 = vunpack.c.0.s8 %v237
      %v239 = vlaneseq
      %v240 = vshrl.u32 %v239, 7
      %v241 = vsub.s32 %v238, %v240
      %v242 = vrot.slane %v211, %v241
      %v243 = vcombine.low %v234, %v242
      %v244 = vcombine.high %v234, %v242
      %v246 = vunpack.c.l.s4 1934713408
      %v247 = vunpack.c.0.s8 %v246
      %v248 = vlaneseq
      %v249 = vshrl.u32 %v248, 7
      %v250 = vsub.s32 %v247, %v249
      %v251 = vrot.slane %v243, %v250
      %v253 = vunpack.c.l.s4 1934713408
      %v254 = vunpack.c.0.s8 %v253
      %v255 = vlaneseq
      %v256 = vshrl.u32 %v255, 7
      %v257 = vsub.s32 %v254, %v256
      %v258 = vrot.slane %v244, %v257
      %v259 = vcombine.high %v251, 0
      %v260 = vcombine.high %v258, 0
      %v263 = vunpack.c.l.s4 1983009808
      %v264 = vunpack.c.0.s8 %v263
      %v265 = vlaneseq
      %v266 = vshrl.u32 %v265, 7
      %v267 = vsub.s32 %v264, %v266
      %v268 = vrot.slane %v208, %v267
      %v271 = vunpack.c.l.s4 1983009808
      %v272 = vunpack.c.0.s8 %v271
      %v273 = vlaneseq
      %v274 = vshrl.u32 %v273, 7
      %v275 = vsub.s32 %v272, %v274
      %v276 = vrot.slane %v214, %v275
      %v277 = vcombine.low %v268, %v276
      %v278 = vcombine.high %v268, %v276
      %v280 = vunpack.c.l.s4 1934713408
      %v281 = vunpack.c.0.s8 %v280
      %v282 = vlaneseq
      %v283 = vshrl.u32 %v282, 7
      %v284 = vsub.s32 %v281, %v283
      %v285 = vrot.slane %v277, %v284
      %v287 = vunpack.c.l.s4 1934713408
      %v288 = vunpack.c.0.s8 %v287
      %v289 = vlaneseq
      %v290 = vshrl.u32 %v289, 7
      %v291 = vsub.s32 %v288, %v290
      %v292 = vrot.slane %v278, %v291
      %v293 = vcombine.high %v285, 0
      %v294 = vcombine.high %v292, 0
      %v297 = vunpack.c.l.s4 1983009808
      %v298 = vunpack.c.0.s8 %v297
      %v299 = vlaneseq
      %v300 = vshrl.u32 %v299, 7
      %v301 = vsub.s32 %v298, %v300
      %v302 = vrot.slane %v217, %v301
      %v305 = vunpack.c.l.s4 1983009808
      %v306 = vunpack.c.0.s8 %v305
      %v307 = vlaneseq
      %v308 = vshrl.u32 %v307, 7
      %v309 = vsub.s32 %v306, %v308
      %v310 = vrot.slane %v223, %v309
      %v311 = vcombine.low %v302, %v310
      %v312 = vcombine.high %v302, %v310
      %v314 = vunpack.c.l.s4 1934713408
      %v315 = vunpack.c.0.s8 %v314
      %v316 = vlaneseq
      %v317 = vshrl.u32 %v316, 7
      %v318 = vsub.s32 %v315, %v317
      %v319 = vrot.slane %v311, %v318
      %v321 = vunpack.c.l.s4 1934713408
      %v322 = vunpack.c.0.s8 %v321
      %v323 = vlaneseq
      %v324 = vshrl.u32 %v323, 7
      %v325 = vsub.s32 %v322, %v324
      %v326 = vrot.slane %v312, %v325
      %v327 = vcombine.high %v319, 0
      %v328 = vcombine.high %v326, 0
      %v331 = vunpack.c.l.s4 1983009808
      %v332 = vunpack.c.0.s8 %v331
      %v333 = vlaneseq
      %v334 = vshrl.u32 %v333, 7
      %v335 = vsub.s32 %v332, %v334
      %v336 = vrot.slane %v220, %v335
      %v339 = vunpack.c.l.s4 1983009808
      %v340 = vunpack.c.0.s8 %v339
      %v341 = vlaneseq
      %v342 = vshrl.u32 %v341, 7
      %v343 = vsub.s32 %v340, %v342
      %v344 = vrot.slane %v226, %v343
      %v345 = vcombine.low %v336, %v344
      %v346 = vcombine.high %v336, %v344
      %v348 = vunpack.c.l.s4 1934713408
      %v349 = vunpack.c.0.s8 %v348
      %v350 = vlaneseq
      %v351 = vshrl.u32 %v350, 7
      %v352 = vsub.s32 %v349, %v351
      %v353 = vrot.slane %v345, %v352
      %v355 = vunpack.c.l.s4 1934713408
      %v356 = vunpack.c.0.s8 %v355
      %v357 = vlaneseq
      %v358 = vshrl.u32 %v357, 7
      %v359 = vsub.s32 %v356, %v358
      %v360 = vrot.slane %v346, %v359
      %v361 = vcombine.high %v353, 0
      %v362 = vcombine.high %v360, 0
      %v364 = vunpack.c.l.b16 %v285
      %v365 = vpack.c.b16 %v364, %v364
      %366 = vrot.lane.b32.xlu0 %v365, 16
      %v367 = vpop.permute.xlu0 %366
      %v369 = vunpack.c.l.b16 %v259
      %v370 = vpack.c.b16 %v369, %v369
      %371 = vrot.lane.b32.xlu0 %v370, 32
      %v372 = vpop.permute.xlu0 %371
      %v374 = vunpack.c.l.b16 %v293
      %v375 = vpack.c.b16 %v374, %v374
      %376 = vrot.lane.b32.xlu0 %v375, 48
      %v377 = vpop.permute.xlu0 %376
      %v379 = vunpack.c.l.b16 %v258
      %v380 = vpack.c.b16 %v379, %v379
      %381 = vrot.lane.b32.xlu0 %v380, 64
      %v382 = vpop.permute.xlu0 %381
      %v384 = vunpack.c.l.b16 %v292
      %v385 = vpack.c.b16 %v384, %v384
      %386 = vrot.lane.b32.xlu0 %v385, 80
      %v387 = vpop.permute.xlu0 %386
      %v389 = vunpack.c.l.b16 %v260
      %v390 = vpack.c.b16 %v389, %v389
      %391 = vrot.lane.b32.xlu0 %v390, 96
      %v392 = vpop.permute.xlu0 %391
      %v394 = vunpack.c.l.b16 %v294
      %v395 = vpack.c.b16 %v394, %v394
      %396 = vrot.lane.b32.xlu0 %v395, 112
      %v397 = vpop.permute.xlu0 %396
      %v399 = vunpack.c.l.b16 %v353
      %v400 = vpack.c.b16 %v399, %v399
      %401 = vrot.lane.b32.xlu0 %v400, 16
      %v402 = vpop.permute.xlu0 %401
      %v404 = vunpack.c.l.b16 %v327
      %v405 = vpack.c.b16 %v404, %v404
      %406 = vrot.lane.b32.xlu0 %v405, 32
      %v407 = vpop.permute.xlu0 %406
      %v409 = vunpack.c.l.b16 %v361
      %v410 = vpack.c.b16 %v409, %v409
      %411 = vrot.lane.b32.xlu0 %v410, 48
      %v412 = vpop.permute.xlu0 %411
      %v414 = vunpack.c.l.b16 %v326
      %v415 = vpack.c.b16 %v414, %v414
      %416 = vrot.lane.b32.xlu0 %v415, 64
      %v417 = vpop.permute.xlu0 %416
      %v419 = vunpack.c.l.b16 %v360
      %v420 = vpack.c.b16 %v419, %v419
      %421 = vrot.lane.b32.xlu0 %v420, 80
      %v422 = vpop.permute.xlu0 %421
      %v424 = vunpack.c.l.b16 %v328
      %v425 = vpack.c.b16 %v424, %v424
      %426 = vrot.lane.b32.xlu0 %v425, 96
      %v427 = vpop.permute.xlu0 %426
      %v429 = vunpack.c.l.b16 %v362
      %v430 = vpack.c.b16 %v429, %v429
      %431 = vrot.lane.b32.xlu0 %v430, 112
      %v432 = vpop.permute.xlu0 %431
      %vm433 = vcmask 130048
      %v436 = vsel %vm433, %v251, %v367
      %vm437 = vcmask 261120
      %v439 = vsel %vm437, %v436, %v372
      %vm440 = vcmask 392192
      %v442 = vsel %vm440, %v439, %v377
      %vm443 = vcmask 523264
      %v445 = vsel %vm443, %v442, %v382
      %vm446 = vcmask 654336
      %v448 = vsel %vm446, %v445, %v387
      %vm449 = vcmask 785408
      %v451 = vsel %vm449, %v448, %v392
      %vm452 = vcmask 916480
      %v454 = vsel %vm452, %v451, %v397
      %v457 = vsel %vm433, %v319, %v402
      %v459 = vsel %vm437, %v457, %v407
      %v461 = vsel %vm440, %v459, %v412
      %v463 = vsel %vm443, %v461, %v417
      %v465 = vsel %vm446, %v463, %v422
      %v467 = vsel %vm449, %v465, %v427
      %v469 = vsel %vm452, %v467, %v432
      %478 = vrot.lane.b32.xlu0 %v195, 127
      %v479 = vpop.permute.xlu0 %478
      %480 = vrot.lane.b32.xlu0 %v196, 127
      %v481 = vpop.permute.xlu0 %480
      %482 = vrot.lane.b32.xlu0 %v197, 127
      %v483 = vpop.permute.xlu0 %482
      %484 = vrot.lane.b32.xlu0 %v198, 127
      %v485 = vpop.permute.xlu0 %484
      %486 = vrot.lane.b32.xlu0 %v199, 127
      %v487 = vpop.permute.xlu0 %486
      %488 = vrot.lane.b32.xlu0 %v200, 127
      %v489 = vpop.permute.xlu0 %488
      %490 = vrot.lane.b32.xlu0 %v201, 127
      %v491 = vpop.permute.xlu0 %490
      %492 = vrot.lane.b32.xlu0 %v202, 127
      %v493 = vpop.permute.xlu0 %492
      %v496 = vpack.i.b16 %v483, %v479
      %v497 = vshrl.u32 %v479, 16
      %v498 = vshrl.u32 %v483, 16
      %v499 = vpack.i.b16 %v498, %v497
      %v502 = vpack.i.b16 %v491, %v487
      %v503 = vshrl.u32 %v487, 16
      %v504 = vshrl.u32 %v491, 16
      %v505 = vpack.i.b16 %v504, %v503
      %v508 = vpack.i.b16 %v485, %v481
      %v509 = vshrl.u32 %v481, 16
      %v510 = vshrl.u32 %v485, 16
      %v511 = vpack.i.b16 %v510, %v509
      %v514 = vpack.i.b16 %v493, %v489
      %v515 = vshrl.u32 %v489, 16
      %v516 = vshrl.u32 %v493, 16
      %v517 = vpack.i.b16 %v516, %v515
      %v520 = vunpack.c.l.s4 1983009808
      %v521 = vunpack.c.0.s8 %v520
      %v522 = vlaneseq
      %v523 = vshrl.u32 %v522, 7
      %v524 = vsub.s32 %v521, %v523
      %v525 = vrot.slane %v496, %v524
      %v528 = vunpack.c.l.s4 1983009808
      %v529 = vunpack.c.0.s8 %v528
      %v530 = vlaneseq
      %v531 = vshrl.u32 %v530, 7
      %v532 = vsub.s32 %v529, %v531
      %v533 = vrot.slane %v502, %v532
      %v534 = vcombine.low %v525, %v533
      %v535 = vcombine.high %v525, %v533
      %v537 = vunpack.c.l.s4 1934713408
      %v538 = vunpack.c.0.s8 %v537
      %v539 = vlaneseq
      %v540 = vshrl.u32 %v539, 7
      %v541 = vsub.s32 %v538, %v540
      %v542 = vrot.slane %v534, %v541
      %v544 = vunpack.c.l.s4 1934713408
      %v545 = vunpack.c.0.s8 %v544
      %v546 = vlaneseq
      %v547 = vshrl.u32 %v546, 7
      %v548 = vsub.s32 %v545, %v547
      %v549 = vrot.slane %v535, %v548
      %v550 = vcombine.high %v542, 0
      %v551 = vcombine.high %v549, 0
      %v554 = vunpack.c.l.s4 1983009808
      %v555 = vunpack.c.0.s8 %v554
      %v556 = vlaneseq
      %v557 = vshrl.u32 %v556, 7
      %v558 = vsub.s32 %v555, %v557
      %v559 = vrot.slane %v499, %v558
      %v562 = vunpack.c.l.s4 1983009808
      %v563 = vunpack.c.0.s8 %v562
      %v564 = vlaneseq
      %v565 = vshrl.u32 %v564, 7
      %v566 = vsub.s32 %v563, %v565
      %v567 = vrot.slane %v505, %v566
      %v568 = vcombine.low %v559, %v567
      %v569 = vcombine.high %v559, %v567
      %v571 = vunpack.c.l.s4 1934713408
      %v572 = vunpack.c.0.s8 %v571
      %v573 = vlaneseq
      %v574 = vshrl.u32 %v573, 7
      %v575 = vsub.s32 %v572, %v574
      %v576 = vrot.slane %v568, %v575
      %v578 = vunpack.c.l.s4 1934713408
      %v579 = vunpack.c.0.s8 %v578
      %v580 = vlaneseq
      %v581 = vshrl.u32 %v580, 7
      %v582 = vsub.s32 %v579, %v581
      %v583 = vrot.slane %v569, %v582
      %v584 = vcombine.high %v576, 0
      %v585 = vcombine.high %v583, 0
      %v588 = vunpack.c.l.s4 1983009808
      %v589 = vunpack.c.0.s8 %v588
      %v590 = vlaneseq
      %v591 = vshrl.u32 %v590, 7
      %v592 = vsub.s32 %v589, %v591
      %v593 = vrot.slane %v508, %v592
      %v596 = vunpack.c.l.s4 1983009808
      %v597 = vunpack.c.0.s8 %v596
      %v598 = vlaneseq
      %v599 = vshrl.u32 %v598, 7
      %v600 = vsub.s32 %v597, %v599
      %v601 = vrot.slane %v514, %v600
      %v602 = vcombine.low %v593, %v601
      %v603 = vcombine.high %v593, %v601
      %v605 = vunpack.c.l.s4 1934713408
      %v606 = vunpack.c.0.s8 %v605
      %v607 = vlaneseq
      %v608 = vshrl.u32 %v607, 7
      %v609 = vsub.s32 %v606, %v608
      %v610 = vrot.slane %v602, %v609
      %v612 = vunpack.c.l.s4 1934713408
      %v613 = vunpack.c.0.s8 %v612
      %v614 = vlaneseq
      %v615 = vshrl.u32 %v614, 7
      %v616 = vsub.s32 %v613, %v615
      %v617 = vrot.slane %v603, %v616
      %v618 = vcombine.high %v610, 0
      %v619 = vcombine.high %v617, 0
      %v622 = vunpack.c.l.s4 1983009808
      %v623 = vunpack.c.0.s8 %v622
      %v624 = vlaneseq
      %v625 = vshrl.u32 %v624, 7
      %v626 = vsub.s32 %v623, %v625
      %v627 = vrot.slane %v511, %v626
      %v630 = vunpack.c.l.s4 1983009808
      %v631 = vunpack.c.0.s8 %v630
      %v632 = vlaneseq
      %v633 = vshrl.u32 %v632, 7
      %v634 = vsub.s32 %v631, %v633
      %v635 = vrot.slane %v517, %v634
      %v636 = vcombine.low %v627, %v635
      %v637 = vcombine.high %v627, %v635
      %v639 = vunpack.c.l.s4 1934713408
      %v640 = vunpack.c.0.s8 %v639
      %v641 = vlaneseq
      %v642 = vshrl.u32 %v641, 7
      %v643 = vsub.s32 %v640, %v642
      %v644 = vrot.slane %v636, %v643
      %v646 = vunpack.c.l.s4 1934713408
      %v647 = vunpack.c.0.s8 %v646
      %v648 = vlaneseq
      %v649 = vshrl.u32 %v648, 7
      %v650 = vsub.s32 %v647, %v649
      %v651 = vrot.slane %v637, %v650
      %v652 = vcombine.high %v644, 0
      %v653 = vcombine.high %v651, 0
      %v655 = vunpack.c.l.b16 %v576
      %v656 = vpack.c.b16 %v655, %v655
      %657 = vrot.lane.b32.xlu0 %v656, 16
      %v658 = vpop.permute.xlu0 %657
      %v660 = vunpack.c.l.b16 %v550
      %v661 = vpack.c.b16 %v660, %v660
      %662 = vrot.lane.b32.xlu0 %v661, 32
      %v663 = vpop.permute.xlu0 %662
      %v665 = vunpack.c.l.b16 %v584
      %v666 = vpack.c.b16 %v665, %v665
      %667 = vrot.lane.b32.xlu0 %v666, 48
      %v668 = vpop.permute.xlu0 %667
      %v670 = vunpack.c.l.b16 %v549
      %v671 = vpack.c.b16 %v670, %v670
      %672 = vrot.lane.b32.xlu0 %v671, 64
      %v673 = vpop.permute.xlu0 %672
      %v675 = vunpack.c.l.b16 %v583
      %v676 = vpack.c.b16 %v675, %v675
      %677 = vrot.lane.b32.xlu0 %v676, 80
      %v678 = vpop.permute.xlu0 %677
      %v680 = vunpack.c.l.b16 %v551
      %v681 = vpack.c.b16 %v680, %v680
      %682 = vrot.lane.b32.xlu0 %v681, 96
      %v683 = vpop.permute.xlu0 %682
      %v685 = vunpack.c.l.b16 %v585
      %v686 = vpack.c.b16 %v685, %v685
      %687 = vrot.lane.b32.xlu0 %v686, 112
      %v688 = vpop.permute.xlu0 %687
      %v690 = vunpack.c.l.b16 %v644
      %v691 = vpack.c.b16 %v690, %v690
      %692 = vrot.lane.b32.xlu0 %v691, 16
      %v693 = vpop.permute.xlu0 %692
      %v695 = vunpack.c.l.b16 %v618
      %v696 = vpack.c.b16 %v695, %v695
      %697 = vrot.lane.b32.xlu0 %v696, 32
      %v698 = vpop.permute.xlu0 %697
      %v700 = vunpack.c.l.b16 %v652
      %v701 = vpack.c.b16 %v700, %v700
      %702 = vrot.lane.b32.xlu0 %v701, 48
      %v703 = vpop.permute.xlu0 %702
      %v705 = vunpack.c.l.b16 %v617
      %v706 = vpack.c.b16 %v705, %v705
      %707 = vrot.lane.b32.xlu0 %v706, 64
      %v708 = vpop.permute.xlu0 %707
      %v710 = vunpack.c.l.b16 %v651
      %v711 = vpack.c.b16 %v710, %v710
      %712 = vrot.lane.b32.xlu0 %v711, 80
      %v713 = vpop.permute.xlu0 %712
      %v715 = vunpack.c.l.b16 %v619
      %v716 = vpack.c.b16 %v715, %v715
      %717 = vrot.lane.b32.xlu0 %v716, 96
      %v718 = vpop.permute.xlu0 %717
      %v720 = vunpack.c.l.b16 %v653
      %v721 = vpack.c.b16 %v720, %v720
      %722 = vrot.lane.b32.xlu0 %v721, 112
      %v723 = vpop.permute.xlu0 %722
      %v726 = vsel %vm433, %v542, %v658
      %v728 = vsel %vm437, %v726, %v663
      %v730 = vsel %vm440, %v728, %v668
      %v732 = vsel %vm443, %v730, %v673
      %v734 = vsel %vm446, %v732, %v678
      %v736 = vsel %vm449, %v734, %v683
      %v738 = vsel %vm452, %v736, %v688
      %v741 = vsel %vm433, %v610, %v693
      %v743 = vsel %vm437, %v741, %v698
      %v745 = vsel %vm440, %v743, %v703
      %v747 = vsel %vm443, %v745, %v708
      %v749 = vsel %vm446, %v747, %v713
      %v751 = vsel %vm449, %v749, %v718
      %v753 = vsel %vm452, %v751, %v723
      %754 = vrot.lane.b32.xlu0 %v195, 126
      %v755 = vpop.permute.xlu0 %754
      %756 = vrot.lane.b32.xlu0 %v196, 126
      %v757 = vpop.permute.xlu0 %756
      %758 = vrot.lane.b32.xlu0 %v197, 126
      %v759 = vpop.permute.xlu0 %758
      %760 = vrot.lane.b32.xlu0 %v198, 126
      %v761 = vpop.permute.xlu0 %760
      %762 = vrot.lane.b32.xlu0 %v199, 126
      %v763 = vpop.permute.xlu0 %762
      %764 = vrot.lane.b32.xlu0 %v200, 126
      %v765 = vpop.permute.xlu0 %764
      %766 = vrot.lane.b32.xlu0 %v201, 126
      %v767 = vpop.permute.xlu0 %766
      %768 = vrot.lane.b32.xlu0 %v202, 126
      %v769 = vpop.permute.xlu0 %768
      %v772 = vpack.i.b16 %v759, %v755
      %v773 = vshrl.u32 %v755, 16
      %v774 = vshrl.u32 %v759, 16
      %v775 = vpack.i.b16 %v774, %v773
      %v778 = vpack.i.b16 %v767, %v763
      %v779 = vshrl.u32 %v763, 16
      %v780 = vshrl.u32 %v767, 16
      %v781 = vpack.i.b16 %v780, %v779
      %v784 = vpack.i.b16 %v761, %v757
      %v785 = vshrl.u32 %v757, 16
      %v786 = vshrl.u32 %v761, 16
      %v787 = vpack.i.b16 %v786, %v785
      %v790 = vpack.i.b16 %v769, %v765
      %v791 = vshrl.u32 %v765, 16
      %v792 = vshrl.u32 %v769, 16
      %v793 = vpack.i.b16 %v792, %v791
      %v796 = vunpack.c.l.s4 1983009808
      %v797 = vunpack.c.0.s8 %v796
      %v798 = vlaneseq
      %v799 = vshrl.u32 %v798, 7
      %v800 = vsub.s32 %v797, %v799
      %v801 = vrot.slane %v772, %v800
      %v804 = vunpack.c.l.s4 1983009808
      %v805 = vunpack.c.0.s8 %v804
      %v806 = vlaneseq
      %v807 = vshrl.u32 %v806, 7
      %v808 = vsub.s32 %v805, %v807
      %v809 = vrot.slane %v778, %v808
      %v810 = vcombine.low %v801, %v809
      %v811 = vcombine.high %v801, %v809
      %v813 = vunpack.c.l.s4 1934713408
      %v814 = vunpack.c.0.s8 %v813
      %v815 = vlaneseq
      %v816 = vshrl.u32 %v815, 7
      %v817 = vsub.s32 %v814, %v816
      %v818 = vrot.slane %v810, %v817
      %v820 = vunpack.c.l.s4 1934713408
      %v821 = vunpack.c.0.s8 %v820
      %v822 = vlaneseq
      %v823 = vshrl.u32 %v822, 7
      %v824 = vsub.s32 %v821, %v823
      %v825 = vrot.slane %v811, %v824
      %v826 = vcombine.high %v818, 0
      %v827 = vcombine.high %v825, 0
      %v830 = vunpack.c.l.s4 1983009808
      %v831 = vunpack.c.0.s8 %v830
      %v832 = vlaneseq
      %v833 = vshrl.u32 %v832, 7
      %v834 = vsub.s32 %v831, %v833
      %v835 = vrot.slane %v775, %v834
      %v838 = vunpack.c.l.s4 1983009808
      %v839 = vunpack.c.0.s8 %v838
      %v840 = vlaneseq
      %v841 = vshrl.u32 %v840, 7
      %v842 = vsub.s32 %v839, %v841
      %v843 = vrot.slane %v781, %v842
      %v844 = vcombine.low %v835, %v843
      %v845 = vcombine.high %v835, %v843
      %v847 = vunpack.c.l.s4 1934713408
      %v848 = vunpack.c.0.s8 %v847
      %v849 = vlaneseq
      %v850 = vshrl.u32 %v849, 7
      %v851 = vsub.s32 %v848, %v850
      %v852 = vrot.slane %v844, %v851
      %v854 = vunpack.c.l.s4 1934713408
      %v855 = vunpack.c.0.s8 %v854
      %v856 = vlaneseq
      %v857 = vshrl.u32 %v856, 7
      %v858 = vsub.s32 %v855, %v857
      %v859 = vrot.slane %v845, %v858
      %v860 = vcombine.high %v852, 0
      %v861 = vcombine.high %v859, 0
      %v864 = vunpack.c.l.s4 1983009808
      %v865 = vunpack.c.0.s8 %v864
      %v866 = vlaneseq
      %v867 = vshrl.u32 %v866, 7
      %v868 = vsub.s32 %v865, %v867
      %v869 = vrot.slane %v784, %v868
      %v872 = vunpack.c.l.s4 1983009808
      %v873 = vunpack.c.0.s8 %v872
      %v874 = vlaneseq
      %v875 = vshrl.u32 %v874, 7
      %v876 = vsub.s32 %v873, %v875
      %v877 = vrot.slane %v790, %v876
      %v878 = vcombine.low %v869, %v877
      %v879 = vcombine.high %v869, %v877
      %v881 = vunpack.c.l.s4 1934713408
      %v882 = vunpack.c.0.s8 %v881
      %v883 = vlaneseq
      %v884 = vshrl.u32 %v883, 7
      %v885 = vsub.s32 %v882, %v884
      %v886 = vrot.slane %v878, %v885
      %v888 = vunpack.c.l.s4 1934713408
      %v889 = vunpack.c.0.s8 %v888
      %v890 = vlaneseq
      %v891 = vshrl.u32 %v890, 7
      %v892 = vsub.s32 %v889, %v891
      %v893 = vrot.slane %v879, %v892
      %v894 = vcombine.high %v886, 0
      %v895 = vcombine.high %v893, 0
      %v898 = vunpack.c.l.s4 1983009808
      %v899 = vunpack.c.0.s8 %v898
      %v900 = vlaneseq
      %v901 = vshrl.u32 %v900, 7
      %v902 = vsub.s32 %v899, %v901
      %v903 = vrot.slane %v787, %v902
      %v906 = vunpack.c.l.s4 1983009808
      %v907 = vunpack.c.0.s8 %v906
      %v908 = vlaneseq
      %v909 = vshrl.u32 %v908, 7
      %v910 = vsub.s32 %v907, %v909
      %v911 = vrot.slane %v793, %v910
      %v912 = vcombine.low %v903, %v911
      %v913 = vcombine.high %v903, %v911
      %v915 = vunpack.c.l.s4 1934713408
      %v916 = vunpack.c.0.s8 %v915
      %v917 = vlaneseq
      %v918 = vshrl.u32 %v917, 7
      %v919 = vsub.s32 %v916, %v918
      %v920 = vrot.slane %v912, %v919
      %v922 = vunpack.c.l.s4 1934713408
      %v923 = vunpack.c.0.s8 %v922
      %v924 = vlaneseq
      %v925 = vshrl.u32 %v924, 7
      %v926 = vsub.s32 %v923, %v925
      %v927 = vrot.slane %v913, %v926
      %v928 = vcombine.high %v920, 0
      %v929 = vcombine.high %v927, 0
      %v931 = vunpack.c.l.b16 %v852
      %v932 = vpack.c.b16 %v931, %v931
      %933 = vrot.lane.b32.xlu0 %v932, 16
      %v934 = vpop.permute.xlu0 %933
      %v936 = vunpack.c.l.b16 %v826
      %v937 = vpack.c.b16 %v936, %v936
      %938 = vrot.lane.b32.xlu0 %v937, 32
      %v939 = vpop.permute.xlu0 %938
      %v941 = vunpack.c.l.b16 %v860
      %v942 = vpack.c.b16 %v941, %v941
      %943 = vrot.lane.b32.xlu0 %v942, 48
      %v944 = vpop.permute.xlu0 %943
      %v946 = vunpack.c.l.b16 %v825
      %v947 = vpack.c.b16 %v946, %v946
      %948 = vrot.lane.b32.xlu0 %v947, 64
      %v949 = vpop.permute.xlu0 %948
      %v951 = vunpack.c.l.b16 %v859
      %v952 = vpack.c.b16 %v951, %v951
      %953 = vrot.lane.b32.xlu0 %v952, 80
      %v954 = vpop.permute.xlu0 %953
      %v956 = vunpack.c.l.b16 %v827
      %v957 = vpack.c.b16 %v956, %v956
      %958 = vrot.lane.b32.xlu0 %v957, 96
      %v959 = vpop.permute.xlu0 %958
      %v961 = vunpack.c.l.b16 %v861
      %v962 = vpack.c.b16 %v961, %v961
      %963 = vrot.lane.b32.xlu0 %v962, 112
      %v964 = vpop.permute.xlu0 %963
      %v966 = vunpack.c.l.b16 %v920
      %v967 = vpack.c.b16 %v966, %v966
      %968 = vrot.lane.b32.xlu0 %v967, 16
      %v969 = vpop.permute.xlu0 %968
      %v971 = vunpack.c.l.b16 %v894
      %v972 = vpack.c.b16 %v971, %v971
      %973 = vrot.lane.b32.xlu0 %v972, 32
      %v974 = vpop.permute.xlu0 %973
      %v976 = vunpack.c.l.b16 %v928
      %v977 = vpack.c.b16 %v976, %v976
      %978 = vrot.lane.b32.xlu0 %v977, 48
      %v979 = vpop.permute.xlu0 %978
      %v981 = vunpack.c.l.b16 %v893
      %v982 = vpack.c.b16 %v981, %v981
      %983 = vrot.lane.b32.xlu0 %v982, 64
      %v984 = vpop.permute.xlu0 %983
      %v986 = vunpack.c.l.b16 %v927
      %v987 = vpack.c.b16 %v986, %v986
      %988 = vrot.lane.b32.xlu0 %v987, 80
      %v989 = vpop.permute.xlu0 %988
      %v991 = vunpack.c.l.b16 %v895
      %v992 = vpack.c.b16 %v991, %v991
      %993 = vrot.lane.b32.xlu0 %v992, 96
      %v994 = vpop.permute.xlu0 %993
      %v996 = vunpack.c.l.b16 %v929
      %v997 = vpack.c.b16 %v996, %v996
      %998 = vrot.lane.b32.xlu0 %v997, 112
      %v999 = vpop.permute.xlu0 %998
      %v1002 = vsel %vm433, %v818, %v934
      %v1004 = vsel %vm437, %v1002, %v939
      %v1006 = vsel %vm440, %v1004, %v944
      %v1008 = vsel %vm443, %v1006, %v949
      %v1010 = vsel %vm446, %v1008, %v954
      %v1012 = vsel %vm449, %v1010, %v959
      %v1014 = vsel %vm452, %v1012, %v964
      %v1017 = vsel %vm433, %v886, %v969
      %v1019 = vsel %vm437, %v1017, %v974
      %v1021 = vsel %vm440, %v1019, %v979
      %v1023 = vsel %vm443, %v1021, %v984
      %v1025 = vsel %vm446, %v1023, %v989
      %v1027 = vsel %vm449, %v1025, %v994
      %v1029 = vsel %vm452, %v1027, %v999
      %v1030 = vld [vmem:[%s183 + $0x8] sm:$0x1]
      %v1031 = vld [vmem:[%s183 + $0x14] sm:$0x1]
      %v1032 = vld [vmem:[%s183 + $0x20] sm:$0x1]
      %v1033 = vld [vmem:[%s183 + $0x2c] sm:$0x1]
      %vm1034 = vsmask.f32 3328
      %vm1035 = vsmask.f32 7440
      %vm1036 = vmor %vm1034, %vm1035
      %v1038 = vrot.slane %v206, 4
      %v1039 = vshll.u32 %v195, 16
      %v1041 = vrot.slane %v1039, 5
      %v1042 = vor.u32 %v1038, %v1041
      %v1043 = vrot.slane %v1042, 4
      %v1044 = vshll.u32 %v196, 16
      %v1046 = vrot.slane %v1044, 5
      %v1047 = vsel %vm1036, %v1043, %v1046
      %v1049 = vrot.slane %v218, 4
      %v1050 = vor.u32 %v1049, %v1046
      %v1051 = vrot.slane %v1050, 4
      %v1053 = vshll.u32 %v1030, 16
      %v1055 = vrot.slane %v1053, 5
      %v1056 = vsel %vm1036, %v1051, %v1055
      %v1058 = vrot.slane %v207, 4
      %v1059 = vshll.u32 %v197, 16
      %v1061 = vrot.slane %v1059, 5
      %v1062 = vor.u32 %v1058, %v1061
      %v1063 = vrot.slane %v1062, 4
      %v1064 = vshll.u32 %v198, 16
      %v1066 = vrot.slane %v1064, 5
      %v1067 = vsel %vm1036, %v1063, %v1066
      %v1069 = vrot.slane %v219, 4
      %v1070 = vor.u32 %v1069, %v1066
      %v1071 = vrot.slane %v1070, 4
      %v1073 = vshll.u32 %v1031, 16
      %v1075 = vrot.slane %v1073, 5
      %v1076 = vsel %vm1036, %v1071, %v1075
      %v1078 = vrot.slane %v212, 4
      %v1079 = vshll.u32 %v199, 16
      %v1081 = vrot.slane %v1079, 5
      %v1082 = vor.u32 %v1078, %v1081
      %v1083 = vrot.slane %v1082, 4
      %v1084 = vshll.u32 %v200, 16
      %v1086 = vrot.slane %v1084, 5
      %v1087 = vsel %vm1036, %v1083, %v1086
      %v1089 = vrot.slane %v224, 4
      %v1090 = vor.u32 %v1089, %v1086
      %v1091 = vrot.slane %v1090, 4
      %v1093 = vshll.u32 %v1032, 16
      %v1095 = vrot.slane %v1093, 5
      %v1096 = vsel %vm1036, %v1091, %v1095
      %v1098 = vrot.slane %v213, 4
      %v1099 = vshll.u32 %v201, 16
      %v1101 = vrot.slane %v1099, 5
      %v1102 = vor.u32 %v1098, %v1101
      %v1103 = vrot.slane %v1102, 4
      %v1104 = vshll.u32 %v202, 16
      %v1106 = vrot.slane %v1104, 5
      %v1107 = vsel %vm1036, %v1103, %v1106
      %v1109 = vrot.slane %v225, 4
      %v1110 = vor.u32 %v1109, %v1106
      %v1111 = vrot.slane %v1110, 4
      %v1113 = vshll.u32 %v1033, 16
      %v1115 = vrot.slane %v1113, 5
      %v1116 = vsel %vm1036, %v1111, %v1115
      %v1119 = vpack.i.b16 %v1067, %v1047
      %v1120 = vshrl.u32 %v1047, 16
      %v1121 = vshrl.u32 %v1067, 16
      %v1122 = vpack.i.b16 %v1121, %v1120
      %v1125 = vpack.i.b16 %v1107, %v1087
      %v1126 = vshrl.u32 %v1087, 16
      %v1127 = vshrl.u32 %v1107, 16
      %v1128 = vpack.i.b16 %v1127, %v1126
      %v1131 = vpack.i.b16 %v1076, %v1056
      %v1132 = vshrl.u32 %v1056, 16
      %v1133 = vshrl.u32 %v1076, 16
      %v1134 = vpack.i.b16 %v1133, %v1132
      %v1137 = vpack.i.b16 %v1116, %v1096
      %v1138 = vshrl.u32 %v1096, 16
      %v1139 = vshrl.u32 %v1116, 16
      %v1140 = vpack.i.b16 %v1139, %v1138
      %v1143 = vunpack.c.l.s4 1983009808
      %v1144 = vunpack.c.0.s8 %v1143
      %v1145 = vlaneseq
      %v1146 = vshrl.u32 %v1145, 7
      %v1147 = vsub.s32 %v1144, %v1146
      %v1148 = vrot.slane %v1119, %v1147
      %v1151 = vunpack.c.l.s4 1983009808
      %v1152 = vunpack.c.0.s8 %v1151
      %v1153 = vlaneseq
      %v1154 = vshrl.u32 %v1153, 7
      %v1155 = vsub.s32 %v1152, %v1154
      %v1156 = vrot.slane %v1125, %v1155
      %v1157 = vcombine.low %v1148, %v1156
      %v1158 = vcombine.high %v1148, %v1156
      %v1160 = vunpack.c.l.s4 1934713408
      %v1161 = vunpack.c.0.s8 %v1160
      %v1162 = vlaneseq
      %v1163 = vshrl.u32 %v1162, 7
      %v1164 = vsub.s32 %v1161, %v1163
      %v1165 = vrot.slane %v1157, %v1164
      %v1167 = vunpack.c.l.s4 1934713408
      %v1168 = vunpack.c.0.s8 %v1167
      %v1169 = vlaneseq
      %v1170 = vshrl.u32 %v1169, 7
      %v1171 = vsub.s32 %v1168, %v1170
      %v1172 = vrot.slane %v1158, %v1171
      %v1173 = vcombine.high %v1165, 0
      %v1174 = vcombine.high %v1172, 0
      %v1177 = vunpack.c.l.s4 1983009808
      %v1178 = vunpack.c.0.s8 %v1177
      %v1179 = vlaneseq
      %v1180 = vshrl.u32 %v1179, 7
      %v1181 = vsub.s32 %v1178, %v1180
      %v1182 = vrot.slane %v1122, %v1181
      %v1185 = vunpack.c.l.s4 1983009808
      %v1186 = vunpack.c.0.s8 %v1185
      %v1187 = vlaneseq
      %v1188 = vshrl.u32 %v1187, 7
      %v1189 = vsub.s32 %v1186, %v1188
      %v1190 = vrot.slane %v1128, %v1189
      %v1191 = vcombine.low %v1182, %v1190
      %v1192 = vcombine.high %v1182, %v1190
      %v1194 = vunpack.c.l.s4 1934713408
      %v1195 = vunpack.c.0.s8 %v1194
      %v1196 = vlaneseq
      %v1197 = vshrl.u32 %v1196, 7
      %v1198 = vsub.s32 %v1195, %v1197
      %v1199 = vrot.slane %v1191, %v1198
      %v1201 = vunpack.c.l.s4 1934713408
      %v1202 = vunpack.c.0.s8 %v1201
      %v1203 = vlaneseq
      %v1204 = vshrl.u32 %v1203, 7
      %v1205 = vsub.s32 %v1202, %v1204
      %v1206 = vrot.slane %v1192, %v1205
      %v1207 = vcombine.high %v1199, 0
      %v1208 = vcombine.high %v1206, 0
      %v1211 = vunpack.c.l.s4 1983009808
      %v1212 = vunpack.c.0.s8 %v1211
      %v1213 = vlaneseq
      %v1214 = vshrl.u32 %v1213, 7
      %v1215 = vsub.s32 %v1212, %v1214
      %v1216 = vrot.slane %v1131, %v1215
      %v1219 = vunpack.c.l.s4 1983009808
      %v1220 = vunpack.c.0.s8 %v1219
      %v1221 = vlaneseq
      %v1222 = vshrl.u32 %v1221, 7
      %v1223 = vsub.s32 %v1220, %v1222
      %v1224 = vrot.slane %v1137, %v1223
      %v1225 = vcombine.low %v1216, %v1224
      %v1226 = vcombine.high %v1216, %v1224
      %v1228 = vunpack.c.l.s4 1934713408
      %v1229 = vunpack.c.0.s8 %v1228
      %v1230 = vlaneseq
      %v1231 = vshrl.u32 %v1230, 7
      %v1232 = vsub.s32 %v1229, %v1231
      %v1233 = vrot.slane %v1225, %v1232
      %v1235 = vunpack.c.l.s4 1934713408
      %v1236 = vunpack.c.0.s8 %v1235
      %v1237 = vlaneseq
      %v1238 = vshrl.u32 %v1237, 7
      %v1239 = vsub.s32 %v1236, %v1238
      %v1240 = vrot.slane %v1226, %v1239
      %v1241 = vcombine.high %v1233, 0
      %v1242 = vcombine.high %v1240, 0
      %v1245 = vunpack.c.l.s4 1983009808
      %v1246 = vunpack.c.0.s8 %v1245
      %v1247 = vlaneseq
      %v1248 = vshrl.u32 %v1247, 7
      %v1249 = vsub.s32 %v1246, %v1248
      %v1250 = vrot.slane %v1134, %v1249
      %v1253 = vunpack.c.l.s4 1983009808
      %v1254 = vunpack.c.0.s8 %v1253
      %v1255 = vlaneseq
      %v1256 = vshrl.u32 %v1255, 7
      %v1257 = vsub.s32 %v1254, %v1256
      %v1258 = vrot.slane %v1140, %v1257
      %v1259 = vcombine.low %v1250, %v1258
      %v1260 = vcombine.high %v1250, %v1258
      %v1262 = vunpack.c.l.s4 1934713408
      %v1263 = vunpack.c.0.s8 %v1262
      %v1264 = vlaneseq
      %v1265 = vshrl.u32 %v1264, 7
      %v1266 = vsub.s32 %v1263, %v1265
      %v1267 = vrot.slane %v1259, %v1266
      %v1269 = vunpack.c.l.s4 1934713408
      %v1270 = vunpack.c.0.s8 %v1269
      %v1271 = vlaneseq
      %v1272 = vshrl.u32 %v1271, 7
      %v1273 = vsub.s32 %v1270, %v1272
      %v1274 = vrot.slane %v1260, %v1273
      %v1275 = vcombine.high %v1267, 0
      %v1276 = vcombine.high %v1274, 0
      %v1278 = vunpack.c.l.b16 %v1199
      %v1279 = vpack.c.b16 %v1278, %v1278
      %1280 = vrot.lane.b32.xlu0 %v1279, 16
      %v1281 = vpop.permute.xlu0 %1280
      %v1283 = vunpack.c.l.b16 %v1173
      %v1284 = vpack.c.b16 %v1283, %v1283
      %1285 = vrot.lane.b32.xlu0 %v1284, 32
      %v1286 = vpop.permute.xlu0 %1285
      %v1288 = vunpack.c.l.b16 %v1207
      %v1289 = vpack.c.b16 %v1288, %v1288
      %1290 = vrot.lane.b32.xlu0 %v1289, 48
      %v1291 = vpop.permute.xlu0 %1290
      %v1293 = vunpack.c.l.b16 %v1172
      %v1294 = vpack.c.b16 %v1293, %v1293
      %1295 = vrot.lane.b32.xlu0 %v1294, 64
      %v1296 = vpop.permute.xlu0 %1295
      %v1298 = vunpack.c.l.b16 %v1206
      %v1299 = vpack.c.b16 %v1298, %v1298
      %1300 = vrot.lane.b32.xlu0 %v1299, 80
      %v1301 = vpop.permute.xlu0 %1300
      %v1303 = vunpack.c.l.b16 %v1174
      %v1304 = vpack.c.b16 %v1303, %v1303
      %1305 = vrot.lane.b32.xlu0 %v1304, 96
      %v1306 = vpop.permute.xlu0 %1305
      %v1308 = vunpack.c.l.b16 %v1208
      %v1309 = vpack.c.b16 %v1308, %v1308
      %1310 = vrot.lane.b32.xlu0 %v1309, 112
      %v1311 = vpop.permute.xlu0 %1310
      %v1313 = vunpack.c.l.b16 %v1267
      %v1314 = vpack.c.b16 %v1313, %v1313
      %1315 = vrot.lane.b32.xlu0 %v1314, 16
      %v1316 = vpop.permute.xlu0 %1315
      %v1318 = vunpack.c.l.b16 %v1241
      %v1319 = vpack.c.b16 %v1318, %v1318
      %1320 = vrot.lane.b32.xlu0 %v1319, 32
      %v1321 = vpop.permute.xlu0 %1320
      %v1323 = vunpack.c.l.b16 %v1275
      %v1324 = vpack.c.b16 %v1323, %v1323
      %1325 = vrot.lane.b32.xlu0 %v1324, 48
      %v1326 = vpop.permute.xlu0 %1325
      %v1328 = vunpack.c.l.b16 %v1240
      %v1329 = vpack.c.b16 %v1328, %v1328
      %1330 = vrot.lane.b32.xlu0 %v1329, 64
      %v1331 = vpop.permute.xlu0 %1330
      %v1333 = vunpack.c.l.b16 %v1274
      %v1334 = vpack.c.b16 %v1333, %v1333
      %1335 = vrot.lane.b32.xlu0 %v1334, 80
      %v1336 = vpop.permute.xlu0 %1335
      %v1338 = vunpack.c.l.b16 %v1242
      %v1339 = vpack.c.b16 %v1338, %v1338
      %1340 = vrot.lane.b32.xlu0 %v1339, 96
      %v1341 = vpop.permute.xlu0 %1340
      %v1343 = vunpack.c.l.b16 %v1276
      %v1344 = vpack.c.b16 %v1343, %v1343
      %1345 = vrot.lane.b32.xlu0 %v1344, 112
      %v1346 = vpop.permute.xlu0 %1345
      %v1349 = vsel %vm433, %v1165, %v1281
      %v1351 = vsel %vm437, %v1349, %v1286
      %v1353 = vsel %vm440, %v1351, %v1291
      %v1355 = vsel %vm443, %v1353, %v1296
      %v1357 = vsel %vm446, %v1355, %v1301
      %v1359 = vsel %vm449, %v1357, %v1306
      %v1361 = vsel %vm452, %v1359, %v1311
      %v1364 = vsel %vm433, %v1233, %v1316
      %v1366 = vsel %vm437, %v1364, %v1321
      %v1368 = vsel %vm440, %v1366, %v1326
      %v1370 = vsel %vm443, %v1368, %v1331
      %v1372 = vsel %vm446, %v1370, %v1336
      %v1374 = vsel %vm449, %v1372, %v1341
      %v1376 = vsel %vm452, %v1374, %v1346
      %1377 = vrot.lane.b32.xlu0 %v1047, 127
      %v1378 = vpop.permute.xlu0 %1377
      %1379 = vrot.lane.b32.xlu0 %v1056, 127
      %v1380 = vpop.permute.xlu0 %1379
      %1381 = vrot.lane.b32.xlu0 %v1067, 127
      %v1382 = vpop.permute.xlu0 %1381
      %1383 = vrot.lane.b32.xlu0 %v1076, 127
      %v1384 = vpop.permute.xlu0 %1383
      %1385 = vrot.lane.b32.xlu0 %v1087, 127
      %v1386 = vpop.permute.xlu0 %1385
      %1387 = vrot.lane.b32.xlu0 %v1096, 127
      %v1388 = vpop.permute.xlu0 %1387
      %1389 = vrot.lane.b32.xlu0 %v1107, 127
      %v1390 = vpop.permute.xlu0 %1389
      %1391 = vrot.lane.b32.xlu0 %v1116, 127
      %v1392 = vpop.permute.xlu0 %1391
      %v1395 = vpack.i.b16 %v1382, %v1378
      %v1396 = vshrl.u32 %v1378, 16
      %v1397 = vshrl.u32 %v1382, 16
      %v1398 = vpack.i.b16 %v1397, %v1396
      %v1401 = vpack.i.b16 %v1390, %v1386
      %v1402 = vshrl.u32 %v1386, 16
      %v1403 = vshrl.u32 %v1390, 16
      %v1404 = vpack.i.b16 %v1403, %v1402
      %v1407 = vpack.i.b16 %v1384, %v1380
      %v1408 = vshrl.u32 %v1380, 16
      %v1409 = vshrl.u32 %v1384, 16
      %v1410 = vpack.i.b16 %v1409, %v1408
      %v1413 = vpack.i.b16 %v1392, %v1388
      %v1414 = vshrl.u32 %v1388, 16
      %v1415 = vshrl.u32 %v1392, 16
      %v1416 = vpack.i.b16 %v1415, %v1414
      %v1419 = vunpack.c.l.s4 1983009808
      %v1420 = vunpack.c.0.s8 %v1419
      %v1421 = vlaneseq
      %v1422 = vshrl.u32 %v1421, 7
      %v1423 = vsub.s32 %v1420, %v1422
      %v1424 = vrot.slane %v1395, %v1423
      %v1427 = vunpack.c.l.s4 1983009808
      %v1428 = vunpack.c.0.s8 %v1427
      %v1429 = vlaneseq
      %v1430 = vshrl.u32 %v1429, 7
      %v1431 = vsub.s32 %v1428, %v1430
      %v1432 = vrot.slane %v1401, %v1431
      %v1433 = vcombine.low %v1424, %v1432
      %v1434 = vcombine.high %v1424, %v1432
      %v1436 = vunpack.c.l.s4 1934713408
      %v1437 = vunpack.c.0.s8 %v1436
      %v1438 = vlaneseq
      %v1439 = vshrl.u32 %v1438, 7
      %v1440 = vsub.s32 %v1437, %v1439
      %v1441 = vrot.slane %v1433, %v1440
      %v1443 = vunpack.c.l.s4 1934713408
      %v1444 = vunpack.c.0.s8 %v1443
      %v1445 = vlaneseq
      %v1446 = vshrl.u32 %v1445, 7
      %v1447 = vsub.s32 %v1444, %v1446
      %v1448 = vrot.slane %v1434, %v1447
      %v1449 = vcombine.high %v1441, 0
      %v1450 = vcombine.high %v1448, 0
      %v1453 = vunpack.c.l.s4 1983009808
      %v1454 = vunpack.c.0.s8 %v1453
      %v1455 = vlaneseq
      %v1456 = vshrl.u32 %v1455, 7
      %v1457 = vsub.s32 %v1454, %v1456
      %v1458 = vrot.slane %v1398, %v1457
      %v1461 = vunpack.c.l.s4 1983009808
      %v1462 = vunpack.c.0.s8 %v1461
      %v1463 = vlaneseq
      %v1464 = vshrl.u32 %v1463, 7
      %v1465 = vsub.s32 %v1462, %v1464
      %v1466 = vrot.slane %v1404, %v1465
      %v1467 = vcombine.low %v1458, %v1466
      %v1468 = vcombine.high %v1458, %v1466
      %v1470 = vunpack.c.l.s4 1934713408
      %v1471 = vunpack.c.0.s8 %v1470
      %v1472 = vlaneseq
      %v1473 = vshrl.u32 %v1472, 7
      %v1474 = vsub.s32 %v1471, %v1473
      %v1475 = vrot.slane %v1467, %v1474
      %v1477 = vunpack.c.l.s4 1934713408
      %v1478 = vunpack.c.0.s8 %v1477
      %v1479 = vlaneseq
      %v1480 = vshrl.u32 %v1479, 7
      %v1481 = vsub.s32 %v1478, %v1480
      %v1482 = vrot.slane %v1468, %v1481
      %v1483 = vcombine.high %v1475, 0
      %v1484 = vcombine.high %v1482, 0
      %v1487 = vunpack.c.l.s4 1983009808
      %v1488 = vunpack.c.0.s8 %v1487
      %v1489 = vlaneseq
      %v1490 = vshrl.u32 %v1489, 7
      %v1491 = vsub.s32 %v1488, %v1490
      %v1492 = vrot.slane %v1407, %v1491
      %v1495 = vunpack.c.l.s4 1983009808
      %v1496 = vunpack.c.0.s8 %v1495
      %v1497 = vlaneseq
      %v1498 = vshrl.u32 %v1497, 7
      %v1499 = vsub.s32 %v1496, %v1498
      %v1500 = vrot.slane %v1413, %v1499
      %v1501 = vcombine.low %v1492, %v1500
      %v1502 = vcombine.high %v1492, %v1500
      %v1504 = vunpack.c.l.s4 1934713408
      %v1505 = vunpack.c.0.s8 %v1504
      %v1506 = vlaneseq
      %v1507 = vshrl.u32 %v1506, 7
      %v1508 = vsub.s32 %v1505, %v1507
      %v1509 = vrot.slane %v1501, %v1508
      %v1511 = vunpack.c.l.s4 1934713408
      %v1512 = vunpack.c.0.s8 %v1511
      %v1513 = vlaneseq
      %v1514 = vshrl.u32 %v1513, 7
      %v1515 = vsub.s32 %v1512, %v1514
      %v1516 = vrot.slane %v1502, %v1515
      %v1517 = vcombine.high %v1509, 0
      %v1518 = vcombine.high %v1516, 0
      %v1521 = vunpack.c.l.s4 1983009808
      %v1522 = vunpack.c.0.s8 %v1521
      %v1523 = vlaneseq
      %v1524 = vshrl.u32 %v1523, 7
      %v1525 = vsub.s32 %v1522, %v1524
      %v1526 = vrot.slane %v1410, %v1525
      %v1529 = vunpack.c.l.s4 1983009808
      %v1530 = vunpack.c.0.s8 %v1529
      %v1531 = vlaneseq
      %v1532 = vshrl.u32 %v1531, 7
      %v1533 = vsub.s32 %v1530, %v1532
      %v1534 = vrot.slane %v1416, %v1533
      %v1535 = vcombine.low %v1526, %v1534
      %v1536 = vcombine.high %v1526, %v1534
      %v1538 = vunpack.c.l.s4 1934713408
      %v1539 = vunpack.c.0.s8 %v1538
      %v1540 = vlaneseq
      %v1541 = vshrl.u32 %v1540, 7
      %v1542 = vsub.s32 %v1539, %v1541
      %v1543 = vrot.slane %v1535, %v1542
      %v1545 = vunpack.c.l.s4 1934713408
      %v1546 = vunpack.c.0.s8 %v1545
      %v1547 = vlaneseq
      %v1548 = vshrl.u32 %v1547, 7
      %v1549 = vsub.s32 %v1546, %v1548
      %v1550 = vrot.slane %v1536, %v1549
      %v1551 = vcombine.high %v1543, 0
      %v1552 = vcombine.high %v1550, 0
      %v1554 = vunpack.c.l.b16 %v1475
      %v1555 = vpack.c.b16 %v1554, %v1554
      %1556 = vrot.lane.b32.xlu0 %v1555, 16
      %v1557 = vpop.permute.xlu0 %1556
      %v1559 = vunpack.c.l.b16 %v1449
      %v1560 = vpack.c.b16 %v1559, %v1559
      %1561 = vrot.lane.b32.xlu0 %v1560, 32
      %v1562 = vpop.permute.xlu0 %1561
      %v1564 = vunpack.c.l.b16 %v1483
      %v1565 = vpack.c.b16 %v1564, %v1564
      %1566 = vrot.lane.b32.xlu0 %v1565, 48
      %v1567 = vpop.permute.xlu0 %1566
      %v1569 = vunpack.c.l.b16 %v1448
      %v1570 = vpack.c.b16 %v1569, %v1569
      %1571 = vrot.lane.b32.xlu0 %v1570, 64
      %v1572 = vpop.permute.xlu0 %1571
      %v1574 = vunpack.c.l.b16 %v1482
      %v1575 = vpack.c.b16 %v1574, %v1574
      %1576 = vrot.lane.b32.xlu0 %v1575, 80
      %v1577 = vpop.permute.xlu0 %1576
      %v1579 = vunpack.c.l.b16 %v1450
      %v1580 = vpack.c.b16 %v1579, %v1579
      %1581 = vrot.lane.b32.xlu0 %v1580, 96
      %v1582 = vpop.permute.xlu0 %1581
      %v1584 = vunpack.c.l.b16 %v1484
      %v1585 = vpack.c.b16 %v1584, %v1584
      %1586 = vrot.lane.b32.xlu0 %v1585, 112
      %v1587 = vpop.permute.xlu0 %1586
      %v1589 = vunpack.c.l.b16 %v1543
      %v1590 = vpack.c.b16 %v1589, %v1589
      %1591 = vrot.lane.b32.xlu0 %v1590, 16
      %v1592 = vpop.permute.xlu0 %1591
      %v1594 = vunpack.c.l.b16 %v1517
      %v1595 = vpack.c.b16 %v1594, %v1594
      %1596 = vrot.lane.b32.xlu0 %v1595, 32
      %v1597 = vpop.permute.xlu0 %1596
      %v1599 = vunpack.c.l.b16 %v1551
      %v1600 = vpack.c.b16 %v1599, %v1599
      %1601 = vrot.lane.b32.xlu0 %v1600, 48
      %v1602 = vpop.permute.xlu0 %1601
      %v1604 = vunpack.c.l.b16 %v1516
      %v1605 = vpack.c.b16 %v1604, %v1604
      %1606 = vrot.lane.b32.xlu0 %v1605, 64
      %v1607 = vpop.permute.xlu0 %1606
      %v1609 = vunpack.c.l.b16 %v1550
      %v1610 = vpack.c.b16 %v1609, %v1609
      %1611 = vrot.lane.b32.xlu0 %v1610, 80
      %v1612 = vpop.permute.xlu0 %1611
      %v1614 = vunpack.c.l.b16 %v1518
      %v1615 = vpack.c.b16 %v1614, %v1614
      %1616 = vrot.lane.b32.xlu0 %v1615, 96
      %v1617 = vpop.permute.xlu0 %1616
      %v1619 = vunpack.c.l.b16 %v1552
      %v1620 = vpack.c.b16 %v1619, %v1619
      %1621 = vrot.lane.b32.xlu0 %v1620, 112
      %v1622 = vpop.permute.xlu0 %1621
      %v1625 = vsel %vm433, %v1441, %v1557
      %v1627 = vsel %vm437, %v1625, %v1562
      %v1629 = vsel %vm440, %v1627, %v1567
      %v1631 = vsel %vm443, %v1629, %v1572
      %v1633 = vsel %vm446, %v1631, %v1577
      %v1635 = vsel %vm449, %v1633, %v1582
      %v1637 = vsel %vm452, %v1635, %v1587
      %v1640 = vsel %vm433, %v1509, %v1592
      %v1642 = vsel %vm437, %v1640, %v1597
      %v1644 = vsel %vm440, %v1642, %v1602
      %v1646 = vsel %vm443, %v1644, %v1607
      %v1648 = vsel %vm446, %v1646, %v1612
      %v1650 = vsel %vm449, %v1648, %v1617
      %v1652 = vsel %vm452, %v1650, %v1622
      %1653 = vrot.lane.b32.xlu0 %v1047, 126
      %v1654 = vpop.permute.xlu0 %1653
      %1655 = vrot.lane.b32.xlu0 %v1056, 126
      %v1656 = vpop.permute.xlu0 %1655
      %1657 = vrot.lane.b32.xlu0 %v1067, 126
      %v1658 = vpop.permute.xlu0 %1657
      %1659 = vrot.lane.b32.xlu0 %v1076, 126
      %v1660 = vpop.permute.xlu0 %1659
      %1661 = vrot.lane.b32.xlu0 %v1087, 126
      %v1662 = vpop.permute.xlu0 %1661
      %1663 = vrot.lane.b32.xlu0 %v1096, 126
      %v1664 = vpop.permute.xlu0 %1663
      %1665 = vrot.lane.b32.xlu0 %v1107, 126
      %v1666 = vpop.permute.xlu0 %1665
      %1667 = vrot.lane.b32.xlu0 %v1116, 126
      %v1668 = vpop.permute.xlu0 %1667
      %v1671 = vpack.i.b16 %v1658, %v1654
      %v1672 = vshrl.u32 %v1654, 16
      %v1673 = vshrl.u32 %v1658, 16
      %v1674 = vpack.i.b16 %v1673, %v1672
      %v1677 = vpack.i.b16 %v1666, %v1662
      %v1678 = vshrl.u32 %v1662, 16
      %v1679 = vshrl.u32 %v1666, 16
      %v1680 = vpack.i.b16 %v1679, %v1678
      %v1683 = vpack.i.b16 %v1660, %v1656
      %v1684 = vshrl.u32 %v1656, 16
      %v1685 = vshrl.u32 %v1660, 16
      %v1686 = vpack.i.b16 %v1685, %v1684
      %v1689 = vpack.i.b16 %v1668, %v1664
      %v1690 = vshrl.u32 %v1664, 16
      %v1691 = vshrl.u32 %v1668, 16
      %v1692 = vpack.i.b16 %v1691, %v1690
      %v1695 = vunpack.c.l.s4 1983009808
      %v1696 = vunpack.c.0.s8 %v1695
      %v1697 = vlaneseq
      %v1698 = vshrl.u32 %v1697, 7
      %v1699 = vsub.s32 %v1696, %v1698
      %v1700 = vrot.slane %v1671, %v1699
      %v1703 = vunpack.c.l.s4 1983009808
      %v1704 = vunpack.c.0.s8 %v1703
      %v1705 = vlaneseq
      %v1706 = vshrl.u32 %v1705, 7
      %v1707 = vsub.s32 %v1704, %v1706
      %v1708 = vrot.slane %v1677, %v1707
      %v1709 = vcombine.low %v1700, %v1708
      %v1710 = vcombine.high %v1700, %v1708
      %v1712 = vunpack.c.l.s4 1934713408
      %v1713 = vunpack.c.0.s8 %v1712
      %v1714 = vlaneseq
      %v1715 = vshrl.u32 %v1714, 7
      %v1716 = vsub.s32 %v1713, %v1715
      %v1717 = vrot.slane %v1709, %v1716
      %v1719 = vunpack.c.l.s4 1934713408
      %v1720 = vunpack.c.0.s8 %v1719
      %v1721 = vlaneseq
      %v1722 = vshrl.u32 %v1721, 7
      %v1723 = vsub.s32 %v1720, %v1722
      %v1724 = vrot.slane %v1710, %v1723
      %v1725 = vcombine.high %v1717, 0
      %v1726 = vcombine.high %v1724, 0
      %v1729 = vunpack.c.l.s4 1983009808
      %v1730 = vunpack.c.0.s8 %v1729
      %v1731 = vlaneseq
      %v1732 = vshrl.u32 %v1731, 7
      %v1733 = vsub.s32 %v1730, %v1732
      %v1734 = vrot.slane %v1674, %v1733
      %v1737 = vunpack.c.l.s4 1983009808
      %v1738 = vunpack.c.0.s8 %v1737
      %v1739 = vlaneseq
      %v1740 = vshrl.u32 %v1739, 7
      %v1741 = vsub.s32 %v1738, %v1740
      %v1742 = vrot.slane %v1680, %v1741
      %v1743 = vcombine.low %v1734, %v1742
      %v1744 = vcombine.high %v1734, %v1742
      %v1746 = vunpack.c.l.s4 1934713408
      %v1747 = vunpack.c.0.s8 %v1746
      %v1748 = vlaneseq
      %v1749 = vshrl.u32 %v1748, 7
      %v1750 = vsub.s32 %v1747, %v1749
      %v1751 = vrot.slane %v1743, %v1750
      %v1753 = vunpack.c.l.s4 1934713408
      %v1754 = vunpack.c.0.s8 %v1753
      %v1755 = vlaneseq
      %v1756 = vshrl.u32 %v1755, 7
      %v1757 = vsub.s32 %v1754, %v1756
      %v1758 = vrot.slane %v1744, %v1757
      %v1759 = vcombine.high %v1751, 0
      %v1760 = vcombine.high %v1758, 0
      %v1763 = vunpack.c.l.s4 1983009808
      %v1764 = vunpack.c.0.s8 %v1763
      %v1765 = vlaneseq
      %v1766 = vshrl.u32 %v1765, 7
      %v1767 = vsub.s32 %v1764, %v1766
      %v1768 = vrot.slane %v1683, %v1767
      %v1771 = vunpack.c.l.s4 1983009808
      %v1772 = vunpack.c.0.s8 %v1771
      %v1773 = vlaneseq
      %v1774 = vshrl.u32 %v1773, 7
      %v1775 = vsub.s32 %v1772, %v1774
      %v1776 = vrot.slane %v1689, %v1775
      %v1777 = vcombine.low %v1768, %v1776
      %v1778 = vcombine.high %v1768, %v1776
      %v1780 = vunpack.c.l.s4 1934713408
      %v1781 = vunpack.c.0.s8 %v1780
      %v1782 = vlaneseq
      %v1783 = vshrl.u32 %v1782, 7
      %v1784 = vsub.s32 %v1781, %v1783
      %v1785 = vrot.slane %v1777, %v1784
      %v1787 = vunpack.c.l.s4 1934713408
      %v1788 = vunpack.c.0.s8 %v1787
      %v1789 = vlaneseq
      %v1790 = vshrl.u32 %v1789, 7
      %v1791 = vsub.s32 %v1788, %v1790
      %v1792 = vrot.slane %v1778, %v1791
      %v1793 = vcombine.high %v1785, 0
      %v1794 = vcombine.high %v1792, 0
      %v1797 = vunpack.c.l.s4 1983009808
      %v1798 = vunpack.c.0.s8 %v1797
      %v1799 = vlaneseq
      %v1800 = vshrl.u32 %v1799, 7
      %v1801 = vsub.s32 %v1798, %v1800
      %v1802 = vrot.slane %v1686, %v1801
      %v1805 = vunpack.c.l.s4 1983009808
      %v1806 = vunpack.c.0.s8 %v1805
      %v1807 = vlaneseq
      %v1808 = vshrl.u32 %v1807, 7
      %v1809 = vsub.s32 %v1806, %v1808
      %v1810 = vrot.slane %v1692, %v1809
      %v1811 = vcombine.low %v1802, %v1810
      %v1812 = vcombine.high %v1802, %v1810
      %v1814 = vunpack.c.l.s4 1934713408
      %v1815 = vunpack.c.0.s8 %v1814
      %v1816 = vlaneseq
      %v1817 = vshrl.u32 %v1816, 7
      %v1818 = vsub.s32 %v1815, %v1817
      %v1819 = vrot.slane %v1811, %v1818
      %v1821 = vunpack.c.l.s4 1934713408
      %v1822 = vunpack.c.0.s8 %v1821
      %v1823 = vlaneseq
      %v1824 = vshrl.u32 %v1823, 7
      %v1825 = vsub.s32 %v1822, %v1824
      %v1826 = vrot.slane %v1812, %v1825
      %v1827 = vcombine.high %v1819, 0
      %v1828 = vcombine.high %v1826, 0
      %v1830 = vunpack.c.l.b16 %v1751
      %v1831 = vpack.c.b16 %v1830, %v1830
      %1832 = vrot.lane.b32.xlu0 %v1831, 16
      %v1833 = vpop.permute.xlu0 %1832
      %v1835 = vunpack.c.l.b16 %v1725
      %v1836 = vpack.c.b16 %v1835, %v1835
      %1837 = vrot.lane.b32.xlu0 %v1836, 32
      %v1838 = vpop.permute.xlu0 %1837
      %v1840 = vunpack.c.l.b16 %v1759
      %v1841 = vpack.c.b16 %v1840, %v1840
      %1842 = vrot.lane.b32.xlu0 %v1841, 48
      %v1843 = vpop.permute.xlu0 %1842
      %v1845 = vunpack.c.l.b16 %v1724
      %v1846 = vpack.c.b16 %v1845, %v1845
      %1847 = vrot.lane.b32.xlu0 %v1846, 64
      %v1848 = vpop.permute.xlu0 %1847
      %v1850 = vunpack.c.l.b16 %v1758
      %v1851 = vpack.c.b16 %v1850, %v1850
      %1852 = vrot.lane.b32.xlu0 %v1851, 80
      %v1853 = vpop.permute.xlu0 %1852
      %v1855 = vunpack.c.l.b16 %v1726
      %v1856 = vpack.c.b16 %v1855, %v1855
      %1857 = vrot.lane.b32.xlu0 %v1856, 96
      %v1858 = vpop.permute.xlu0 %1857
      %v1860 = vunpack.c.l.b16 %v1760
      %v1861 = vpack.c.b16 %v1860, %v1860
      %1862 = vrot.lane.b32.xlu0 %v1861, 112
      %v1863 = vpop.permute.xlu0 %1862
      %v1865 = vunpack.c.l.b16 %v1819
      %v1866 = vpack.c.b16 %v1865, %v1865
      %1867 = vrot.lane.b32.xlu0 %v1866, 16
      %v1868 = vpop.permute.xlu0 %1867
      %v1870 = vunpack.c.l.b16 %v1793
      %v1871 = vpack.c.b16 %v1870, %v1870
      %1872 = vrot.lane.b32.xlu0 %v1871, 32
      %v1873 = vpop.permute.xlu0 %1872
      %v1875 = vunpack.c.l.b16 %v1827
      %v1876 = vpack.c.b16 %v1875, %v1875
      %1877 = vrot.lane.b32.xlu0 %v1876, 48
      %v1878 = vpop.permute.xlu0 %1877
      %v1880 = vunpack.c.l.b16 %v1792
      %v1881 = vpack.c.b16 %v1880, %v1880
      %1882 = vrot.lane.b32.xlu0 %v1881, 64
      %v1883 = vpop.permute.xlu0 %1882
      %v1885 = vunpack.c.l.b16 %v1826
      %v1886 = vpack.c.b16 %v1885, %v1885
      %1887 = vrot.lane.b32.xlu0 %v1886, 80
      %v1888 = vpop.permute.xlu0 %1887
      %v1890 = vunpack.c.l.b16 %v1794
      %v1891 = vpack.c.b16 %v1890, %v1890
      %1892 = vrot.lane.b32.xlu0 %v1891, 96
      %v1893 = vpop.permute.xlu0 %1892
      %v1895 = vunpack.c.l.b16 %v1828
      %v1896 = vpack.c.b16 %v1895, %v1895
      %1897 = vrot.lane.b32.xlu0 %v1896, 112
      %v1898 = vpop.permute.xlu0 %1897
      %v1901 = vsel %vm433, %v1717, %v1833
      %v1903 = vsel %vm437, %v1901, %v1838
      %v1905 = vsel %vm440, %v1903, %v1843
      %v1907 = vsel %vm443, %v1905, %v1848
      %v1909 = vsel %vm446, %v1907, %v1853
      %v1911 = vsel %vm449, %v1909, %v1858
      %v1913 = vsel %vm452, %v1911, %v1863
      %v1916 = vsel %vm433, %v1785, %v1868
      %v1918 = vsel %vm437, %v1916, %v1873
      %v1920 = vsel %vm440, %v1918, %v1878
      %v1922 = vsel %vm443, %v1920, %v1883
      %v1924 = vsel %vm446, %v1922, %v1888
      %v1926 = vsel %vm449, %v1924, %v1893
      %v1928 = vsel %vm452, %v1926, %v1898
      %v1929 = vld [vmem:[%s183] sm:$0xe]
      %v1930 = vld [vmem:[%s183 + $0xc] sm:$0xe]
      %v1931 = vld [vmem:[%s183 + $0x18] sm:$0xe]
      %v1932 = vld [vmem:[%s183 + $0x24] sm:$0xe]
      %vm1941 = vcmask 1042432
      %vm1942 = vcmask 1046532
      %vm1943 = vmor %vm1941, %vm1942
      %v1944 = vrot.slane %v1929, 5
      %v1945 = vrot.slane %v1944, 4
      %v1946 = vrot.slane %v196, 5
      %v1947 = vsel %vm1943, %v1945, %v1946
      %v1948 = vrot.slane %v1946, 4
      %v1949 = vrot.slane %v1030, 5
      %v1950 = vsel %vm1943, %v1948, %v1949
      %v1951 = vrot.slane %v1930, 5
      %v1952 = vrot.slane %v1951, 4
      %v1953 = vrot.slane %v198, 5
      %v1954 = vsel %vm1943, %v1952, %v1953
      %v1955 = vrot.slane %v1953, 4
      %v1956 = vrot.slane %v1031, 5
      %v1957 = vsel %vm1943, %v1955, %v1956
      %v1958 = vrot.slane %v1931, 5
      %v1959 = vrot.slane %v1958, 4
      %v1960 = vrot.slane %v200, 5
      %v1961 = vsel %vm1943, %v1959, %v1960
      %v1962 = vrot.slane %v1960, 4
      %v1963 = vrot.slane %v1032, 5
      %v1964 = vsel %vm1943, %v1962, %v1963
      %v1965 = vrot.slane %v1932, 5
      %v1966 = vrot.slane %v1965, 4
      %v1967 = vrot.slane %v202, 5
      %v1968 = vsel %vm1943, %v1966, %v1967
      %v1969 = vrot.slane %v1967, 4
      %v1970 = vrot.slane %v1033, 5
      %v1971 = vsel %vm1943, %v1969, %v1970
      %v1974 = vpack.i.b16 %v1954, %v1947
      %v1975 = vshrl.u32 %v1947, 16
      %v1976 = vshrl.u32 %v1954, 16
      %v1977 = vpack.i.b16 %v1976, %v1975
      %v1980 = vpack.i.b16 %v1968, %v1961
      %v1981 = vshrl.u32 %v1961, 16
      %v1982 = vshrl.u32 %v1968, 16
      %v1983 = vpack.i.b16 %v1982, %v1981
      %v1986 = vpack.i.b16 %v1957, %v1950
      %v1987 = vshrl.u32 %v1950, 16
      %v1988 = vshrl.u32 %v1957, 16
      %v1989 = vpack.i.b16 %v1988, %v1987
      %v1992 = vpack.i.b16 %v1971, %v1964
      %v1993 = vshrl.u32 %v1964, 16
      %v1994 = vshrl.u32 %v1971, 16
      %v1995 = vpack.i.b16 %v1994, %v1993
      %v1998 = vunpack.c.l.s4 1983009808
      %v1999 = vunpack.c.0.s8 %v1998
      %v2000 = vlaneseq
      %v2001 = vshrl.u32 %v2000, 7
      %v2002 = vsub.s32 %v1999, %v2001
      %v2003 = vrot.slane %v1974, %v2002
      %v2006 = vunpack.c.l.s4 1983009808
      %v2007 = vunpack.c.0.s8 %v2006
      %v2008 = vlaneseq
      %v2009 = vshrl.u32 %v2008, 7
      %v2010 = vsub.s32 %v2007, %v2009
      %v2011 = vrot.slane %v1980, %v2010
      %v2012 = vcombine.low %v2003, %v2011
      %v2013 = vcombine.high %v2003, %v2011
      %v2015 = vunpack.c.l.s4 1934713408
      %v2016 = vunpack.c.0.s8 %v2015
      %v2017 = vlaneseq
      %v2018 = vshrl.u32 %v2017, 7
      %v2019 = vsub.s32 %v2016, %v2018
      %v2020 = vrot.slane %v2012, %v2019
      %v2022 = vunpack.c.l.s4 1934713408
      %v2023 = vunpack.c.0.s8 %v2022
      %v2024 = vlaneseq
      %v2025 = vshrl.u32 %v2024, 7
      %v2026 = vsub.s32 %v2023, %v2025
      %v2027 = vrot.slane %v2013, %v2026
      %v2028 = vcombine.high %v2020, 0
      %v2029 = vcombine.high %v2027, 0
      %v2032 = vunpack.c.l.s4 1983009808
      %v2033 = vunpack.c.0.s8 %v2032
      %v2034 = vlaneseq
      %v2035 = vshrl.u32 %v2034, 7
      %v2036 = vsub.s32 %v2033, %v2035
      %v2037 = vrot.slane %v1977, %v2036
      %v2040 = vunpack.c.l.s4 1983009808
      %v2041 = vunpack.c.0.s8 %v2040
      %v2042 = vlaneseq
      %v2043 = vshrl.u32 %v2042, 7
      %v2044 = vsub.s32 %v2041, %v2043
      %v2045 = vrot.slane %v1983, %v2044
      %v2046 = vcombine.low %v2037, %v2045
      %v2047 = vcombine.high %v2037, %v2045
      %v2049 = vunpack.c.l.s4 1934713408
      %v2050 = vunpack.c.0.s8 %v2049
      %v2051 = vlaneseq
      %v2052 = vshrl.u32 %v2051, 7
      %v2053 = vsub.s32 %v2050, %v2052
      %v2054 = vrot.slane %v2046, %v2053
      %v2056 = vunpack.c.l.s4 1934713408
      %v2057 = vunpack.c.0.s8 %v2056
      %v2058 = vlaneseq
      %v2059 = vshrl.u32 %v2058, 7
      %v2060 = vsub.s32 %v2057, %v2059
      %v2061 = vrot.slane %v2047, %v2060
      %v2062 = vcombine.high %v2054, 0
      %v2063 = vcombine.high %v2061, 0
      %v2066 = vunpack.c.l.s4 1983009808
      %v2067 = vunpack.c.0.s8 %v2066
      %v2068 = vlaneseq
      %v2069 = vshrl.u32 %v2068, 7
      %v2070 = vsub.s32 %v2067, %v2069
      %v2071 = vrot.slane %v1986, %v2070
      %v2074 = vunpack.c.l.s4 1983009808
      %v2075 = vunpack.c.0.s8 %v2074
      %v2076 = vlaneseq
      %v2077 = vshrl.u32 %v2076, 7
      %v2078 = vsub.s32 %v2075, %v2077
      %v2079 = vrot.slane %v1992, %v2078
      %v2080 = vcombine.low %v2071, %v2079
      %v2081 = vcombine.high %v2071, %v2079
      %v2083 = vunpack.c.l.s4 1934713408
      %v2084 = vunpack.c.0.s8 %v2083
      %v2085 = vlaneseq
      %v2086 = vshrl.u32 %v2085, 7
      %v2087 = vsub.s32 %v2084, %v2086
      %v2088 = vrot.slane %v2080, %v2087
      %v2090 = vunpack.c.l.s4 1934713408
      %v2091 = vunpack.c.0.s8 %v2090
      %v2092 = vlaneseq
      %v2093 = vshrl.u32 %v2092, 7
      %v2094 = vsub.s32 %v2091, %v2093
      %v2095 = vrot.slane %v2081, %v2094
      %v2096 = vcombine.high %v2088, 0
      %v2097 = vcombine.high %v2095, 0
      %v2100 = vunpack.c.l.s4 1983009808
      %v2101 = vunpack.c.0.s8 %v2100
      %v2102 = vlaneseq
      %v2103 = vshrl.u32 %v2102, 7
      %v2104 = vsub.s32 %v2101, %v2103
      %v2105 = vrot.slane %v1989, %v2104
      %v2108 = vunpack.c.l.s4 1983009808
      %v2109 = vunpack.c.0.s8 %v2108
      %v2110 = vlaneseq
      %v2111 = vshrl.u32 %v2110, 7
      %v2112 = vsub.s32 %v2109, %v2111
      %v2113 = vrot.slane %v1995, %v2112
      %v2114 = vcombine.low %v2105, %v2113
      %v2115 = vcombine.high %v2105, %v2113
      %v2117 = vunpack.c.l.s4 1934713408
      %v2118 = vunpack.c.0.s8 %v2117
      %v2119 = vlaneseq
      %v2120 = vshrl.u32 %v2119, 7
      %v2121 = vsub.s32 %v2118, %v2120
      %v2122 = vrot.slane %v2114, %v2121
      %v2124 = vunpack.c.l.s4 1934713408
      %v2125 = vunpack.c.0.s8 %v2124
      %v2126 = vlaneseq
      %v2127 = vshrl.u32 %v2126, 7
      %v2128 = vsub.s32 %v2125, %v2127
      %v2129 = vrot.slane %v2115, %v2128
      %v2130 = vcombine.high %v2122, 0
      %v2131 = vcombine.high %v2129, 0
      %v2133 = vunpack.c.l.b16 %v2054
      %v2134 = vpack.c.b16 %v2133, %v2133
      %2135 = vrot.lane.b32.xlu0 %v2134, 16
      %v2136 = vpop.permute.xlu0 %2135
      %v2138 = vunpack.c.l.b16 %v2028
      %v2139 = vpack.c.b16 %v2138, %v2138
      %2140 = vrot.lane.b32.xlu0 %v2139, 32
      %v2141 = vpop.permute.xlu0 %2140
      %v2143 = vunpack.c.l.b16 %v2062
      %v2144 = vpack.c.b16 %v2143, %v2143
      %2145 = vrot.lane.b32.xlu0 %v2144, 48
      %v2146 = vpop.permute.xlu0 %2145
      %v2148 = vunpack.c.l.b16 %v2027
      %v2149 = vpack.c.b16 %v2148, %v2148
      %2150 = vrot.lane.b32.xlu0 %v2149, 64
      %v2151 = vpop.permute.xlu0 %2150
      %v2153 = vunpack.c.l.b16 %v2061
      %v2154 = vpack.c.b16 %v2153, %v2153
      %2155 = vrot.lane.b32.xlu0 %v2154, 80
      %v2156 = vpop.permute.xlu0 %2155
      %v2158 = vunpack.c.l.b16 %v2029
      %v2159 = vpack.c.b16 %v2158, %v2158
      %2160 = vrot.lane.b32.xlu0 %v2159, 96
      %v2161 = vpop.permute.xlu0 %2160
      %v2163 = vunpack.c.l.b16 %v2063
      %v2164 = vpack.c.b16 %v2163, %v2163
      %2165 = vrot.lane.b32.xlu0 %v2164, 112
      %v2166 = vpop.permute.xlu0 %2165
      %v2168 = vunpack.c.l.b16 %v2122
      %v2169 = vpack.c.b16 %v2168, %v2168
      %2170 = vrot.lane.b32.xlu0 %v2169, 16
      %v2171 = vpop.permute.xlu0 %2170
      %v2173 = vunpack.c.l.b16 %v2096
      %v2174 = vpack.c.b16 %v2173, %v2173
      %2175 = vrot.lane.b32.xlu0 %v2174, 32
      %v2176 = vpop.permute.xlu0 %2175
      %v2178 = vunpack.c.l.b16 %v2130
      %v2179 = vpack.c.b16 %v2178, %v2178
      %2180 = vrot.lane.b32.xlu0 %v2179, 48
      %v2181 = vpop.permute.xlu0 %2180
      %v2183 = vunpack.c.l.b16 %v2095
      %v2184 = vpack.c.b16 %v2183, %v2183
      %2185 = vrot.lane.b32.xlu0 %v2184, 64
      %v2186 = vpop.permute.xlu0 %2185
      %v2188 = vunpack.c.l.b16 %v2129
      %v2189 = vpack.c.b16 %v2188, %v2188
      %2190 = vrot.lane.b32.xlu0 %v2189, 80
      %v2191 = vpop.permute.xlu0 %2190
      %v2193 = vunpack.c.l.b16 %v2097
      %v2194 = vpack.c.b16 %v2193, %v2193
      %2195 = vrot.lane.b32.xlu0 %v2194, 96
      %v2196 = vpop.permute.xlu0 %2195
      %v2198 = vunpack.c.l.b16 %v2131
      %v2199 = vpack.c.b16 %v2198, %v2198
      %2200 = vrot.lane.b32.xlu0 %v2199, 112
      %v2201 = vpop.permute.xlu0 %2200
      %v2204 = vsel %vm433, %v2020, %v2136
      %v2206 = vsel %vm437, %v2204, %v2141
      %v2208 = vsel %vm440, %v2206, %v2146
      %v2210 = vsel %vm443, %v2208, %v2151
      %v2212 = vsel %vm446, %v2210, %v2156
      %v2214 = vsel %vm449, %v2212, %v2161
      %v2216 = vsel %vm452, %v2214, %v2166
      %v2219 = vsel %vm433, %v2088, %v2171
      %v2221 = vsel %vm437, %v2219, %v2176
      %v2223 = vsel %vm440, %v2221, %v2181
      %v2225 = vsel %vm443, %v2223, %v2186
      %v2227 = vsel %vm446, %v2225, %v2191
      %v2229 = vsel %vm449, %v2227, %v2196
      %v2231 = vsel %vm452, %v2229, %v2201
      %2232 = vrot.lane.b32.xlu0 %v1947, 127
      %v2233 = vpop.permute.xlu0 %2232
      %2234 = vrot.lane.b32.xlu0 %v1950, 127
      %v2235 = vpop.permute.xlu0 %2234
      %2236 = vrot.lane.b32.xlu0 %v1954, 127
      %v2237 = vpop.permute.xlu0 %2236
      %2238 = vrot.lane.b32.xlu0 %v1957, 127
      %v2239 = vpop.permute.xlu0 %2238
      %2240 = vrot.lane.b32.xlu0 %v1961, 127
      %v2241 = vpop.permute.xlu0 %2240
      %2242 = vrot.lane.b32.xlu0 %v1964, 127
      %v2243 = vpop.permute.xlu0 %2242
      %2244 = vrot.lane.b32.xlu0 %v1968, 127
      %v2245 = vpop.permute.xlu0 %2244
      %2246 = vrot.lane.b32.xlu0 %v1971, 127
      %v2247 = vpop.permute.xlu0 %2246
      %v2250 = vpack.i.b16 %v2237, %v2233
      %v2251 = vshrl.u32 %v2233, 16
      %v2252 = vshrl.u32 %v2237, 16
      %v2253 = vpack.i.b16 %v2252, %v2251
      %v2256 = vpack.i.b16 %v2245, %v2241
      %v2257 = vshrl.u32 %v2241, 16
      %v2258 = vshrl.u32 %v2245, 16
      %v2259 = vpack.i.b16 %v2258, %v2257
      %v2262 = vpack.i.b16 %v2239, %v2235
      %v2263 = vshrl.u32 %v2235, 16
      %v2264 = vshrl.u32 %v2239, 16
      %v2265 = vpack.i.b16 %v2264, %v2263
      %v2268 = vpack.i.b16 %v2247, %v2243
      %v2269 = vshrl.u32 %v2243, 16
      %v2270 = vshrl.u32 %v2247, 16
      %v2271 = vpack.i.b16 %v2270, %v2269
      %v2274 = vunpack.c.l.s4 1983009808
      %v2275 = vunpack.c.0.s8 %v2274
      %v2276 = vlaneseq
      %v2277 = vshrl.u32 %v2276, 7
      %v2278 = vsub.s32 %v2275, %v2277
      %v2279 = vrot.slane %v2250, %v2278
      %v2282 = vunpack.c.l.s4 1983009808
      %v2283 = vunpack.c.0.s8 %v2282
      %v2284 = vlaneseq
      %v2285 = vshrl.u32 %v2284, 7
      %v2286 = vsub.s32 %v2283, %v2285
      %v2287 = vrot.slane %v2256, %v2286
      %v2288 = vcombine.low %v2279, %v2287
      %v2289 = vcombine.high %v2279, %v2287
      %v2291 = vunpack.c.l.s4 1934713408
      %v2292 = vunpack.c.0.s8 %v2291
      %v2293 = vlaneseq
      %v2294 = vshrl.u32 %v2293, 7
      %v2295 = vsub.s32 %v2292, %v2294
      %v2296 = vrot.slane %v2288, %v2295
      %v2298 = vunpack.c.l.s4 1934713408
      %v2299 = vunpack.c.0.s8 %v2298
      %v2300 = vlaneseq
      %v2301 = vshrl.u32 %v2300, 7
      %v2302 = vsub.s32 %v2299, %v2301
      %v2303 = vrot.slane %v2289, %v2302
      %v2304 = vcombine.high %v2296, 0
      %v2305 = vcombine.high %v2303, 0
      %v2308 = vunpack.c.l.s4 1983009808
      %v2309 = vunpack.c.0.s8 %v2308
      %v2310 = vlaneseq
      %v2311 = vshrl.u32 %v2310, 7
      %v2312 = vsub.s32 %v2309, %v2311
      %v2313 = vrot.slane %v2253, %v2312
      %v2316 = vunpack.c.l.s4 1983009808
      %v2317 = vunpack.c.0.s8 %v2316
      %v2318 = vlaneseq
      %v2319 = vshrl.u32 %v2318, 7
      %v2320 = vsub.s32 %v2317, %v2319
      %v2321 = vrot.slane %v2259, %v2320
      %v2322 = vcombine.low %v2313, %v2321
      %v2323 = vcombine.high %v2313, %v2321
      %v2325 = vunpack.c.l.s4 1934713408
      %v2326 = vunpack.c.0.s8 %v2325
      %v2327 = vlaneseq
      %v2328 = vshrl.u32 %v2327, 7
      %v2329 = vsub.s32 %v2326, %v2328
      %v2330 = vrot.slane %v2322, %v2329
      %v2332 = vunpack.c.l.s4 1934713408
      %v2333 = vunpack.c.0.s8 %v2332
      %v2334 = vlaneseq
      %v2335 = vshrl.u32 %v2334, 7
      %v2336 = vsub.s32 %v2333, %v2335
      %v2337 = vrot.slane %v2323, %v2336
      %v2338 = vcombine.high %v2330, 0
      %v2339 = vcombine.high %v2337, 0
      %v2342 = vunpack.c.l.s4 1983009808
      %v2343 = vunpack.c.0.s8 %v2342
      %v2344 = vlaneseq
      %v2345 = vshrl.u32 %v2344, 7
      %v2346 = vsub.s32 %v2343, %v2345
      %v2347 = vrot.slane %v2262, %v2346
      %v2350 = vunpack.c.l.s4 1983009808
      %v2351 = vunpack.c.0.s8 %v2350
      %v2352 = vlaneseq
      %v2353 = vshrl.u32 %v2352, 7
      %v2354 = vsub.s32 %v2351, %v2353
      %v2355 = vrot.slane %v2268, %v2354
      %v2356 = vcombine.low %v2347, %v2355
      %v2357 = vcombine.high %v2347, %v2355
      %v2359 = vunpack.c.l.s4 1934713408
      %v2360 = vunpack.c.0.s8 %v2359
      %v2361 = vlaneseq
      %v2362 = vshrl.u32 %v2361, 7
      %v2363 = vsub.s32 %v2360, %v2362
      %v2364 = vrot.slane %v2356, %v2363
      %v2366 = vunpack.c.l.s4 1934713408
      %v2367 = vunpack.c.0.s8 %v2366
      %v2368 = vlaneseq
      %v2369 = vshrl.u32 %v2368, 7
      %v2370 = vsub.s32 %v2367, %v2369
      %v2371 = vrot.slane %v2357, %v2370
      %v2372 = vcombine.high %v2364, 0
      %v2373 = vcombine.high %v2371, 0
      %v2376 = vunpack.c.l.s4 1983009808
      %v2377 = vunpack.c.0.s8 %v2376
      %v2378 = vlaneseq
      %v2379 = vshrl.u32 %v2378, 7
      %v2380 = vsub.s32 %v2377, %v2379
      %v2381 = vrot.slane %v2265, %v2380
      %v2384 = vunpack.c.l.s4 1983009808
      %v2385 = vunpack.c.0.s8 %v2384
      %v2386 = vlaneseq
      %v2387 = vshrl.u32 %v2386, 7
      %v2388 = vsub.s32 %v2385, %v2387
      %v2389 = vrot.slane %v2271, %v2388
      %v2390 = vcombine.low %v2381, %v2389
      %v2391 = vcombine.high %v2381, %v2389
      %v2393 = vunpack.c.l.s4 1934713408
      %v2394 = vunpack.c.0.s8 %v2393
      %v2395 = vlaneseq
      %v2396 = vshrl.u32 %v2395, 7
      %v2397 = vsub.s32 %v2394, %v2396
      %v2398 = vrot.slane %v2390, %v2397
      %v2400 = vunpack.c.l.s4 1934713408
      %v2401 = vunpack.c.0.s8 %v2400
      %v2402 = vlaneseq
      %v2403 = vshrl.u32 %v2402, 7
      %v2404 = vsub.s32 %v2401, %v2403
      %v2405 = vrot.slane %v2391, %v2404
      %v2406 = vcombine.high %v2398, 0
      %v2407 = vcombine.high %v2405, 0
      %v2409 = vunpack.c.l.b16 %v2330
      %v2410 = vpack.c.b16 %v2409, %v2409
      %2411 = vrot.lane.b32.xlu0 %v2410, 16
      %v2412 = vpop.permute.xlu0 %2411
      %v2414 = vunpack.c.l.b16 %v2304
      %v2415 = vpack.c.b16 %v2414, %v2414
      %2416 = vrot.lane.b32.xlu0 %v2415, 32
      %v2417 = vpop.permute.xlu0 %2416
      %v2419 = vunpack.c.l.b16 %v2338
      %v2420 = vpack.c.b16 %v2419, %v2419
      %2421 = vrot.lane.b32.xlu0 %v2420, 48
      %v2422 = vpop.permute.xlu0 %2421
      %v2424 = vunpack.c.l.b16 %v2303
      %v2425 = vpack.c.b16 %v2424, %v2424
      %2426 = vrot.lane.b32.xlu0 %v2425, 64
      %v2427 = vpop.permute.xlu0 %2426
      %v2429 = vunpack.c.l.b16 %v2337
      %v2430 = vpack.c.b16 %v2429, %v2429
      %2431 = vrot.lane.b32.xlu0 %v2430, 80
      %v2432 = vpop.permute.xlu0 %2431
      %v2434 = vunpack.c.l.b16 %v2305
      %v2435 = vpack.c.b16 %v2434, %v2434
      %2436 = vrot.lane.b32.xlu0 %v2435, 96
      %v2437 = vpop.permute.xlu0 %2436
      %v2439 = vunpack.c.l.b16 %v2339
      %v2440 = vpack.c.b16 %v2439, %v2439
      %2441 = vrot.lane.b32.xlu0 %v2440, 112
      %v2442 = vpop.permute.xlu0 %2441
      %v2444 = vunpack.c.l.b16 %v2398
      %v2445 = vpack.c.b16 %v2444, %v2444
      %2446 = vrot.lane.b32.xlu0 %v2445, 16
      %v2447 = vpop.permute.xlu0 %2446
      %v2449 = vunpack.c.l.b16 %v2372
      %v2450 = vpack.c.b16 %v2449, %v2449
      %2451 = vrot.lane.b32.xlu0 %v2450, 32
      %v2452 = vpop.permute.xlu0 %2451
      %v2454 = vunpack.c.l.b16 %v2406
      %v2455 = vpack.c.b16 %v2454, %v2454
      %2456 = vrot.lane.b32.xlu0 %v2455, 48
      %v2457 = vpop.permute.xlu0 %2456
      %v2459 = vunpack.c.l.b16 %v2371
      %v2460 = vpack.c.b16 %v2459, %v2459
      %2461 = vrot.lane.b32.xlu0 %v2460, 64
      %v2462 = vpop.permute.xlu0 %2461
      %v2464 = vunpack.c.l.b16 %v2405
      %v2465 = vpack.c.b16 %v2464, %v2464
      %2466 = vrot.lane.b32.xlu0 %v2465, 80
      %v2467 = vpop.permute.xlu0 %2466
      %v2469 = vunpack.c.l.b16 %v2373
      %v2470 = vpack.c.b16 %v2469, %v2469
      %2471 = vrot.lane.b32.xlu0 %v2470, 96
      %v2472 = vpop.permute.xlu0 %2471
      %v2474 = vunpack.c.l.b16 %v2407
      %v2475 = vpack.c.b16 %v2474, %v2474
      %2476 = vrot.lane.b32.xlu0 %v2475, 112
      %v2477 = vpop.permute.xlu0 %2476
      %v2480 = vsel %vm433, %v2296, %v2412
      %v2482 = vsel %vm437, %v2480, %v2417
      %v2484 = vsel %vm440, %v2482, %v2422
      %v2486 = vsel %vm443, %v2484, %v2427
      %v2488 = vsel %vm446, %v2486, %v2432
      %v2490 = vsel %vm449, %v2488, %v2437
      %v2492 = vsel %vm452, %v2490, %v2442
      %v2495 = vsel %vm433, %v2364, %v2447
      %v2497 = vsel %vm437, %v2495, %v2452
      %v2499 = vsel %vm440, %v2497, %v2457
      %v2501 = vsel %vm443, %v2499, %v2462
      %v2503 = vsel %vm446, %v2501, %v2467
      %v2505 = vsel %vm449, %v2503, %v2472
      %v2507 = vsel %vm452, %v2505, %v2477
      %2508 = vrot.lane.b32.xlu0 %v1947, 126
      %v2509 = vpop.permute.xlu0 %2508
      %2510 = vrot.lane.b32.xlu0 %v1950, 126
      %v2511 = vpop.permute.xlu0 %2510
      %2512 = vrot.lane.b32.xlu0 %v1954, 126
      %v2513 = vpop.permute.xlu0 %2512
      %2514 = vrot.lane.b32.xlu0 %v1957, 126
      %v2515 = vpop.permute.xlu0 %2514
      %2516 = vrot.lane.b32.xlu0 %v1961, 126
      %v2517 = vpop.permute.xlu0 %2516
      %2518 = vrot.lane.b32.xlu0 %v1964, 126
      %v2519 = vpop.permute.xlu0 %2518
      %2520 = vrot.lane.b32.xlu0 %v1968, 126
      %v2521 = vpop.permute.xlu0 %2520
      %2522 = vrot.lane.b32.xlu0 %v1971, 126
      %v2523 = vpop.permute.xlu0 %2522
      %v2526 = vpack.i.b16 %v2513, %v2509
      %v2527 = vshrl.u32 %v2509, 16
      %v2528 = vshrl.u32 %v2513, 16
      %v2529 = vpack.i.b16 %v2528, %v2527
      %v2532 = vpack.i.b16 %v2521, %v2517
      %v2533 = vshrl.u32 %v2517, 16
      %v2534 = vshrl.u32 %v2521, 16
      %v2535 = vpack.i.b16 %v2534, %v2533
      %v2538 = vpack.i.b16 %v2515, %v2511
      %v2539 = vshrl.u32 %v2511, 16
      %v2540 = vshrl.u32 %v2515, 16
      %v2541 = vpack.i.b16 %v2540, %v2539
      %v2544 = vpack.i.b16 %v2523, %v2519
      %v2545 = vshrl.u32 %v2519, 16
      %v2546 = vshrl.u32 %v2523, 16
      %v2547 = vpack.i.b16 %v2546, %v2545
      %v2550 = vunpack.c.l.s4 1983009808
      %v2551 = vunpack.c.0.s8 %v2550
      %v2552 = vlaneseq
      %v2553 = vshrl.u32 %v2552, 7
      %v2554 = vsub.s32 %v2551, %v2553
      %v2555 = vrot.slane %v2526, %v2554
      %v2558 = vunpack.c.l.s4 1983009808
      %v2559 = vunpack.c.0.s8 %v2558
      %v2560 = vlaneseq
      %v2561 = vshrl.u32 %v2560, 7
      %v2562 = vsub.s32 %v2559, %v2561
      %v2563 = vrot.slane %v2532, %v2562
      %v2564 = vcombine.low %v2555, %v2563
      %v2565 = vcombine.high %v2555, %v2563
      %v2567 = vunpack.c.l.s4 1934713408
      %v2568 = vunpack.c.0.s8 %v2567
      %v2569 = vlaneseq
      %v2570 = vshrl.u32 %v2569, 7
      %v2571 = vsub.s32 %v2568, %v2570
      %v2572 = vrot.slane %v2564, %v2571
      %v2574 = vunpack.c.l.s4 1934713408
      %v2575 = vunpack.c.0.s8 %v2574
      %v2576 = vlaneseq
      %v2577 = vshrl.u32 %v2576, 7
      %v2578 = vsub.s32 %v2575, %v2577
      %v2579 = vrot.slane %v2565, %v2578
      %v2580 = vcombine.high %v2572, 0
      %v2581 = vcombine.high %v2579, 0
      %v2584 = vunpack.c.l.s4 1983009808
      %v2585 = vunpack.c.0.s8 %v2584
      %v2586 = vlaneseq
      %v2587 = vshrl.u32 %v2586, 7
      %v2588 = vsub.s32 %v2585, %v2587
      %v2589 = vrot.slane %v2529, %v2588
      %v2592 = vunpack.c.l.s4 1983009808
      %v2593 = vunpack.c.0.s8 %v2592
      %v2594 = vlaneseq
      %v2595 = vshrl.u32 %v2594, 7
      %v2596 = vsub.s32 %v2593, %v2595
      %v2597 = vrot.slane %v2535, %v2596
      %v2598 = vcombine.low %v2589, %v2597
      %v2599 = vcombine.high %v2589, %v2597
      %v2601 = vunpack.c.l.s4 1934713408
      %v2602 = vunpack.c.0.s8 %v2601
      %v2603 = vlaneseq
      %v2604 = vshrl.u32 %v2603, 7
      %v2605 = vsub.s32 %v2602, %v2604
      %v2606 = vrot.slane %v2598, %v2605
      %v2608 = vunpack.c.l.s4 1934713408
      %v2609 = vunpack.c.0.s8 %v2608
      %v2610 = vlaneseq
      %v2611 = vshrl.u32 %v2610, 7
      %v2612 = vsub.s32 %v2609, %v2611
      %v2613 = vrot.slane %v2599, %v2612
      %v2614 = vcombine.high %v2606, 0
      %v2615 = vcombine.high %v2613, 0
      %v2618 = vunpack.c.l.s4 1983009808
      %v2619 = vunpack.c.0.s8 %v2618
      %v2620 = vlaneseq
      %v2621 = vshrl.u32 %v2620, 7
      %v2622 = vsub.s32 %v2619, %v2621
      %v2623 = vrot.slane %v2538, %v2622
      %v2626 = vunpack.c.l.s4 1983009808
      %v2627 = vunpack.c.0.s8 %v2626
      %v2628 = vlaneseq
      %v2629 = vshrl.u32 %v2628, 7
      %v2630 = vsub.s32 %v2627, %v2629
      %v2631 = vrot.slane %v2544, %v2630
      %v2632 = vcombine.low %v2623, %v2631
      %v2633 = vcombine.high %v2623, %v2631
      %v2635 = vunpack.c.l.s4 1934713408
      %v2636 = vunpack.c.0.s8 %v2635
      %v2637 = vlaneseq
      %v2638 = vshrl.u32 %v2637, 7
      %v2639 = vsub.s32 %v2636, %v2638
      %v2640 = vrot.slane %v2632, %v2639
      %v2642 = vunpack.c.l.s4 1934713408
      %v2643 = vunpack.c.0.s8 %v2642
      %v2644 = vlaneseq
      %v2645 = vshrl.u32 %v2644, 7
      %v2646 = vsub.s32 %v2643, %v2645
      %v2647 = vrot.slane %v2633, %v2646
      %v2648 = vcombine.high %v2640, 0
      %v2649 = vcombine.high %v2647, 0
      %v2652 = vunpack.c.l.s4 1983009808
      %v2653 = vunpack.c.0.s8 %v2652
      %v2654 = vlaneseq
      %v2655 = vshrl.u32 %v2654, 7
      %v2656 = vsub.s32 %v2653, %v2655
      %v2657 = vrot.slane %v2541, %v2656
      %v2660 = vunpack.c.l.s4 1983009808
      %v2661 = vunpack.c.0.s8 %v2660
      %v2662 = vlaneseq
      %v2663 = vshrl.u32 %v2662, 7
      %v2664 = vsub.s32 %v2661, %v2663
      %v2665 = vrot.slane %v2547, %v2664
      %v2666 = vcombine.low %v2657, %v2665
      %v2667 = vcombine.high %v2657, %v2665
      %v2669 = vunpack.c.l.s4 1934713408
      %v2670 = vunpack.c.0.s8 %v2669
      %v2671 = vlaneseq
      %v2672 = vshrl.u32 %v2671, 7
      %v2673 = vsub.s32 %v2670, %v2672
      %v2674 = vrot.slane %v2666, %v2673
      %v2676 = vunpack.c.l.s4 1934713408
      %v2677 = vunpack.c.0.s8 %v2676
      %v2678 = vlaneseq
      %v2679 = vshrl.u32 %v2678, 7
      %v2680 = vsub.s32 %v2677, %v2679
      %v2681 = vrot.slane %v2667, %v2680
      %v2682 = vcombine.high %v2674, 0
      %v2683 = vcombine.high %v2681, 0
      %v2685 = vunpack.c.l.b16 %v2606
      %v2686 = vpack.c.b16 %v2685, %v2685
      %2687 = vrot.lane.b32.xlu0 %v2686, 16
      %v2688 = vpop.permute.xlu0 %2687
      %v2690 = vunpack.c.l.b16 %v2580
      %v2691 = vpack.c.b16 %v2690, %v2690
      %2692 = vrot.lane.b32.xlu0 %v2691, 32
      %v2693 = vpop.permute.xlu0 %2692
      %v2695 = vunpack.c.l.b16 %v2614
      %v2696 = vpack.c.b16 %v2695, %v2695
      %2697 = vrot.lane.b32.xlu0 %v2696, 48
      %v2698 = vpop.permute.xlu0 %2697
      %v2700 = vunpack.c.l.b16 %v2579
      %v2701 = vpack.c.b16 %v2700, %v2700
      %2702 = vrot.lane.b32.xlu0 %v2701, 64
      %v2703 = vpop.permute.xlu0 %2702
      %v2705 = vunpack.c.l.b16 %v2613
      %v2706 = vpack.c.b16 %v2705, %v2705
      %2707 = vrot.lane.b32.xlu0 %v2706, 80
      %v2708 = vpop.permute.xlu0 %2707
      %v2710 = vunpack.c.l.b16 %v2581
      %v2711 = vpack.c.b16 %v2710, %v2710
      %2712 = vrot.lane.b32.xlu0 %v2711, 96
      %v2713 = vpop.permute.xlu0 %2712
      %v2715 = vunpack.c.l.b16 %v2615
      %v2716 = vpack.c.b16 %v2715, %v2715
      %2717 = vrot.lane.b32.xlu0 %v2716, 112
      %v2718 = vpop.permute.xlu0 %2717
      %v2720 = vunpack.c.l.b16 %v2674
      %v2721 = vpack.c.b16 %v2720, %v2720
      %2722 = vrot.lane.b32.xlu0 %v2721, 16
      %v2723 = vpop.permute.xlu0 %2722
      %v2725 = vunpack.c.l.b16 %v2648
      %v2726 = vpack.c.b16 %v2725, %v2725
      %2727 = vrot.lane.b32.xlu0 %v2726, 32
      %v2728 = vpop.permute.xlu0 %2727
      %v2730 = vunpack.c.l.b16 %v2682
      %v2731 = vpack.c.b16 %v2730, %v2730
      %2732 = vrot.lane.b32.xlu0 %v2731, 48
      %v2733 = vpop.permute.xlu0 %2732
      %v2735 = vunpack.c.l.b16 %v2647
      %v2736 = vpack.c.b16 %v2735, %v2735
      %2737 = vrot.lane.b32.xlu0 %v2736, 64
      %v2738 = vpop.permute.xlu0 %2737
      %v2740 = vunpack.c.l.b16 %v2681
      %v2741 = vpack.c.b16 %v2740, %v2740
      %2742 = vrot.lane.b32.xlu0 %v2741, 80
      %v2743 = vpop.permute.xlu0 %2742
      %v2745 = vunpack.c.l.b16 %v2649
      %v2746 = vpack.c.b16 %v2745, %v2745
      %2747 = vrot.lane.b32.xlu0 %v2746, 96
      %v2748 = vpop.permute.xlu0 %2747
      %v2750 = vunpack.c.l.b16 %v2683
      %v2751 = vpack.c.b16 %v2750, %v2750
      %2752 = vrot.lane.b32.xlu0 %v2751, 112
      %v2753 = vpop.permute.xlu0 %2752
      %v2756 = vsel %vm433, %v2572, %v2688
      %v2758 = vsel %vm437, %v2756, %v2693
      %v2760 = vsel %vm440, %v2758, %v2698
      %v2762 = vsel %vm443, %v2760, %v2703
      %v2764 = vsel %vm446, %v2762, %v2708
      %v2766 = vsel %vm449, %v2764, %v2713
      %v2768 = vsel %vm452, %v2766, %v2718
      %v2771 = vsel %vm433, %v2640, %v2723
      %v2773 = vsel %vm437, %v2771, %v2728
      %v2775 = vsel %vm440, %v2773, %v2733
      %v2777 = vsel %vm443, %v2775, %v2738
      %v2779 = vsel %vm446, %v2777, %v2743
      %v2781 = vsel %vm449, %v2779, %v2748
      %v2783 = vsel %vm452, %v2781, %v2753
      %v2786 = vrot.slane %v738, 6
      %v2787 = vrot.slane %v753, 6
      %v2790 = vrot.slane %v1014, 4
      %v2791 = vrot.slane %v1029, 4
      %v2794 = vrot.slane %v1361, 2
      %v2795 = vrot.slane %v1376, 2
      %v2798 = vrot.slane %v1913, 6
      %v2799 = vrot.slane %v1928, 6
      %v2802 = vrot.slane %v2216, 4
      %v2803 = vrot.slane %v2231, 4
      %v2806 = vrot.slane %v2492, 2
      %v2807 = vrot.slane %v2507, 2
      %vm2808 = vcmask 1041408
      %v2810 = vsel %vm2808, %v454, %v2786
      %v2812 = vsel %vm2808, %v469, %v2787
      %vm2813 = vcmask 1043456
      %v2815 = vsel %vm2813, %v2810, %v2790
      %v2817 = vsel %vm2813, %v2812, %v2791
      %vm2818 = vcmask 1045504
      %v2820 = vsel %vm2818, %v2815, %v2794
      %v2823 = vsel %vm2818, %v2817, %v2795
      %v2826 = vsel %vm2808, %v1637, %v2798
      %v2828 = vsel %vm2808, %v1652, %v2799
      %v2830 = vsel %vm2813, %v2826, %v2802
      %v2832 = vsel %vm2813, %v2828, %v2803
      %v2834 = vsel %vm2818, %v2830, %v2806
      %v2837 = vsel %vm2818, %v2832, %v2807
      %v2839 = vld [vmem:[%s1] sm:$0xf]
      %v2840 = vld [vmem:[%s2] sm:$0xff]
      %2842 = vset.pattern.permute.xlu0 0
      %2843 = vperm.xlu0 %2842, %v2840
      %v2844 = vpop.permute.xlu0 %2843
      %vm2846 = vcmask 293888
      %v2848 = vsel %vm2846, %v2839, 0
      %v2850 = vsel %vm2808, %v2768, 0
      %v2852 = vsel %vm2808, %v2783, 0
      %2854 = vmatprep.subr.bf16.mxu0 0
      %2855 = vmatpush1.bf16.msra.mxu0 0
      %2856 = vmatprep.subr.bf16.mxu0 0
      %2857 = vmatpush1.bf16.msra.mxu0 0
      %2858 = vmatprep.subr.bf16.mxu0 0
      %2859 = vmatpush1.bf16.msra.mxu0 0
      %2860 = vmatprep.subr.bf16.mxu0 0
      %2861 = vmatpush1.bf16.msra.mxu0 0
      %2862 = vmatprep.subr.bf16.mxu0 0
      %2863 = vmatpush1.bf16.msra.mxu0 0
      %2864 = vmatprep.subr.bf16.mxu0 %v2852
      %2865 = vmatpush1.bf16.msra.mxu0 %v2850
      %2866 = vmatprep.subr.bf16.mxu0 %v2837
      %2867 = vmatpush1.bf16.msra.mxu0 %v2834
      %2868 = vmatprep.subr.bf16.mxu0 %v2823
      %2869 = vmatpush1.bf16.msra.mxu0 %v2820
      %2870 = vmatprep.subr.bf16.mxu0 0
      %2871 = vmatpush2.bf16.msra.mxu0 0
      %2872 = vmatprep.subr.bf16.mxu0 0
      %2873 = vmatpush2.bf16.msra.mxu0 0
      %2874 = vmatprep.subr.bf16.mxu0 0
      %2875 = vmatpush2.bf16.msra.mxu0 0
      %2876 = vmatprep.subr.bf16.mxu0 0
      %2877 = vmatpush2.bf16.msra.mxu0 0
      %2878 = vmatprep.subr.bf16.mxu0 0
      %2879 = vmatpush2.bf16.msra.mxu0 0
      %2880 = vmatprep.subr.bf16.mxu0 0
      %2881 = vmatpush2.bf16.msra.mxu0 0
      %2882 = vmatprep.subr.bf16.mxu0 0
      %2883 = vmatpush2.bf16.msra.mxu0 0
      %2884 = vmatprep.subr.bf16.mxu0 0
      %2885 = vmatpush2.bf16.msra.mxu0 0
      %2886 = vmatprep.mubr.bf16.mxu0 0
      %2887 = vmatmul.mubr.bf16.gmra.mxu0 %v2848
      %v2888 = vpop.f32.mrf.mxu0
      %v2889 = vadd.f32 %v2844, %v2888
      %v2890 = vpop.f32.mrf.mxu0
      %v2891 = vadd.f32 %v2844, %v2890
      %v2892 = vpop.f32.mrf.mxu0
      %v2893 = vpop.f32.mrf.mxu0
      %2894 = vdwg.mxu0
      %v2895 = vmax.f32 %v2889, 0.0
      %v2896 = vmax.f32 %v2891, 0.0
      %2897 = vst [vmem:[%s192] sm:$0xff] %v2895
      %2898 = vst [vmem:[%s192 + $0x8] sm:$0xff] %v2896
      %s2899 = smul.u32 2, %s19
      %p2900 = scmp.lt.s32.totalorder %s18, 1
      %s2901 = scalar_select %p2900, %s18, 1
      %p2902 = scmp.lt.s32.totalorder %s2899, 1
      %s2903 = scalar_select %p2902, %s2899, 1
      %s2904 = smul.addr %s2901, 2
      %s2905 = sadd.s32 %s2903, %s2904
      %s2906 = smul.addr %s2905, 8
      %s2907 = scalar_lea.vmem %s3, %s2906
      // Predicated region
      $region33: #{_basic_conv2d_impl.1} parent=31 // pred_check
        %p2908 = pneg %p114
      $region34: #{_basic_conv2d_impl.1} parent=31 // pred_check_branch
        %2910 = sbr.rel (%p2908) target = $region36
      $region35: #{_basic_conv2d_impl.1} parent=31 // pred_region
        %s2911 = smul.u32 2, %s19
      $region36: #{_basic_conv2d_impl.1} parent=31 // pred_fallthru
        _
    $region32: #{_basic_conv2d_impl.1} parent=5 // pred_fallthru
      _
    %p2912 = scmp.le.s32.totalorder 2, %s9
    // Predicated region
    $region37: #{_basic_conv2d_impl.1} parent=5 // pred_check
      %p2913 = pneg %p2912
    $region38: #{_basic_conv2d_impl.1} parent=5 // pred_check_branch
      %2915 = sbr.rel (%p2913) target = $region40
    $region39: #{_basic_conv2d_impl.1} parent=5 // pred_region
      %s2916 = ssub.s32 %s9, 2
      // Predicated region
      $region41: #{_basic_conv2d_impl.1} parent=39 // pred_check
        %p2917 = pneg %p120
      $region42: #{_basic_conv2d_impl.1} parent=39 // pred_check_branch
        %2919 = sbr.rel (%p2917) target = $region44
      $region43: #{_basic_conv2d_impl.1} parent=39 // pred_region
        %s2920 = smul.u32 2, %s21
        %p2921 = scmp.lt.s32.totalorder %s20, 1
        %s2922 = scalar_select %p2921, %s20, 1
        %p2923 = scmp.lt.s32.totalorder %s2920, 1
        %s2924 = scalar_select %p2923, %s2920, 1
        %s2925 = smul.addr %s2922, 2
        %s2926 = sadd.s32 %s2924, %s2925
        %s2927 = smul.addr %s2926, 8
        %s2928 = scalar_lea.vmem %s3, %s2927
      $region44: #{_basic_conv2d_impl.1} parent=39 // pred_fallthru
        _
    $region40: #{_basic_conv2d_impl.1} parent=5 // pred_fallthru
      _
  $region6: #{_basic_conv2d_impl.1} parent=0 // loop_footer
    %s13 = sadd.s32 1, %s9
  $region7: #{_basic_conv2d_impl.1} parent=0 // loop_footer_branch
    %8 = sbr.rel target = $region3
  $region8: #{_basic_conv2d_impl.1} parent=0 // loop_exit
    _

// kernel: _basic_conv2d_impl.1
$region0: #{_basic_conv2d_impl.1}
  #allocation0 [shape = 'u32[]', space=smem, size = 0x4, offset = 0x4, fixed_abs, tag = 'smem constant byte address 0x4 - core index']
  #allocation1 [shape = 'u32[144,128]{1,0:T(1,128)}', space=vmem, size = 0x12000, scoped, tag = 'internal scratch']
  %s0 = inlined_call_operand.vmem [shape: bf16[2,4,18,18], index: 0, kind: input, shape index: {}]
  %s1 = inlined_call_operand.vmem [shape: bf16[8,36], index: 1, kind: input, shape index: {}]
  %s2 = inlined_call_operand.vmem [shape: f32[8,1], index: 2, kind: input, shape index: {}]
  %s3 = inlined_call_operand.vmem [shape: f32[2,8,256], index: 3, kind: output, shape index: {}]
  %s4 = sld [smem:[#allocation0]]
  $region45: #{_basic_conv2d_impl.1} parent=0
    _
  %s6 = ssub.s32 1, %s4
  %s7 = scalar_select 0, %s6, %s4
  loop: start=0, step=1, limit=4
  $region2: #{_basic_conv2d_impl.1} parent=0 // loop_pre_header
    _
  $region3: #{_basic_conv2d_impl.1} parent=0 // loop_header
    %s9 = sphi 0, %s13
    %p10 = scmp.ge.s32.totalorder %s9, 4
    %s16 = sphi 0, %s28
    %s17 = sphi 0, %s24
    %s18 = sphi 0, %s16
    %s19 = sphi 0, %s17
    %s20 = sphi 0, %s18
    %s21 = sphi 0, %s19
    %s31 = sphi 0, %s33
    %s34 = sphi 0, %s31
    %s35 = sphi 0, %s34
    %s51 = sphi 0, %s35
    %s55 = sphi 0, %s55
    %s57 = sphi 0, %s55
    %s58 = sphi 0, %s57
    %s72 = sphi 0, %s58
    %s76 = sphi 0, %s76
    %s78 = sphi 0, %s76
    %s79 = sphi 0, %s78
    %s93 = sphi 0, %s79
    %s101 = sphi 0, %s103
    %s104 = sphi 0, %s101
    %s105 = sphi 0, %s104
    %s121 = sphi 0, %s105
  $region4: #{_basic_conv2d_impl.1} parent=0 // loop_header_branch
    %12 = sbr.rel (%p10) target = $region8
  $region5: #{_basic_conv2d_impl.1} parent=0 // loop_body
    %s14 = ssub.s32 %s9, 1
    %s15 = ssub.s32 %s9, 2
    %s22 = sadd.s32 1, %s17
    %p23 = scmp.ge.s32.totalorder %s22, 1
    %s24 = scalar_select %p23, 0, %s22
    %s25 = sadd.s32 1, %s16
    %s26 = scalar_select %p23, %s25, %s16
    %p27 = scmp.ge.s32.totalorder %s26, 2
    %s28 = scalar_select %p27, 0, %s26
    %s29 = ssub.s32 %s16, %s28
    %p30 = scmp.eq.s32.totalorder %s29, 0
    %s32 = sadd.s32 %s31, 1
    %s33 = scalar_select %p30, %s31, %s32
    %p36 = pneg %p30
    %p37 = scmp.eq.s32.totalorder %s9, 1
    %p38 = por %p36, %p37
    %p39 = scmp.ne.s32.totalorder %s31, %s34
    %p40 = scmp.eq.s32.totalorder %s9, 0
    %p41 = por %p39, %p40
    %p42 = scmp.ne.s32.totalorder %s31, %s34
    %p43 = scmp.eq.s32.totalorder %s14, 1
    %p44 = por %p42, %p43
    %p45 = scmp.ne.s32.totalorder %s34, %s35
    %p46 = scmp.eq.s32.totalorder %s14, 0
    %p47 = por %p45, %p46
    %p48 = scmp.ne.s32.totalorder %s34, %s35
    %p49 = scmp.eq.s32.totalorder %s15, 1
    %p50 = por %p48, %p49
    %p52 = scmp.ne.s32.totalorder %s35, %s51
    %p53 = scmp.eq.s32.totalorder %s15, 0
    %p54 = por %p52, %p53
    %s56 = sadd.s32 %s55, 1
    %p59 = scmp.eq.s32.totalorder %s9, 1
    %p60 = scmp.ne.s32.totalorder %s55, %s57
    %p61 = scmp.eq.s32.totalorder %s9, 0
    %p62 = por %p60, %p61
    %p63 = scmp.ne.s32.totalorder %s55, %s57
    %p64 = scmp.eq.s32.totalorder %s14, 1
    %p65 = por %p63, %p64
    %p66 = scmp.ne.s32.totalorder %s57, %s58
    %p67 = scmp.eq.s32.totalorder %s14, 0
    %p68 = por %p66, %p67
    %p69 = scmp.ne.s32.totalorder %s57, %s58
    %p70 = scmp.eq.s32.totalorder %s15, 1
    %p71 = por %p69, %p70
    %p73 = scmp.ne.s32.totalorder %s58, %s72
    %p74 = scmp.eq.s32.totalorder %s15, 0
    %p75 = por %p73, %p74
    %s77 = sadd.s32 %s76, 1
    %p80 = scmp.eq.s32.totalorder %s9, 1
    %p81 = scmp.ne.s32.totalorder %s76, %s78
    %p82 = scmp.eq.s32.totalorder %s9, 0
    %p83 = por %p81, %p82
    %p84 = scmp.ne.s32.totalorder %s76, %s78
    %p85 = scmp.eq.s32.totalorder %s14, 1
    %p86 = por %p84, %p85
    %p87 = scmp.ne.s32.totalorder %s78, %s79
    %p88 = scmp.eq.s32.totalorder %s14, 0
    %p89 = por %p87, %p88
    %p90 = scmp.ne.s32.totalorder %s78, %s79
    %p91 = scmp.eq.s32.totalorder %s15, 1
    %p92 = por %p90, %p91
    %p94 = scmp.ne.s32.totalorder %s79, %s93
    %p95 = scmp.eq.s32.totalorder %s15, 0
    %p96 = por %p94, %p95
    %s97 = ssub.s32 %s16, %s28
    %s98 = ssub.s32 %s17, %s24
    %s99 = sor.u32 %s97, %s98
    %p100 = scmp.eq.s32.totalorder %s99, 0
    %s102 = sadd.s32 %s101, 1
    %s103 = scalar_select %p100, %s101, %s102
    %p106 = pneg %p100
    %p107 = scmp.eq.s32.totalorder %s9, 1
    %p108 = por %p106, %p107
    %p109 = scmp.ne.s32.totalorder %s101, %s104
    %p110 = scmp.eq.s32.totalorder %s9, 0
    %p111 = por %p109, %p110
    %p112 = scmp.ne.s32.totalorder %s101, %s104
    %p113 = scmp.eq.s32.totalorder %s14, 1
    %p114 = por %p112, %p113
    %p115 = scmp.ne.s32.totalorder %s104, %s105
    %p116 = scmp.eq.s32.totalorder %s14, 0
    %p117 = por %p115, %p116
    %p118 = scmp.ne.s32.totalorder %s104, %s105
    %p119 = scmp.eq.s32.totalorder %s15, 1
    %p120 = por %p118, %p119
    %p122 = scmp.ne.s32.totalorder %s105, %s121
    %p123 = scmp.eq.s32.totalorder %s15, 0
    %p124 = por %p122, %p123
    %p125 = scmp.le.s32.totalorder 1, %s9
    %p126 = scmp.lt.s32.totalorder %s9, 3
    %p127 = pnand %p125, %p126
    %p128 = pneg %p127
    // Predicated region
    $region9: #{_basic_conv2d_impl.1} parent=5 // pred_check
      _
    $region10: #{_basic_conv2d_impl.1} parent=5 // pred_check_branch
      %130 = sbr.rel (%p127) target = $region12
    $region11: #{_basic_conv2d_impl.1} parent=5 // pred_region
      %s131 = ssub.s32 %s9, 1
      // Predicated region
      $region13: #{_basic_conv2d_impl.1} parent=11 // pred_check
        %p132 = pneg %p68
      $region14: #{_basic_conv2d_impl.1} parent=11 // pred_check_branch
        %134 = sbr.rel (%p132) target = $region16
      $region15: #{_basic_conv2d_impl.1} parent=11 // pred_region
        _
      $region16: #{_basic_conv2d_impl.1} parent=11 // pred_fallthru
        _
      // Predicated region
      $region17: #{_basic_conv2d_impl.1} parent=11 // pred_check
        %p135 = pneg %p89
      $region18: #{_basic_conv2d_impl.1} parent=11 // pred_check_branch
        %137 = sbr.rel (%p135) target = $region20
      $region19: #{_basic_conv2d_impl.1} parent=11 // pred_region
        _
      $region20: #{_basic_conv2d_impl.1} parent=11 // pred_fallthru
        _
    $region12: #{_basic_conv2d_impl.1} parent=5 // pred_fallthru
      _
    %p138 = scmp.lt.s32.totalorder %s9, 2
    // Predicated region
    $region21: #{_basic_conv2d_impl.1} parent=5 // pred_check
      %p139 = pneg %p138
    $region22: #{_basic_conv2d_impl.1} parent=5 // pred_check_branch
      %141 = sbr.rel (%p139) target = $region24
    $region23: #{_basic_conv2d_impl.1} parent=5 // pred_region
      // Predicated region
      $region25: #{_basic_conv2d_impl.1} parent=23 // pred_check
        %p142 = pneg %p41
      $region26: #{_basic_conv2d_impl.1} parent=23 // pred_check_branch
        %144 = sbr.rel (%p142) target = $region28
      $region27: #{_basic_conv2d_impl.1} parent=23 // pred_region
        %p145 = scmp.lt.s32.totalorder %s16, 1
        %s146 = scalar_select %p145, %s16, 1
        %s147 = smul.addr %s146, 12
        %s148 = smul.addr %s147, 4
        %s149 = scalar_lea.vmem %s0, %s148
      $region28: #{_basic_conv2d_impl.1} parent=23 // pred_fallthru
        _
    $region24: #{_basic_conv2d_impl.1} parent=5 // pred_fallthru
      _
    %p150 = scmp.le.s32.totalorder 1, %s9
    %p151 = scmp.lt.s32.totalorder %s9, 3
    %p152 = pnand %p150, %p151
    %p153 = pneg %p152
    // Predicated region
    $region29: #{_basic_conv2d_impl.1} parent=5 // pred_check
      _
    $region30: #{_basic_conv2d_impl.1} parent=5 // pred_check_branch
      %155 = sbr.rel (%p152) target = $region32
    $region31: #{_basic_conv2d_impl.1} parent=5 // pred_region
      %s156 = ssub.s32 %s9, 1
      %p157 = scmp.lt.s32.totalorder %s18, 1
      %s158 = scalar_select %p157, %s18, 1
      %s159 = smul.addr %s158, 12
      %s160 = smul.addr %s159, 4
      %s161 = scalar_lea.vmem %s0, %s160
      %p162 = pneg %p47
      %p163 = pneg %p44
      %p164 = pneg %p68
      %p165 = pneg %p65
      %p166 = pneg %p89
      %p167 = pneg %p86
      %p168 = pneg %p117
      %p169 = pneg %p114
      %s170 = smul.u32 2, %s19
      %p171 = scmp.lt.s32.totalorder %s18, 1
      %s172 = scalar_select %p171, %s18, 1
      %p173 = scmp.lt.s32.totalorder %s170, 1
      %s174 = scalar_select %p173, %s170, 1
      %s175 = smul.addr %s172, 2
      %s176 = sadd.s32 %s174, %s175
      %s177 = smul.addr %s176, 8
      %s178 = scalar_lea.vmem %s3, %s177
      %p179 = scmp.lt.s32.totalorder %s18, 1
      %s180 = scalar_select %p179, %s18, 1
      %s181 = smul.addr %s180, 12
      %s182 = smul.addr %s181, 4
      %s183 = scalar_lea.vmem %s0, %s182
      %s184 = smul.u32 2, %s19
      %p185 = scmp.lt.s32.totalorder %s18, 1
      %s186 = scalar_select %p185, %s18, 1
      %p187 = scmp.lt.s32.totalorder %s184, 1
      %s188 = scalar_select %p187, %s184, 1
      %s189 = smul.addr %s186, 2
      %s190 = sadd.s32 %s188, %s189
      %s191 = smul.addr %s190, 8
      %s192 = scalar_lea.vmem %s3, %s191
      %s193 = smul.u32 2, %s19
      %v195 = vld [vmem:[%s183] sm:$0xf]
      %v196 = vld [vmem:[%s183 + $0x4] sm:$0xf]
      %v197 = vld [vmem:[%s183 + $0xc] sm:$0xf]
      %v198 = vld [vmem:[%s183 + $0x10] sm:$0xf]
      %v199 = vld [vmem:[%s183 + $0x18] sm:$0xf]
      %v200 = vld [vmem:[%s183 + $0x1c] sm:$0xf]
      %v201 = vld [vmem:[%s183 + $0x24] sm:$0xf]
      %v202 = vld [vmem:[%s183 + $0x28] sm:$0xf]
      %v205 = vpack.i.b16 %v197, %v195
      %v206 = vshrl.u32 %v195, 16
      %v207 = vshrl.u32 %v197, 16
      %v208 = vpack.i.b16 %v207, %v206
      %v211 = vpack.i.b16 %v201, %v199
      %v212 = vshrl.u32 %v199, 16
      %v213 = vshrl.u32 %v201, 16
      %v214 = vpack.i.b16 %v213, %v212
      %v217 = vpack.i.b16 %v198, %v196
      %v218 = vshrl.u32 %v196, 16
      %v219 = vshrl.u32 %v198, 16
      %v220 = vpack.i.b16 %v219, %v218
      %v223 = vpack.i.b16 %v202, %v200
      %v224 = vshrl.u32 %v200, 16
      %v225 = vshrl.u32 %v202, 16
      %v226 = vpack.i.b16 %v225, %v224
      %v229 = vunpack.c.l.s4 1983009808
      %v230 = vunpack.c.0.s8 %v229
      %v231 = vlaneseq
      %v232 = vshrl.u32 %v231, 7
      %v233 = vsub.s32 %v230, %v232
      %v234 = vrot.slane %v205, %v233
      %v237 = vunpack.c.l.s4 1983009808
      %v238 = vunpack.c.0.s8 %v237
      %v239 = vlaneseq
      %v240 = vshrl.u32 %v239, 7
      %v241 = vsub.s32 %v238, %v240
      %v242 = vrot.slane %v211, %v241
      %v243 = vcombine.low %v234, %v242
      %v244 = vcombine.high %v234, %v242
      %v246 = vunpack.c.l.s4 1934713408
      %v247 = vunpack.c.0.s8 %v246
      %v248 = vlaneseq
      %v249 = vshrl.u32 %v248, 7
      %v250 = vsub.s32 %v247, %v249
      %v251 = vrot.slane %v243, %v250
      %v253 = vunpack.c.l.s4 1934713408
      %v254 = vunpack.c.0.s8 %v253
      %v255 = vlaneseq
      %v256 = vshrl.u32 %v255, 7
      %v257 = vsub.s32 %v254, %v256
      %v258 = vrot.slane %v244, %v257
      %v259 = vcombine.high %v251, 0
      %v260 = vcombine.high %v258, 0
      %v263 = vunpack.c.l.s4 1983009808
      %v264 = vunpack.c.0.s8 %v263
      %v265 = vlaneseq
      %v266 = vshrl.u32 %v265, 7
      %v267 = vsub.s32 %v264, %v266
      %v268 = vrot.slane %v208, %v267
      %v271 = vunpack.c.l.s4 1983009808
      %v272 = vunpack.c.0.s8 %v271
      %v273 = vlaneseq
      %v274 = vshrl.u32 %v273, 7
      %v275 = vsub.s32 %v272, %v274
      %v276 = vrot.slane %v214, %v275
      %v277 = vcombine.low %v268, %v276
      %v278 = vcombine.high %v268, %v276
      %v280 = vunpack.c.l.s4 1934713408
      %v281 = vunpack.c.0.s8 %v280
      %v282 = vlaneseq
      %v283 = vshrl.u32 %v282, 7
      %v284 = vsub.s32 %v281, %v283
      %v285 = vrot.slane %v277, %v284
      %v287 = vunpack.c.l.s4 1934713408
      %v288 = vunpack.c.0.s8 %v287
      %v289 = vlaneseq
      %v290 = vshrl.u32 %v289, 7
      %v291 = vsub.s32 %v288, %v290
      %v292 = vrot.slane %v278, %v291
      %v293 = vcombine.high %v285, 0
      %v294 = vcombine.high %v292, 0
      %v297 = vunpack.c.l.s4 1983009808
      %v298 = vunpack.c.0.s8 %v297
      %v299 = vlaneseq
      %v300 = vshrl.u32 %v299, 7
      %v301 = vsub.s32 %v298, %v300
      %v302 = vrot.slane %v217, %v301
      %v305 = vunpack.c.l.s4 1983009808
      %v306 = vunpack.c.0.s8 %v305
      %v307 = vlaneseq
      %v308 = vshrl.u32 %v307, 7
      %v309 = vsub.s32 %v306, %v308
      %v310 = vrot.slane %v223, %v309
      %v311 = vcombine.low %v302, %v310
      %v312 = vcombine.high %v302, %v310
      %v314 = vunpack.c.l.s4 1934713408
      %v315 = vunpack.c.0.s8 %v314
      %v316 = vlaneseq
      %v317 = vshrl.u32 %v316, 7
      %v318 = vsub.s32 %v315, %v317
      %v319 = vrot.slane %v311, %v318
      %v321 = vunpack.c.l.s4 1934713408
      %v322 = vunpack.c.0.s8 %v321
      %v323 = vlaneseq
      %v324 = vshrl.u32 %v323, 7
      %v325 = vsub.s32 %v322, %v324
      %v326 = vrot.slane %v312, %v325
      %v327 = vcombine.high %v319, 0
      %v328 = vcombine.high %v326, 0
      %v331 = vunpack.c.l.s4 1983009808
      %v332 = vunpack.c.0.s8 %v331
      %v333 = vlaneseq
      %v334 = vshrl.u32 %v333, 7
      %v335 = vsub.s32 %v332, %v334
      %v336 = vrot.slane %v220, %v335
      %v339 = vunpack.c.l.s4 1983009808
      %v340 = vunpack.c.0.s8 %v339
      %v341 = vlaneseq
      %v342 = vshrl.u32 %v341, 7
      %v343 = vsub.s32 %v340, %v342
      %v344 = vrot.slane %v226, %v343
      %v345 = vcombine.low %v336, %v344
      %v346 = vcombine.high %v336, %v344
      %v348 = vunpack.c.l.s4 1934713408
      %v349 = vunpack.c.0.s8 %v348
      %v350 = vlaneseq
      %v351 = vshrl.u32 %v350, 7
      %v352 = vsub.s32 %v349, %v351
      %v353 = vrot.slane %v345, %v352
      %v355 = vunpack.c.l.s4 1934713408
      %v356 = vunpack.c.0.s8 %v355
      %v357 = vlaneseq
      %v358 = vshrl.u32 %v357, 7
      %v359 = vsub.s32 %v356, %v358
      %v360 = vrot.slane %v346, %v359
      %v361 = vcombine.high %v353, 0
      %v362 = vcombine.high %v360, 0
      %v364 = vunpack.c.l.b16 %v285
      %v365 = vpack.c.b16 %v364, %v364
      %366 = vrot.lane.b32.xlu0 %v365, 16
      %v367 = vpop.permute.xlu0 %366
      %v369 = vunpack.c.l.b16 %v259
      %v370 = vpack.c.b16 %v369, %v369
      %371 = vrot.lane.b32.xlu0 %v370, 32
      %v372 = vpop.permute.xlu0 %371
      %v374 = vunpack.c.l.b16 %v293
      %v375 = vpack.c.b16 %v374, %v374
      %376 = vrot.lane.b32.xlu0 %v375, 48
      %v377 = vpop.permute.xlu0 %376
      %v379 = vunpack.c.l.b16 %v258
      %v380 = vpack.c.b16 %v379, %v379
      %381 = vrot.lane.b32.xlu0 %v380, 64
      %v382 = vpop.permute.xlu0 %381
      %v384 = vunpack.c.l.b16 %v292
      %v385 = vpack.c.b16 %v384, %v384
      %386 = vrot.lane.b32.xlu0 %v385, 80
      %v387 = vpop.permute.xlu0 %386
      %v389 = vunpack.c.l.b16 %v260
      %v390 = vpack.c.b16 %v389, %v389
      %391 = vrot.lane.b32.xlu0 %v390, 96
      %v392 = vpop.permute.xlu0 %391
      %v394 = vunpack.c.l.b16 %v294
      %v395 = vpack.c.b16 %v394, %v394
      %396 = vrot.lane.b32.xlu0 %v395, 112
      %v397 = vpop.permute.xlu0 %396
      %v399 = vunpack.c.l.b16 %v353
      %v400 = vpack.c.b16 %v399, %v399
      %401 = vrot.lane.b32.xlu0 %v400, 16
      %v402 = vpop.permute.xlu0 %401
      %v404 = vunpack.c.l.b16 %v327
      %v405 = vpack.c.b16 %v404, %v404
      %406 = vrot.lane.b32.xlu0 %v405, 32
      %v407 = vpop.permute.xlu0 %406
      %v409 = vunpack.c.l.b16 %v361
      %v410 = vpack.c.b16 %v409, %v409
      %411 = vrot.lane.b32.xlu0 %v410, 48
      %v412 = vpop.permute.xlu0 %411
      %v414 = vunpack.c.l.b16 %v326
      %v415 = vpack.c.b16 %v414, %v414
      %416 = vrot.lane.b32.xlu0 %v415, 64
      %v417 = vpop.permute.xlu0 %416
      %v419 = vunpack.c.l.b16 %v360
      %v420 = vpack.c.b16 %v419, %v419
      %421 = vrot.lane.b32.xlu0 %v420, 80
      %v422 = vpop.permute.xlu0 %421
      %v424 = vunpack.c.l.b16 %v328
      %v425 = vpack.c.b16 %v424, %v424
      %426 = vrot.lane.b32.xlu0 %v425, 96
      %v427 = vpop.permute.xlu0 %426
      %v429 = vunpack.c.l.b16 %v362
      %v430 = vpack.c.b16 %v429, %v429
      %431 = vrot.lane.b32.xlu0 %v430, 112
      %v432 = vpop.permute.xlu0 %431
      %vm433 = vcmask 130048
      %v436 = vsel %vm433, %v251, %v367
      %vm437 = vcmask 261120
      %v439 = vsel %vm437, %v436, %v372
      %vm440 = vcmask 392192
      %v442 = vsel %vm440, %v439, %v377
      %vm443 = vcmask 523264
      %v445 = vsel %vm443, %v442, %v382
      %vm446 = vcmask 654336
      %v448 = vsel %vm446, %v445, %v387
      %vm449 = vcmask 785408
      %v451 = vsel %vm449, %v448, %v392
      %vm452 = vcmask 916480
      %v454 = vsel %vm452, %v451, %v397
      %v457 = vsel %vm433, %v319, %v402
      %v459 = vsel %vm437, %v457, %v407
      %v461 = vsel %vm440, %v459, %v412
      %v463 = vsel %vm443, %v461, %v417
      %v465 = vsel %vm446, %v463, %v422
      %v467 = vsel %vm449, %v465, %v427
      %v469 = vsel %vm452, %v467, %v432
      %478 = vrot.lane.b32.xlu0 %v195, 127
      %v479 = vpop.permute.xlu0 %478
      %480 = vrot.lane.b32.xlu0 %v196, 127
      %v481 = vpop.permute.xlu0 %480
      %482 = vrot.lane.b32.xlu0 %v197, 127
      %v483 = vpop.permute.xlu0 %482
      %484 = vrot.lane.b32.xlu0 %v198, 127
      %v485 = vpop.permute.xlu0 %484
      %486 = vrot.lane.b32.xlu0 %v199, 127
      %v487 = vpop.permute.xlu0 %486
      %488 = vrot.lane.b32.xlu0 %v200, 127
      %v489 = vpop.permute.xlu0 %488
      %490 = vrot.lane.b32.xlu0 %v201, 127
      %v491 = vpop.permute.xlu0 %490
      %492 = vrot.lane.b32.xlu0 %v202, 127
      %v493 = vpop.permute.xlu0 %492
      %v496 = vpack.i.b16 %v483, %v479
      %v497 = vshrl.u32 %v479, 16
      %v498 = vshrl.u32 %v483, 16
      %v499 = vpack.i.b16 %v498, %v497
      %v502 = vpack.i.b16 %v491, %v487
      %v503 = vshrl.u32 %v487, 16
      %v504 = vshrl.u32 %v491, 16
      %v505 = vpack.i.b16 %v504, %v503
      %v508 = vpack.i.b16 %v485, %v481
      %v509 = vshrl.u32 %v481, 16
      %v510 = vshrl.u32 %v485, 16
      %v511 = vpack.i.b16 %v510, %v509
      %v514 = vpack.i.b16 %v493, %v489
      %v515 = vshrl.u32 %v489, 16
      %v516 = vshrl.u32 %v493, 16
      %v517 = vpack.i.b16 %v516, %v515
      %v520 = vunpack.c.l.s4 1983009808
      %v521 = vunpack.c.0.s8 %v520
      %v522 = vlaneseq
      %v523 = vshrl.u32 %v522, 7
      %v524 = vsub.s32 %v521, %v523
      %v525 = vrot.slane %v496, %v524
      %v528 = vunpack.c.l.s4 1983009808
      %v529 = vunpack.c.0.s8 %v528
      %v530 = vlaneseq
      %v531 = vshrl.u32 %v530, 7
      %v532 = vsub.s32 %v529, %v531
      %v533 = vrot.slane %v502, %v532
      %v534 = vcombine.low %v525, %v533
      %v535 = vcombine.high %v525, %v533
      %v537 = vunpack.c.l.s4 1934713408
      %v538 = vunpack.c.0.s8 %v537
      %v539 = vlaneseq
      %v540 = vshrl.u32 %v539, 7
      %v541 = vsub.s32 %v538, %v540
      %v542 = vrot.slane %v534, %v541
      %v544 = vunpack.c.l.s4 1934713408
      %v545 = vunpack.c.0.s8 %v544
      %v546 = vlaneseq
      %v547 = vshrl.u32 %v546, 7
      %v548 = vsub.s32 %v545, %v547
      %v549 = vrot.slane %v535, %v548
      %v550 = vcombine.high %v542, 0
      %v551 = vcombine.high %v549, 0
      %v554 = vunpack.c.l.s4 1983009808
      %v555 = vunpack.c.0.s8 %v554
      %v556 = vlaneseq
      %v557 = vshrl.u32 %v556, 7
      %v558 = vsub.s32 %v555, %v557
      %v559 = vrot.slane %v499, %v558
      %v562 = vunpack.c.l.s4 1983009808
      %v563 = vunpack.c.0.s8 %v562
      %v564 = vlaneseq
      %v565 = vshrl.u32 %v564, 7
      %v566 = vsub.s32 %v563, %v565
      %v567 = vrot.slane %v505, %v566
      %v568 = vcombine.low %v559, %v567
      %v569 = vcombine.high %v559, %v567
      %v571 = vunpack.c.l.s4 1934713408
      %v572 = vunpack.c.0.s8 %v571
      %v573 = vlaneseq
      %v574 = vshrl.u32 %v573, 7
      %v575 = vsub.s32 %v572, %v574
      %v576 = vrot.slane %v568, %v575
      %v578 = vunpack.c.l.s4 1934713408
      %v579 = vunpack.c.0.s8 %v578
      %v580 = vlaneseq
      %v581 = vshrl.u32 %v580, 7
      %v582 = vsub.s32 %v579, %v581
      %v583 = vrot.slane %v569, %v582
      %v584 = vcombine.high %v576, 0
      %v585 = vcombine.high %v583, 0
      %v588 = vunpack.c.l.s4 1983009808
      %v589 = vunpack.c.0.s8 %v588
      %v590 = vlaneseq
      %v591 = vshrl.u32 %v590, 7
      %v592 = vsub.s32 %v589, %v591
      %v593 = vrot.slane %v508, %v592
      %v596 = vunpack.c.l.s4 1983009808
      %v597 = vunpack.c.0.s8 %v596
      %v598 = vlaneseq
      %v599 = vshrl.u32 %v598, 7
      %v600 = vsub.s32 %v597, %v599
      %v601 = vrot.slane %v514, %v600
      %v602 = vcombine.low %v593, %v601
      %v603 = vcombine.high %v593, %v601
      %v605 = vunpack.c.l.s4 1934713408
      %v606 = vunpack.c.0.s8 %v605
      %v607 = vlaneseq
      %v608 = vshrl.u32 %v607, 7
      %v609 = vsub.s32 %v606, %v608
      %v610 = vrot.slane %v602, %v609
      %v612 = vunpack.c.l.s4 1934713408
      %v613 = vunpack.c.0.s8 %v612
      %v614 = vlaneseq
      %v615 = vshrl.u32 %v614, 7
      %v616 = vsub.s32 %v613, %v615
      %v617 = vrot.slane %v603, %v616
      %v618 = vcombine.high %v610, 0
      %v619 = vcombine.high %v617, 0
      %v622 = vunpack.c.l.s4 1983009808
      %v623 = vunpack.c.0.s8 %v622
      %v624 = vlaneseq
      %v625 = vshrl.u32 %v624, 7
      %v626 = vsub.s32 %v623, %v625
      %v627 = vrot.slane %v511, %v626
      %v630 = vunpack.c.l.s4 1983009808
      %v631 = vunpack.c.0.s8 %v630
      %v632 = vlaneseq
      %v633 = vshrl.u32 %v632, 7
      %v634 = vsub.s32 %v631, %v633
      %v635 = vrot.slane %v517, %v634
      %v636 = vcombine.low %v627, %v635
      %v637 = vcombine.high %v627, %v635
      %v639 = vunpack.c.l.s4 1934713408
      %v640 = vunpack.c.0.s8 %v639
      %v641 = vlaneseq
      %v642 = vshrl.u32 %v641, 7
      %v643 = vsub.s32 %v640, %v642
      %v644 = vrot.slane %v636, %v643
      %v646 = vunpack.c.l.s4 1934713408
      %v647 = vunpack.c.0.s8 %v646
      %v648 = vlaneseq
      %v649 = vshrl.u32 %v648, 7
      %v650 = vsub.s32 %v647, %v649
      %v651 = vrot.slane %v637, %v650
      %v652 = vcombine.high %v644, 0
      %v653 = vcombine.high %v651, 0
      %v655 = vunpack.c.l.b16 %v576
      %v656 = vpack.c.b16 %v655, %v655
      %657 = vrot.lane.b32.xlu0 %v656, 16
      %v658 = vpop.permute.xlu0 %657
      %v660 = vunpack.c.l.b16 %v550
      %v661 = vpack.c.b16 %v660, %v660
      %662 = vrot.lane.b32.xlu0 %v661, 32
      %v663 = vpop.permute.xlu0 %662
      %v665 = vunpack.c.l.b16 %v584
      %v666 = vpack.c.b16 %v665, %v665
      %667 = vrot.lane.b32.xlu0 %v666, 48
      %v668 = vpop.permute.xlu0 %667
      %v670 = vunpack.c.l.b16 %v549
      %v671 = vpack.c.b16 %v670, %v670
      %672 = vrot.lane.b32.xlu0 %v671, 64
      %v673 = vpop.permute.xlu0 %672
      %v675 = vunpack.c.l.b16 %v583
      %v676 = vpack.c.b16 %v675, %v675
      %677 = vrot.lane.b32.xlu0 %v676, 80
      %v678 = vpop.permute.xlu0 %677
      %v680 = vunpack.c.l.b16 %v551
      %v681 = vpack.c.b16 %v680, %v680
      %682 = vrot.lane.b32.xlu0 %v681, 96
      %v683 = vpop.permute.xlu0 %682
      %v685 = vunpack.c.l.b16 %v585
      %v686 = vpack.c.b16 %v685, %v685
      %687 = vrot.lane.b32.xlu0 %v686, 112
      %v688 = vpop.permute.xlu0 %687
      %v690 = vunpack.c.l.b16 %v644
      %v691 = vpack.c.b16 %v690, %v690
      %692 = vrot.lane.b32.xlu0 %v691, 16
      %v693 = vpop.permute.xlu0 %692
      %v695 = vunpack.c.l.b16 %v618
      %v696 = vpack.c.b16 %v695, %v695
      %697 = vrot.lane.b32.xlu0 %v696, 32
      %v698 = vpop.permute.xlu0 %697
      %v700 = vunpack.c.l.b16 %v652
      %v701 = vpack.c.b16 %v700, %v700
      %702 = vrot.lane.b32.xlu0 %v701, 48
      %v703 = vpop.permute.xlu0 %702
      %v705 = vunpack.c.l.b16 %v617
      %v706 = vpack.c.b16 %v705, %v705
      %707 = vrot.lane.b32.xlu0 %v706, 64
      %v708 = vpop.permute.xlu0 %707
      %v710 = vunpack.c.l.b16 %v651
      %v711 = vpack.c.b16 %v710, %v710
      %712 = vrot.lane.b32.xlu0 %v711, 80
      %v713 = vpop.permute.xlu0 %712
      %v715 = vunpack.c.l.b16 %v619
      %v716 = vpack.c.b16 %v715, %v715
      %717 = vrot.lane.b32.xlu0 %v716, 96
      %v718 = vpop.permute.xlu0 %717
      %v720 = vunpack.c.l.b16 %v653
      %v721 = vpack.c.b16 %v720, %v720
      %722 = vrot.lane.b32.xlu0 %v721, 112
      %v723 = vpop.permute.xlu0 %722
      %v726 = vsel %vm433, %v542, %v658
      %v728 = vsel %vm437, %v726, %v663
      %v730 = vsel %vm440, %v728, %v668
      %v732 = vsel %vm443, %v730, %v673
      %v734 = vsel %vm446, %v732, %v678
      %v736 = vsel %vm449, %v734, %v683
      %v738 = vsel %vm452, %v736, %v688
      %v741 = vsel %vm433, %v610, %v693
      %v743 = vsel %vm437, %v741, %v698
      %v745 = vsel %vm440, %v743, %v703
      %v747 = vsel %vm443, %v745, %v708
      %v749 = vsel %vm446, %v747, %v713
      %v751 = vsel %vm449, %v749, %v718
      %v753 = vsel %vm452, %v751, %v723
      %754 = vrot.lane.b32.xlu0 %v195, 126
      %v755 = vpop.permute.xlu0 %754
      %756 = vrot.lane.b32.xlu0 %v196, 126
      %v757 = vpop.permute.xlu0 %756
      %758 = vrot.lane.b32.xlu0 %v197, 126
      %v759 = vpop.permute.xlu0 %758
      %760 = vrot.lane.b32.xlu0 %v198, 126
      %v761 = vpop.permute.xlu0 %760
      %762 = vrot.lane.b32.xlu0 %v199, 126
      %v763 = vpop.permute.xlu0 %762
      %764 = vrot.lane.b32.xlu0 %v200, 126
      %v765 = vpop.permute.xlu0 %764
      %766 = vrot.lane.b32.xlu0 %v201, 126
      %v767 = vpop.permute.xlu0 %766
      %768 = vrot.lane.b32.xlu0 %v202, 126
      %v769 = vpop.permute.xlu0 %768
      %v772 = vpack.i.b16 %v759, %v755
      %v773 = vshrl.u32 %v755, 16
      %v774 = vshrl.u32 %v759, 16
      %v775 = vpack.i.b16 %v774, %v773
      %v778 = vpack.i.b16 %v767, %v763
      %v779 = vshrl.u32 %v763, 16
      %v780 = vshrl.u32 %v767, 16
      %v781 = vpack.i.b16 %v780, %v779
      %v784 = vpack.i.b16 %v761, %v757
      %v785 = vshrl.u32 %v757, 16
      %v786 = vshrl.u32 %v761, 16
      %v787 = vpack.i.b16 %v786, %v785
      %v790 = vpack.i.b16 %v769, %v765
      %v791 = vshrl.u32 %v765, 16
      %v792 = vshrl.u32 %v769, 16
      %v793 = vpack.i.b16 %v792, %v791
      %v796 = vunpack.c.l.s4 1983009808
      %v797 = vunpack.c.0.s8 %v796
      %v798 = vlaneseq
      %v799 = vshrl.u32 %v798, 7
      %v800 = vsub.s32 %v797, %v799
      %v801 = vrot.slane %v772, %v800
      %v804 = vunpack.c.l.s4 1983009808
      %v805 = vunpack.c.0.s8 %v804
      %v806 = vlaneseq
      %v807 = vshrl.u32 %v806, 7
      %v808 = vsub.s32 %v805, %v807
      %v809 = vrot.slane %v778, %v808
      %v810 = vcombine.low %v801, %v809
      %v811 = vcombine.high %v801, %v809
      %v813 = vunpack.c.l.s4 1934713408
      %v814 = vunpack.c.0.s8 %v813
      %v815 = vlaneseq
      %v816 = vshrl.u32 %v815, 7
      %v817 = vsub.s32 %v814, %v816
      %v818 = vrot.slane %v810, %v817
      %v820 = vunpack.c.l.s4 1934713408
      %v821 = vunpack.c.0.s8 %v820
      %v822 = vlaneseq
      %v823 = vshrl.u32 %v822, 7
      %v824 = vsub.s32 %v821, %v823
      %v825 = vrot.slane %v811, %v824
      %v826 = vcombine.high %v818, 0
      %v827 = vcombine.high %v825, 0
      %v830 = vunpack.c.l.s4 1983009808
      %v831 = vunpack.c.0.s8 %v830
      %v832 = vlaneseq
      %v833 = vshrl.u32 %v832, 7
      %v834 = vsub.s32 %v831, %v833
      %v835 = vrot.slane %v775, %v834
      %v838 = vunpack.c.l.s4 1983009808
      %v839 = vunpack.c.0.s8 %v838
      %v840 = vlaneseq
      %v841 = vshrl.u32 %v840, 7
      %v842 = vsub.s32 %v839, %v841
      %v843 = vrot.slane %v781, %v842
      %v844 = vcombine.low %v835, %v843
      %v845 = vcombine.high %v835, %v843
      %v847 = vunpack.c.l.s4 1934713408
      %v848 = vunpack.c.0.s8 %v847
      %v849 = vlaneseq
      %v850 = vshrl.u32 %v849, 7
      %v851 = vsub.s32 %v848, %v850
      %v852 = vrot.slane %v844, %v851
      %v854 = vunpack.c.l.s4 1934713408
      %v855 = vunpack.c.0.s8 %v854
      %v856 = vlaneseq
      %v857 = vshrl.u32 %v856, 7
      %v858 = vsub.s32 %v855, %v857
      %v859 = vrot.slane %v845, %v858
      %v860 = vcombine.high %v852, 0
      %v861 = vcombine.high %v859, 0
      %v864 = vunpack.c.l.s4 1983009808
      %v865 = vunpack.c.0.s8 %v864
      %v866 = vlaneseq
      %v867 = vshrl.u32 %v866, 7
      %v868 = vsub.s32 %v865, %v867
      %v869 = vrot.slane %v784, %v868
      %v872 = vunpack.c.l.s4 1983009808
      %v873 = vunpack.c.0.s8 %v872
      %v874 = vlaneseq
      %v875 = vshrl.u32 %v874, 7
      %v876 = vsub.s32 %v873, %v875
      %v877 = vrot.slane %v790, %v876
      %v878 = vcombine.low %v869, %v877
      %v879 = vcombine.high %v869, %v877
      %v881 = vunpack.c.l.s4 1934713408
      %v882 = vunpack.c.0.s8 %v881
      %v883 = vlaneseq
      %v884 = vshrl.u32 %v883, 7
      %v885 = vsub.s32 %v882, %v884
      %v886 = vrot.slane %v878, %v885
      %v888 = vunpack.c.l.s4 1934713408
      %v889 = vunpack.c.0.s8 %v888
      %v890 = vlaneseq
      %v891 = vshrl.u32 %v890, 7
      %v892 = vsub.s32 %v889, %v891
      %v893 = vrot.slane %v879, %v892
      %v894 = vcombine.high %v886, 0
      %v895 = vcombine.high %v893, 0
      %v898 = vunpack.c.l.s4 1983009808
      %v899 = vunpack.c.0.s8 %v898
      %v900 = vlaneseq
      %v901 = vshrl.u32 %v900, 7
      %v902 = vsub.s32 %v899, %v901
      %v903 = vrot.slane %v787, %v902
      %v906 = vunpack.c.l.s4 1983009808
      %v907 = vunpack.c.0.s8 %v906
      %v908 = vlaneseq
      %v909 = vshrl.u32 %v908, 7
      %v910 = vsub.s32 %v907, %v909
      %v911 = vrot.slane %v793, %v910
      %v912 = vcombine.low %v903, %v911
      %v913 = vcombine.high %v903, %v911
      %v915 = vunpack.c.l.s4 1934713408
      %v916 = vunpack.c.0.s8 %v915
      %v917 = vlaneseq
      %v918 = vshrl.u32 %v917, 7
      %v919 = vsub.s32 %v916, %v918
      %v920 = vrot.slane %v912, %v919
      %v922 = vunpack.c.l.s4 1934713408
      %v923 = vunpack.c.0.s8 %v922
      %v924 = vlaneseq
      %v925 = vshrl.u32 %v924, 7
      %v926 = vsub.s32 %v923, %v925
      %v927 = vrot.slane %v913, %v926
      %v928 = vcombine.high %v920, 0
      %v929 = vcombine.high %v927, 0
      %v931 = vunpack.c.l.b16 %v852
      %v932 = vpack.c.b16 %v931, %v931
      %933 = vrot.lane.b32.xlu0 %v932, 16
      %v934 = vpop.permute.xlu0 %933
      %v936 = vunpack.c.l.b16 %v826
      %v937 = vpack.c.b16 %v936, %v936
      %938 = vrot.lane.b32.xlu0 %v937, 32
      %v939 = vpop.permute.xlu0 %938
      %v941 = vunpack.c.l.b16 %v860
      %v942 = vpack.c.b16 %v941, %v941
      %943 = vrot.lane.b32.xlu0 %v942, 48
      %v944 = vpop.permute.xlu0 %943
      %v946 = vunpack.c.l.b16 %v825
      %v947 = vpack.c.b16 %v946, %v946
      %948 = vrot.lane.b32.xlu0 %v947, 64
      %v949 = vpop.permute.xlu0 %948
      %v951 = vunpack.c.l.b16 %v859
      %v952 = vpack.c.b16 %v951, %v951
      %953 = vrot.lane.b32.xlu0 %v952, 80
      %v954 = vpop.permute.xlu0 %953
      %v956 = vunpack.c.l.b16 %v827
      %v957 = vpack.c.b16 %v956, %v956
      %958 = vrot.lane.b32.xlu0 %v957, 96
      %v959 = vpop.permute.xlu0 %958
      %v961 = vunpack.c.l.b16 %v861
      %v962 = vpack.c.b16 %v961, %v961
      %963 = vrot.lane.b32.xlu0 %v962, 112
      %v964 = vpop.permute.xlu0 %963
      %v966 = vunpack.c.l.b16 %v920
      %v967 = vpack.c.b16 %v966, %v966
      %968 = vrot.lane.b32.xlu0 %v967, 16
      %v969 = vpop.permute.xlu0 %968
      %v971 = vunpack.c.l.b16 %v894
      %v972 = vpack.c.b16 %v971, %v971
      %973 = vrot.lane.b32.xlu0 %v972, 32
      %v974 = vpop.permute.xlu0 %973
      %v976 = vunpack.c.l.b16 %v928
      %v977 = vpack.c.b16 %v976, %v976
      %978 = vrot.lane.b32.xlu0 %v977, 48
      %v979 = vpop.permute.xlu0 %978
      %v981 = vunpack.c.l.b16 %v893
      %v982 = vpack.c.b16 %v981, %v981
      %983 = vrot.lane.b32.xlu0 %v982, 64
      %v984 = vpop.permute.xlu0 %983
      %v986 = vunpack.c.l.b16 %v927
      %v987 = vpack.c.b16 %v986, %v986
      %988 = vrot.lane.b32.xlu0 %v987, 80
      %v989 = vpop.permute.xlu0 %988
      %v991 = vunpack.c.l.b16 %v895
      %v992 = vpack.c.b16 %v991, %v991
      %993 = vrot.lane.b32.xlu0 %v992, 96
      %v994 = vpop.permute.xlu0 %993
      %v996 = vunpack.c.l.b16 %v929
      %v997 = vpack.c.b16 %v996, %v996
      %998 = vrot.lane.b32.xlu0 %v997, 112
      %v999 = vpop.permute.xlu0 %998
      %v1002 = vsel %vm433, %v818, %v934
      %v1004 = vsel %vm437, %v1002, %v939
      %v1006 = vsel %vm440, %v1004, %v944
      %v1008 = vsel %vm443, %v1006, %v949
      %v1010 = vsel %vm446, %v1008, %v954
      %v1012 = vsel %vm449, %v1010, %v959
      %v1014 = vsel %vm452, %v1012, %v964
      %v1017 = vsel %vm433, %v886, %v969
      %v1019 = vsel %vm437, %v1017, %v974
      %v1021 = vsel %vm440, %v1019, %v979
      %v1023 = vsel %vm443, %v1021, %v984
      %v1025 = vsel %vm446, %v1023, %v989
      %v1027 = vsel %vm449, %v1025, %v994
      %v1029 = vsel %vm452, %v1027, %v999
      %v1030 = vld [vmem:[%s183 + $0x8] sm:$0x1]
      %v1031 = vld [vmem:[%s183 + $0x14] sm:$0x1]
      %v1032 = vld [vmem:[%s183 + $0x20] sm:$0x1]
      %v1033 = vld [vmem:[%s183 + $0x2c] sm:$0x1]
      %vm1034 = vsmask.f32 3328
      %vm1035 = vsmask.f32 7440
      %vm1036 = vmor %vm1034, %vm1035
      %v1038 = vrot.slane %v206, 4
      %v1039 = vshll.u32 %v195, 16
      %v1041 = vrot.slane %v1039, 5
      %v1042 = vor.u32 %v1038, %v1041
      %v1043 = vrot.slane %v1042, 4
      %v1044 = vshll.u32 %v196, 16
      %v1046 = vrot.slane %v1044, 5
      %v1047 = vsel %vm1036, %v1043, %v1046
      %v1049 = vrot.slane %v218, 4
      %v1050 = vor.u32 %v1049, %v1046
      %v1051 = vrot.slane %v1050, 4
      %v1053 = vshll.u32 %v1030, 16
      %v1055 = vrot.slane %v1053, 5
      %v1056 = vsel %vm1036, %v1051, %v1055
      %v1058 = vrot.slane %v207, 4
      %v1059 = vshll.u32 %v197, 16
      %v1061 = vrot.slane %v1059, 5
      %v1062 = vor.u32 %v1058, %v1061
      %v1063 = vrot.slane %v1062, 4
      %v1064 = vshll.u32 %v198, 16
      %v1066 = vrot.slane %v1064, 5
      %v1067 = vsel %vm1036, %v1063, %v1066
      %v1069 = vrot.slane %v219, 4
      %v1070 = vor.u32 %v1069, %v1066
      %v1071 = vrot.slane %v1070, 4
      %v1073 = vshll.u32 %v1031, 16
      %v1075 = vrot.slane %v1073, 5
      %v1076 = vsel %vm1036, %v1071, %v1075
      %v1078 = vrot.slane %v212, 4
      %v1079 = vshll.u32 %v199, 16
      %v1081 = vrot.slane %v1079, 5
      %v1082 = vor.u32 %v1078, %v1081
      %v1083 = vrot.slane %v1082, 4
      %v1084 = vshll.u32 %v200, 16
      %v1086 = vrot.slane %v1084, 5
      %v1087 = vsel %vm1036, %v1083, %v1086
      %v1089 = vrot.slane %v224, 4
      %v1090 = vor.u32 %v1089, %v1086
      %v1091 = vrot.slane %v1090, 4
      %v1093 = vshll.u32 %v1032, 16
      %v1095 = vrot.slane %v1093, 5
      %v1096 = vsel %vm1036, %v1091, %v1095
      %v1098 = vrot.slane %v213, 4
      %v1099 = vshll.u32 %v201, 16
      %v1101 = vrot.slane %v1099, 5
      %v1102 = vor.u32 %v1098, %v1101
      %v1103 = vrot.slane %v1102, 4
      %v1104 = vshll.u32 %v202, 16
      %v1106 = vrot.slane %v1104, 5
      %v1107 = vsel %vm1036, %v1103, %v1106
      %v1109 = vrot.slane %v225, 4
      %v1110 = vor.u32 %v1109, %v1106
      %v1111 = vrot.slane %v1110, 4
      %v1113 = vshll.u32 %v1033, 16
      %v1115 = vrot.slane %v1113, 5
      %v1116 = vsel %vm1036, %v1111, %v1115
      %v1119 = vpack.i.b16 %v1067, %v1047
      %v1120 = vshrl.u32 %v1047, 16
      %v1121 = vshrl.u32 %v1067, 16
      %v1122 = vpack.i.b16 %v1121, %v1120
      %v1125 = vpack.i.b16 %v1107, %v1087
      %v1126 = vshrl.u32 %v1087, 16
      %v1127 = vshrl.u32 %v1107, 16
      %v1128 = vpack.i.b16 %v1127, %v1126
      %v1131 = vpack.i.b16 %v1076, %v1056
      %v1132 = vshrl.u32 %v1056, 16
      %v1133 = vshrl.u32 %v1076, 16
      %v1134 = vpack.i.b16 %v1133, %v1132
      %v1137 = vpack.i.b16 %v1116, %v1096
      %v1138 = vshrl.u32 %v1096, 16
      %v1139 = vshrl.u32 %v1116, 16
      %v1140 = vpack.i.b16 %v1139, %v1138
      %v1143 = vunpack.c.l.s4 1983009808
      %v1144 = vunpack.c.0.s8 %v1143
      %v1145 = vlaneseq
      %v1146 = vshrl.u32 %v1145, 7
      %v1147 = vsub.s32 %v1144, %v1146
      %v1148 = vrot.slane %v1119, %v1147
      %v1151 = vunpack.c.l.s4 1983009808
      %v1152 = vunpack.c.0.s8 %v1151
      %v1153 = vlaneseq
      %v1154 = vshrl.u32 %v1153, 7
      %v1155 = vsub.s32 %v1152, %v1154
      %v1156 = vrot.slane %v1125, %v1155
      %v1157 = vcombine.low %v1148, %v1156
      %v1158 = vcombine.high %v1148, %v1156
      %v1160 = vunpack.c.l.s4 1934713408
      %v1161 = vunpack.c.0.s8 %v1160
      %v1162 = vlaneseq
      %v1163 = vshrl.u32 %v1162, 7
      %v1164 = vsub.s32 %v1161, %v1163
      %v1165 = vrot.slane %v1157, %v1164
      %v1167 = vunpack.c.l.s4 1934713408
      %v1168 = vunpack.c.0.s8 %v1167
      %v1169 = vlaneseq
      %v1170 = vshrl.u32 %v1169, 7
      %v1171 = vsub.s32 %v1168, %v1170
      %v1172 = vrot.slane %v1158, %v1171
      %v1173 = vcombine.high %v1165, 0
      %v1174 = vcombine.high %v1172, 0
      %v1177 = vunpack.c.l.s4 1983009808
      %v1178 = vunpack.c.0.s8 %v1177
      %v1179 = vlaneseq
      %v1180 = vshrl.u32 %v1179, 7
      %v1181 = vsub.s32 %v1178, %v1180
      %v1182 = vrot.slane %v1122, %v1181
      %v1185 = vunpack.c.l.s4 1983009808
      %v1186 = vunpack.c.0.s8 %v1185
      %v1187 = vlaneseq
      %v1188 = vshrl.u32 %v1187, 7
      %v1189 = vsub.s32 %v1186, %v1188
      %v1190 = vrot.slane %v1128, %v1189
      %v1191 = vcombine.low %v1182, %v1190
      %v1192 = vcombine.high %v1182, %v1190
      %v1194 = vunpack.c.l.s4 1934713408
      %v1195 = vunpack.c.0.s8 %v1194
      %v1196 = vlaneseq
      %v1197 = vshrl.u32 %v1196, 7
      %v1198 = vsub.s32 %v1195, %v1197
      %v1199 = vrot.slane %v1191, %v1198
      %v1201 = vunpack.c.l.s4 1934713408
      %v1202 = vunpack.c.0.s8 %v1201
      %v1203 = vlaneseq
      %v1204 = vshrl.u32 %v1203, 7
      %v1205 = vsub.s32 %v1202, %v1204
      %v1206 = vrot.slane %v1192, %v1205
      %v1207 = vcombine.high %v1199, 0
      %v1208 = vcombine.high %v1206, 0
      %v1211 = vunpack.c.l.s4 1983009808
      %v1212 = vunpack.c.0.s8 %v1211
      %v1213 = vlaneseq
      %v1214 = vshrl.u32 %v1213, 7
      %v1215 = vsub.s32 %v1212, %v1214
      %v1216 = vrot.slane %v1131, %v1215
      %v1219 = vunpack.c.l.s4 1983009808
      %v1220 = vunpack.c.0.s8 %v1219
      %v1221 = vlaneseq
      %v1222 = vshrl.u32 %v1221, 7
      %v1223 = vsub.s32 %v1220, %v1222
      %v1224 = vrot.slane %v1137, %v1223
      %v1225 = vcombine.low %v1216, %v1224
      %v1226 = vcombine.high %v1216, %v1224
      %v1228 = vunpack.c.l.s4 1934713408
      %v1229 = vunpack.c.0.s8 %v1228
      %v1230 = vlaneseq
      %v1231 = vshrl.u32 %v1230, 7
      %v1232 = vsub.s32 %v1229, %v1231
      %v1233 = vrot.slane %v1225, %v1232
      %v1235 = vunpack.c.l.s4 1934713408
      %v1236 = vunpack.c.0.s8 %v1235
      %v1237 = vlaneseq
      %v1238 = vshrl.u32 %v1237, 7
      %v1239 = vsub.s32 %v1236, %v1238
      %v1240 = vrot.slane %v1226, %v1239
      %v1241 = vcombine.high %v1233, 0
      %v1242 = vcombine.high %v1240, 0
      %v1245 = vunpack.c.l.s4 1983009808
      %v1246 = vunpack.c.0.s8 %v1245
      %v1247 = vlaneseq
      %v1248 = vshrl.u32 %v1247, 7
      %v1249 = vsub.s32 %v1246, %v1248
      %v1250 = vrot.slane %v1134, %v1249
      %v1253 = vunpack.c.l.s4 1983009808
      %v1254 = vunpack.c.0.s8 %v1253
      %v1255 = vlaneseq
      %v1256 = vshrl.u32 %v1255, 7
      %v1257 = vsub.s32 %v1254, %v1256
      %v1258 = vrot.slane %v1140, %v1257
      %v1259 = vcombine.low %v1250, %v1258
      %v1260 = vcombine.high %v1250, %v1258
      %v1262 = vunpack.c.l.s4 1934713408
      %v1263 = vunpack.c.0.s8 %v1262
      %v1264 = vlaneseq
      %v1265 = vshrl.u32 %v1264, 7
      %v1266 = vsub.s32 %v1263, %v1265
      %v1267 = vrot.slane %v1259, %v1266
      %v1269 = vunpack.c.l.s4 1934713408
      %v1270 = vunpack.c.0.s8 %v1269
      %v1271 = vlaneseq
      %v1272 = vshrl.u32 %v1271, 7
      %v1273 = vsub.s32 %v1270, %v1272
      %v1274 = vrot.slane %v1260, %v1273
      %v1275 = vcombine.high %v1267, 0
      %v1276 = vcombine.high %v1274, 0
      %v1278 = vunpack.c.l.b16 %v1199
      %v1279 = vpack.c.b16 %v1278, %v1278
      %1280 = vrot.lane.b32.xlu0 %v1279, 16
      %v1281 = vpop.permute.xlu0 %1280
      %v1283 = vunpack.c.l.b16 %v1173
      %v1284 = vpack.c.b16 %v1283, %v1283
      %1285 = vrot.lane.b32.xlu0 %v1284, 32
      %v1286 = vpop.permute.xlu0 %1285
      %v1288 = vunpack.c.l.b16 %v1207
      %v1289 = vpack.c.b16 %v1288, %v1288
      %1290 = vrot.lane.b32.xlu0 %v1289, 48
      %v1291 = vpop.permute.xlu0 %1290
      %v1293 = vunpack.c.l.b16 %v1172
      %v1294 = vpack.c.b16 %v1293, %v1293
      %1295 = vrot.lane.b32.xlu0 %v1294, 64
      %v1296 = vpop.permute.xlu0 %1295
      %v1298 = vunpack.c.l.b16 %v1206
      %v1299 = vpack.c.b16 %v1298, %v1298
      %1300 = vrot.lane.b32.xlu0 %v1299, 80
      %v1301 = vpop.permute.xlu0 %1300
      %v1303 = vunpack.c.l.b16 %v1174
      %v1304 = vpack.c.b16 %v1303, %v1303
      %1305 = vrot.lane.b32.xlu0 %v1304, 96
      %v1306 = vpop.permute.xlu0 %1305
      %v1308 = vunpack.c.l.b16 %v1208
      %v1309 = vpack.c.b16 %v1308, %v1308
      %1310 = vrot.lane.b32.xlu0 %v1309, 112
      %v1311 = vpop.permute.xlu0 %1310
      %v1313 = vunpack.c.l.b16 %v1267
      %v1314 = vpack.c.b16 %v1313, %v1313
      %1315 = vrot.lane.b32.xlu0 %v1314, 16
      %v1316 = vpop.permute.xlu0 %1315
      %v1318 = vunpack.c.l.b16 %v1241
      %v1319 = vpack.c.b16 %v1318, %v1318
      %1320 = vrot.lane.b32.xlu0 %v1319, 32
      %v1321 = vpop.permute.xlu0 %1320
      %v1323 = vunpack.c.l.b16 %v1275
      %v1324 = vpack.c.b16 %v1323, %v1323
      %1325 = vrot.lane.b32.xlu0 %v1324, 48
      %v1326 = vpop.permute.xlu0 %1325
      %v1328 = vunpack.c.l.b16 %v1240
      %v1329 = vpack.c.b16 %v1328, %v1328
      %1330 = vrot.lane.b32.xlu0 %v1329, 64
      %v1331 = vpop.permute.xlu0 %1330
      %v1333 = vunpack.c.l.b16 %v1274
      %v1334 = vpack.c.b16 %v1333, %v1333
      %1335 = vrot.lane.b32.xlu0 %v1334, 80
      %v1336 = vpop.permute.xlu0 %1335
      %v1338 = vunpack.c.l.b16 %v1242
      %v1339 = vpack.c.b16 %v1338, %v1338
      %1340 = vrot.lane.b32.xlu0 %v1339, 96
      %v1341 = vpop.permute.xlu0 %1340
      %v1343 = vunpack.c.l.b16 %v1276
      %v1344 = vpack.c.b16 %v1343, %v1343
      %1345 = vrot.lane.b32.xlu0 %v1344, 112
      %v1346 = vpop.permute.xlu0 %1345
      %v1349 = vsel %vm433, %v1165, %v1281
      %v1351 = vsel %vm437, %v1349, %v1286
      %v1353 = vsel %vm440, %v1351, %v1291
      %v1355 = vsel %vm443, %v1353, %v1296
      %v1357 = vsel %vm446, %v1355, %v1301
      %v1359 = vsel %vm449, %v1357, %v1306
      %v1361 = vsel %vm452, %v1359, %v1311
      %v1364 = vsel %vm433, %v1233, %v1316
      %v1366 = vsel %vm437, %v1364, %v1321
      %v1368 = vsel %vm440, %v1366, %v1326
      %v1370 = vsel %vm443, %v1368, %v1331
      %v1372 = vsel %vm446, %v1370, %v1336
      %v1374 = vsel %vm449, %v1372, %v1341
      %v1376 = vsel %vm452, %v1374, %v1346
      %1377 = vrot.lane.b32.xlu0 %v1047, 127
      %v1378 = vpop.permute.xlu0 %1377
      %1379 = vrot.lane.b32.xlu0 %v1056, 127
      %v1380 = vpop.permute.xlu0 %1379
      %1381 = vrot.lane.b32.xlu0 %v1067, 127
      %v1382 = vpop.permute.xlu0 %1381
      %1383 = vrot.lane.b32.xlu0 %v1076, 127
      %v1384 = vpop.permute.xlu0 %1383
      %1385 = vrot.lane.b32.xlu0 %v1087, 127
      %v1386 = vpop.permute.xlu0 %1385
      %1387 = vrot.lane.b32.xlu0 %v1096, 127
      %v1388 = vpop.permute.xlu0 %1387
      %1389 = vrot.lane.b32.xlu0 %v1107, 127
      %v1390 = vpop.permute.xlu0 %1389
      %1391 = vrot.lane.b32.xlu0 %v1116, 127
      %v1392 = vpop.permute.xlu0 %1391
      %v1395 = vpack.i.b16 %v1382, %v1378
      %v1396 = vshrl.u32 %v1378, 16
      %v1397 = vshrl.u32 %v1382, 16
      %v1398 = vpack.i.b16 %v1397, %v1396
      %v1401 = vpack.i.b16 %v1390, %v1386
      %v1402 = vshrl.u32 %v1386, 16
      %v1403 = vshrl.u32 %v1390, 16
      %v1404 = vpack.i.b16 %v1403, %v1402
      %v1407 = vpack.i.b16 %v1384, %v1380
      %v1408 = vshrl.u32 %v1380, 16
      %v1409 = vshrl.u32 %v1384, 16
      %v1410 = vpack.i.b16 %v1409, %v1408
      %v1413 = vpack.i.b16 %v1392, %v1388
      %v1414 = vshrl.u32 %v1388, 16
      %v1415 = vshrl.u32 %v1392, 16
      %v1416 = vpack.i.b16 %v1415, %v1414
      %v1419 = vunpack.c.l.s4 1983009808
      %v1420 = vunpack.c.0.s8 %v1419
      %v1421 = vlaneseq
      %v1422 = vshrl.u32 %v1421, 7
      %v1423 = vsub.s32 %v1420, %v1422
      %v1424 = vrot.slane %v1395, %v1423
      %v1427 = vunpack.c.l.s4 1983009808
      %v1428 = vunpack.c.0.s8 %v1427
      %v1429 = vlaneseq
      %v1430 = vshrl.u32 %v1429, 7
      %v1431 = vsub.s32 %v1428, %v1430
      %v1432 = vrot.slane %v1401, %v1431
      %v1433 = vcombine.low %v1424, %v1432
      %v1434 = vcombine.high %v1424, %v1432
      %v1436 = vunpack.c.l.s4 1934713408
      %v1437 = vunpack.c.0.s8 %v1436
      %v1438 = vlaneseq
      %v1439 = vshrl.u32 %v1438, 7
      %v1440 = vsub.s32 %v1437, %v1439
      %v1441 = vrot.slane %v1433, %v1440
      %v1443 = vunpack.c.l.s4 1934713408
      %v1444 = vunpack.c.0.s8 %v1443
      %v1445 = vlaneseq
      %v1446 = vshrl.u32 %v1445, 7
      %v1447 = vsub.s32 %v1444, %v1446
      %v1448 = vrot.slane %v1434, %v1447
      %v1449 = vcombine.high %v1441, 0
      %v1450 = vcombine.high %v1448, 0
      %v1453 = vunpack.c.l.s4 1983009808
      %v1454 = vunpack.c.0.s8 %v1453
      %v1455 = vlaneseq
      %v1456 = vshrl.u32 %v1455, 7
      %v1457 = vsub.s32 %v1454, %v1456
      %v1458 = vrot.slane %v1398, %v1457
      %v1461 = vunpack.c.l.s4 1983009808
      %v1462 = vunpack.c.0.s8 %v1461
      %v1463 = vlaneseq
      %v1464 = vshrl.u32 %v1463, 7
      %v1465 = vsub.s32 %v1462, %v1464
      %v1466 = vrot.slane %v1404, %v1465
      %v1467 = vcombine.low %v1458, %v1466
      %v1468 = vcombine.high %v1458, %v1466
      %v1470 = vunpack.c.l.s4 1934713408
      %v1471 = vunpack.c.0.s8 %v1470
      %v1472 = vlaneseq
      %v1473 = vshrl.u32 %v1472, 7
      %v1474 = vsub.s32 %v1471, %v1473
      %v1475 = vrot.slane %v1467, %v1474
      %v1477 = vunpack.c.l.s4 1934713408
      %v1478 = vunpack.c.0.s8 %v1477
      %v1479 = vlaneseq
      %v1480 = vshrl.u32 %v1479, 7
      %v1481 = vsub.s32 %v1478, %v1480
      %v1482 = vrot.slane %v1468, %v1481
      %v1483 = vcombine.high %v1475, 0
      %v1484 = vcombine.high %v1482, 0
      %v1487 = vunpack.c.l.s4 1983009808
      %v1488 = vunpack.c.0.s8 %v1487
      %v1489 = vlaneseq
      %v1490 = vshrl.u32 %v1489, 7
      %v1491 = vsub.s32 %v1488, %v1490
      %v1492 = vrot.slane %v1407, %v1491
      %v1495 = vunpack.c.l.s4 1983009808
      %v1496 = vunpack.c.0.s8 %v1495
      %v1497 = vlaneseq
      %v1498 = vshrl.u32 %v1497, 7
      %v1499 = vsub.s32 %v1496, %v1498
      %v1500 = vrot.slane %v1413, %v1499
      %v1501 = vcombine.low %v1492, %v1500
      %v1502 = vcombine.high %v1492, %v1500
      %v1504 = vunpack.c.l.s4 1934713408
      %v1505 = vunpack.c.0.s8 %v1504
      %v1506 = vlaneseq
      %v1507 = vshrl.u32 %v1506, 7
      %v1508 = vsub.s32 %v1505, %v1507
      %v1509 = vrot.slane %v1501, %v1508
      %v1511 = vunpack.c.l.s4 1934713408
      %v1512 = vunpack.c.0.s8 %v1511
      %v1513 = vlaneseq
      %v1514 = vshrl.u32 %v1513, 7
      %v1515 = vsub.s32 %v1512, %v1514
      %v1516 = vrot.slane %v1502, %v1515
      %v1517 = vcombine.high %v1509, 0
      %v1518 = vcombine.high %v1516, 0
      %v1521 = vunpack.c.l.s4 1983009808
      %v1522 = vunpack.c.0.s8 %v1521
      %v1523 = vlaneseq
      %v1524 = vshrl.u32 %v1523, 7
      %v1525 = vsub.s32 %v1522, %v1524
      %v1526 = vrot.slane %v1410, %v1525
      %v1529 = vunpack.c.l.s4 1983009808
      %v1530 = vunpack.c.0.s8 %v1529
      %v1531 = vlaneseq
      %v1532 = vshrl.u32 %v1531, 7
      %v1533 = vsub.s32 %v1530, %v1532
      %v1534 = vrot.slane %v1416, %v1533
      %v1535 = vcombine.low %v1526, %v1534
      %v1536 = vcombine.high %v1526, %v1534
      %v1538 = vunpack.c.l.s4 1934713408
      %v1539 = vunpack.c.0.s8 %v1538
      %v1540 = vlaneseq
      %v1541 = vshrl.u32 %v1540, 7
      %v1542 = vsub.s32 %v1539, %v1541
      %v1543 = vrot.slane %v1535, %v1542
      %v1545 = vunpack.c.l.s4 1934713408
      %v1546 = vunpack.c.0.s8 %v1545
      %v1547 = vlaneseq
      %v1548 = vshrl.u32 %v1547, 7
      %v1549 = vsub.s32 %v1546, %v1548
      %v1550 = vrot.slane %v1536, %v1549
      %v1551 = vcombine.high %v1543, 0
      %v1552 = vcombine.high %v1550, 0
      %v1554 = vunpack.c.l.b16 %v1475
      %v1555 = vpack.c.b16 %v1554, %v1554
      %1556 = vrot.lane.b32.xlu0 %v1555, 16
      %v1557 = vpop.permute.xlu0 %1556
      %v1559 = vunpack.c.l.b16 %v1449
      %v1560 = vpack.c.b16 %v1559, %v1559
      %1561 = vrot.lane.b32.xlu0 %v1560, 32
      %v1562 = vpop.permute.xlu0 %1561
      %v1564 = vunpack.c.l.b16 %v1483
      %v1565 = vpack.c.b16 %v1564, %v1564
      %1566 = vrot.lane.b32.xlu0 %v1565, 48
      %v1567 = vpop.permute.xlu0 %1566
      %v1569 = vunpack.c.l.b16 %v1448
      %v1570 = vpack.c.b16 %v1569, %v1569
      %1571 = vrot.lane.b32.xlu0 %v1570, 64
      %v1572 = vpop.permute.xlu0 %1571
      %v1574 = vunpack.c.l.b16 %v1482
      %v1575 = vpack.c.b16 %v1574, %v1574
      %1576 = vrot.lane.b32.xlu0 %v1575, 80
      %v1577 = vpop.permute.xlu0 %1576
      %v1579 = vunpack.c.l.b16 %v1450
      %v1580 = vpack.c.b16 %v1579, %v1579
      %1581 = vrot.lane.b32.xlu0 %v1580, 96
      %v1582 = vpop.permute.xlu0 %1581
      %v1584 = vunpack.c.l.b16 %v1484
      %v1585 = vpack.c.b16 %v1584, %v1584
      %1586 = vrot.lane.b32.xlu0 %v1585, 112
      %v1587 = vpop.permute.xlu0 %1586
      %v1589 = vunpack.c.l.b16 %v1543
      %v1590 = vpack.c.b16 %v1589, %v1589
      %1591 = vrot.lane.b32.xlu0 %v1590, 16
      %v1592 = vpop.permute.xlu0 %1591
      %v1594 = vunpack.c.l.b16 %v1517
      %v1595 = vpack.c.b16 %v1594, %v1594
      %1596 = vrot.lane.b32.xlu0 %v1595, 32
      %v1597 = vpop.permute.xlu0 %1596
      %v1599 = vunpack.c.l.b16 %v1551
      %v1600 = vpack.c.b16 %v1599, %v1599
      %1601 = vrot.lane.b32.xlu0 %v1600, 48
      %v1602 = vpop.permute.xlu0 %1601
      %v1604 = vunpack.c.l.b16 %v1516
      %v1605 = vpack.c.b16 %v1604, %v1604
      %1606 = vrot.lane.b32.xlu0 %v1605, 64
      %v1607 = vpop.permute.xlu0 %1606
      %v1609 = vunpack.c.l.b16 %v1550
      %v1610 = vpack.c.b16 %v1609, %v1609
      %1611 = vrot.lane.b32.xlu0 %v1610, 80
      %v1612 = vpop.permute.xlu0 %1611
      %v1614 = vunpack.c.l.b16 %v1518
      %v1615 = vpack.c.b16 %v1614, %v1614
      %1616 = vrot.lane.b32.xlu0 %v1615, 96
      %v1617 = vpop.permute.xlu0 %1616
      %v1619 = vunpack.c.l.b16 %v1552
      %v1620 = vpack.c.b16 %v1619, %v1619
      %1621 = vrot.lane.b32.xlu0 %v1620, 112
      %v1622 = vpop.permute.xlu0 %1621
      %v1625 = vsel %vm433, %v1441, %v1557
      %v1627 = vsel %vm437, %v1625, %v1562
      %v1629 = vsel %vm440, %v1627, %v1567
      %v1631 = vsel %vm443, %v1629, %v1572
      %v1633 = vsel %vm446, %v1631, %v1577
      %v1635 = vsel %vm449, %v1633, %v1582
      %v1637 = vsel %vm452, %v1635, %v1587
      %v1640 = vsel %vm433, %v1509, %v1592
      %v1642 = vsel %vm437, %v1640, %v1597
      %v1644 = vsel %vm440, %v1642, %v1602
      %v1646 = vsel %vm443, %v1644, %v1607
      %v1648 = vsel %vm446, %v1646, %v1612
      %v1650 = vsel %vm449, %v1648, %v1617
      %v1652 = vsel %vm452, %v1650, %v1622
      %1653 = vrot.lane.b32.xlu0 %v1047, 126
      %v1654 = vpop.permute.xlu0 %1653
      %1655 = vrot.lane.b32.xlu0 %v1056, 126
      %v1656 = vpop.permute.xlu0 %1655
      %1657 = vrot.lane.b32.xlu0 %v1067, 126
      %v1658 = vpop.permute.xlu0 %1657
      %1659 = vrot.lane.b32.xlu0 %v1076, 126
      %v1660 = vpop.permute.xlu0 %1659
      %1661 = vrot.lane.b32.xlu0 %v1087, 126
      %v1662 = vpop.permute.xlu0 %1661
      %1663 = vrot.lane.b32.xlu0 %v1096, 126
      %v1664 = vpop.permute.xlu0 %1663
      %1665 = vrot.lane.b32.xlu0 %v1107, 126
      %v1666 = vpop.permute.xlu0 %1665
      %1667 = vrot.lane.b32.xlu0 %v1116, 126
      %v1668 = vpop.permute.xlu0 %1667
      %v1671 = vpack.i.b16 %v1658, %v1654
      %v1672 = vshrl.u32 %v1654, 16
      %v1673 = vshrl.u32 %v1658, 16
      %v1674 = vpack.i.b16 %v1673, %v1672
      %v1677 = vpack.i.b16 %v1666, %v1662
      %v1678 = vshrl.u32 %v1662, 16
      %v1679 = vshrl.u32 %v1666, 16
      %v1680 = vpack.i.b16 %v1679, %v1678
      %v1683 = vpack.i.b16 %v1660, %v1656
      %v1684 = vshrl.u32 %v1656, 16
      %v1685 = vshrl.u32 %v1660, 16
      %v1686 = vpack.i.b16 %v1685, %v1684
      %v1689 = vpack.i.b16 %v1668, %v1664
      %v1690 = vshrl.u32 %v1664, 16
      %v1691 = vshrl.u32 %v1668, 16
      %v1692 = vpack.i.b16 %v1691, %v1690
      %v1695 = vunpack.c.l.s4 1983009808
      %v1696 = vunpack.c.0.s8 %v1695
      %v1697 = vlaneseq
      %v1698 = vshrl.u32 %v1697, 7
      %v1699 = vsub.s32 %v1696, %v1698
      %v1700 = vrot.slane %v1671, %v1699
      %v1703 = vunpack.c.l.s4 1983009808
      %v1704 = vunpack.c.0.s8 %v1703
      %v1705 = vlaneseq
      %v1706 = vshrl.u32 %v1705, 7
      %v1707 = vsub.s32 %v1704, %v1706
      %v1708 = vrot.slane %v1677, %v1707
      %v1709 = vcombine.low %v1700, %v1708
      %v1710 = vcombine.high %v1700, %v1708
      %v1712 = vunpack.c.l.s4 1934713408
      %v1713 = vunpack.c.0.s8 %v1712
      %v1714 = vlaneseq
      %v1715 = vshrl.u32 %v1714, 7
      %v1716 = vsub.s32 %v1713, %v1715
      %v1717 = vrot.slane %v1709, %v1716
      %v1719 = vunpack.c.l.s4 1934713408
      %v1720 = vunpack.c.0.s8 %v1719
      %v1721 = vlaneseq
      %v1722 = vshrl.u32 %v1721, 7
      %v1723 = vsub.s32 %v1720, %v1722
      %v1724 = vrot.slane %v1710, %v1723
      %v1725 = vcombine.high %v1717, 0
      %v1726 = vcombine.high %v1724, 0
      %v1729 = vunpack.c.l.s4 1983009808
      %v1730 = vunpack.c.0.s8 %v1729
      %v1731 = vlaneseq
      %v1732 = vshrl.u32 %v1731, 7
      %v1733 = vsub.s32 %v1730, %v1732
      %v1734 = vrot.slane %v1674, %v1733
      %v1737 = vunpack.c.l.s4 1983009808
      %v1738 = vunpack.c.0.s8 %v1737
      %v1739 = vlaneseq
      %v1740 = vshrl.u32 %v1739, 7
      %v1741 = vsub.s32 %v1738, %v1740
      %v1742 = vrot.slane %v1680, %v1741
      %v1743 = vcombine.low %v1734, %v1742
      %v1744 = vcombine.high %v1734, %v1742
      %v1746 = vunpack.c.l.s4 1934713408
      %v1747 = vunpack.c.0.s8 %v1746
      %v1748 = vlaneseq
      %v1749 = vshrl.u32 %v1748, 7
      %v1750 = vsub.s32 %v1747, %v1749
      %v1751 = vrot.slane %v1743, %v1750
      %v1753 = vunpack.c.l.s4 1934713408
      %v1754 = vunpack.c.0.s8 %v1753
      %v1755 = vlaneseq
      %v1756 = vshrl.u32 %v1755, 7
      %v1757 = vsub.s32 %v1754, %v1756
      %v1758 = vrot.slane %v1744, %v1757
      %v1759 = vcombine.high %v1751, 0
      %v1760 = vcombine.high %v1758, 0
      %v1763 = vunpack.c.l.s4 1983009808
      %v1764 = vunpack.c.0.s8 %v1763
      %v1765 = vlaneseq
      %v1766 = vshrl.u32 %v1765, 7
      %v1767 = vsub.s32 %v1764, %v1766
      %v1768 = vrot.slane %v1683, %v1767
      %v1771 = vunpack.c.l.s4 1983009808
      %v1772 = vunpack.c.0.s8 %v1771
      %v1773 = vlaneseq
      %v1774 = vshrl.u32 %v1773, 7
      %v1775 = vsub.s32 %v1772, %v1774
      %v1776 = vrot.slane %v1689, %v1775
      %v1777 = vcombine.low %v1768, %v1776
      %v1778 = vcombine.high %v1768, %v1776
      %v1780 = vunpack.c.l.s4 1934713408
      %v1781 = vunpack.c.0.s8 %v1780
      %v1782 = vlaneseq
      %v1783 = vshrl.u32 %v1782, 7
      %v1784 = vsub.s32 %v1781, %v1783
      %v1785 = vrot.slane %v1777, %v1784
      %v1787 = vunpack.c.l.s4 1934713408
      %v1788 = vunpack.c.0.s8 %v1787
      %v1789 = vlaneseq
      %v1790 = vshrl.u32 %v1789, 7
      %v1791 = vsub.s32 %v1788, %v1790
      %v1792 = vrot.slane %v1778, %v1791
      %v1793 = vcombine.high %v1785, 0
      %v1794 = vcombine.high %v1792, 0
      %v1797 = vunpack.c.l.s4 1983009808
      %v1798 = vunpack.c.0.s8 %v1797
      %v1799 = vlaneseq
      %v1800 = vshrl.u32 %v1799, 7
      %v1801 = vsub.s32 %v1798, %v1800
      %v1802 = vrot.slane %v1686, %v1801
      %v1805 = vunpack.c.l.s4 1983009808
      %v1806 = vunpack.c.0.s8 %v1805
      %v1807 = vlaneseq
      %v1808 = vshrl.u32 %v1807, 7
      %v1809 = vsub.s32 %v1806, %v1808
      %v1810 = vrot.slane %v1692, %v1809
      %v1811 = vcombine.low %v1802, %v1810
      %v1812 = vcombine.high %v1802, %v1810
      %v1814 = vunpack.c.l.s4 1934713408
      %v1815 = vunpack.c.0.s8 %v1814
      %v1816 = vlaneseq
      %v1817 = vshrl.u32 %v1816, 7
      %v1818 = vsub.s32 %v1815, %v1817
      %v1819 = vrot.slane %v1811, %v1818
      %v1821 = vunpack.c.l.s4 1934713408
      %v1822 = vunpack.c.0.s8 %v1821
      %v1823 = vlaneseq
      %v1824 = vshrl.u32 %v1823, 7
      %v1825 = vsub.s32 %v1822, %v1824
      %v1826 = vrot.slane %v1812, %v1825
      %v1827 = vcombine.high %v1819, 0
      %v1828 = vcombine.high %v1826, 0
      %v1830 = vunpack.c.l.b16 %v1751
      %v1831 = vpack.c.b16 %v1830, %v1830
      %1832 = vrot.lane.b32.xlu0 %v1831, 16
      %v1833 = vpop.permute.xlu0 %1832
      %v1835 = vunpack.c.l.b16 %v1725
      %v1836 = vpack.c.b16 %v1835, %v1835
      %1837 = vrot.lane.b32.xlu0 %v1836, 32
      %v1838 = vpop.permute.xlu0 %1837
      %v1840 = vunpack.c.l.b16 %v1759
      %v1841 = vpack.c.b16 %v1840, %v1840
      %1842 = vrot.lane.b32.xlu0 %v1841, 48
      %v1843 = vpop.permute.xlu0 %1842
      %v1845 = vunpack.c.l.b16 %v1724
      %v1846 = vpack.c.b16 %v1845, %v1845
      %1847 = vrot.lane.b32.xlu0 %v1846, 64
      %v1848 = vpop.permute.xlu0 %1847
      %v1850 = vunpack.c.l.b16 %v1758
      %v1851 = vpack.c.b16 %v1850, %v1850
      %1852 = vrot.lane.b32.xlu0 %v1851, 80
      %v1853 = vpop.permute.xlu0 %1852
      %v1855 = vunpack.c.l.b16 %v1726
      %v1856 = vpack.c.b16 %v1855, %v1855
      %1857 = vrot.lane.b32.xlu0 %v1856, 96
      %v1858 = vpop.permute.xlu0 %1857
      %v1860 = vunpack.c.l.b16 %v1760
      %v1861 = vpack.c.b16 %v1860, %v1860
      %1862 = vrot.lane.b32.xlu0 %v1861, 112
      %v1863 = vpop.permute.xlu0 %1862
      %v1865 = vunpack.c.l.b16 %v1819
      %v1866 = vpack.c.b16 %v1865, %v1865
      %1867 = vrot.lane.b32.xlu0 %v1866, 16
      %v1868 = vpop.permute.xlu0 %1867
      %v1870 = vunpack.c.l.b16 %v1793
      %v1871 = vpack.c.b16 %v1870, %v1870
      %1872 = vrot.lane.b32.xlu0 %v1871, 32
      %v1873 = vpop.permute.xlu0 %1872
      %v1875 = vunpack.c.l.b16 %v1827
      %v1876 = vpack.c.b16 %v1875, %v1875
      %1877 = vrot.lane.b32.xlu0 %v1876, 48
      %v1878 = vpop.permute.xlu0 %1877
      %v1880 = vunpack.c.l.b16 %v1792
      %v1881 = vpack.c.b16 %v1880, %v1880
      %1882 = vrot.lane.b32.xlu0 %v1881, 64
      %v1883 = vpop.permute.xlu0 %1882
      %v1885 = vunpack.c.l.b16 %v1826
      %v1886 = vpack.c.b16 %v1885, %v1885
      %1887 = vrot.lane.b32.xlu0 %v1886, 80
      %v1888 = vpop.permute.xlu0 %1887
      %v1890 = vunpack.c.l.b16 %v1794
      %v1891 = vpack.c.b16 %v1890, %v1890
      %1892 = vrot.lane.b32.xlu0 %v1891, 96
      %v1893 = vpop.permute.xlu0 %1892
      %v1895 = vunpack.c.l.b16 %v1828
      %v1896 = vpack.c.b16 %v1895, %v1895
      %1897 = vrot.lane.b32.xlu0 %v1896, 112
      %v1898 = vpop.permute.xlu0 %1897
      %v1901 = vsel %vm433, %v1717, %v1833
      %v1903 = vsel %vm437, %v1901, %v1838
      %v1905 = vsel %vm440, %v1903, %v1843
      %v1907 = vsel %vm443, %v1905, %v1848
      %v1909 = vsel %vm446, %v1907, %v1853
      %v1911 = vsel %vm449, %v1909, %v1858
      %v1913 = vsel %vm452, %v1911, %v1863
      %v1916 = vsel %vm433, %v1785, %v1868
      %v1918 = vsel %vm437, %v1916, %v1873
      %v1920 = vsel %vm440, %v1918, %v1878
      %v1922 = vsel %vm443, %v1920, %v1883
      %v1924 = vsel %vm446, %v1922, %v1888
      %v1926 = vsel %vm449, %v1924, %v1893
      %v1928 = vsel %vm452, %v1926, %v1898
      %v1929 = vld [vmem:[%s183] sm:$0xe]
      %v1930 = vld [vmem:[%s183 + $0xc] sm:$0xe]
      %v1931 = vld [vmem:[%s183 + $0x18] sm:$0xe]
      %v1932 = vld [vmem:[%s183 + $0x24] sm:$0xe]
      %vm1941 = vcmask 1042432
      %vm1942 = vcmask 1046532
      %vm1943 = vmor %vm1941, %vm1942
      %v1944 = vrot.slane %v1929, 5
      %v1945 = vrot.slane %v1944, 4
      %v1946 = vrot.slane %v196, 5
      %v1947 = vsel %vm1943, %v1945, %v1946
      %v1948 = vrot.slane %v1946, 4
      %v1949 = vrot.slane %v1030, 5
      %v1950 = vsel %vm1943, %v1948, %v1949
      %v1951 = vrot.slane %v1930, 5
      %v1952 = vrot.slane %v1951, 4
      %v1953 = vrot.slane %v198, 5
      %v1954 = vsel %vm1943, %v1952, %v1953
      %v1955 = vrot.slane %v1953, 4
      %v1956 = vrot.slane %v1031, 5
      %v1957 = vsel %vm1943, %v1955, %v1956
      %v1958 = vrot.slane %v1931, 5
      %v1959 = vrot.slane %v1958, 4
      %v1960 = vrot.slane %v200, 5
      %v1961 = vsel %vm1943, %v1959, %v1960
      %v1962 = vrot.slane %v1960, 4
      %v1963 = vrot.slane %v1032, 5
      %v1964 = vsel %vm1943, %v1962, %v1963
      %v1965 = vrot.slane %v1932, 5
      %v1966 = vrot.slane %v1965, 4
      %v1967 = vrot.slane %v202, 5
      %v1968 = vsel %vm1943, %v1966, %v1967
      %v1969 = vrot.slane %v1967, 4
      %v1970 = vrot.slane %v1033, 5
      %v1971 = vsel %vm1943, %v1969, %v1970
      %v1974 = vpack.i.b16 %v1954, %v1947
      %v1975 = vshrl.u32 %v1947, 16
      %v1976 = vshrl.u32 %v1954, 16
      %v1977 = vpack.i.b16 %v1976, %v1975
      %v1980 = vpack.i.b16 %v1968, %v1961
      %v1981 = vshrl.u32 %v1961, 16
      %v1982 = vshrl.u32 %v1968, 16
      %v1983 = vpack.i.b16 %v1982, %v1981
      %v1986 = vpack.i.b16 %v1957, %v1950
      %v1987 = vshrl.u32 %v1950, 16
      %v1988 = vshrl.u32 %v1957, 16
      %v1989 = vpack.i.b16 %v1988, %v1987
      %v1992 = vpack.i.b16 %v1971, %v1964
      %v1993 = vshrl.u32 %v1964, 16
      %v1994 = vshrl.u32 %v1971, 16
      %v1995 = vpack.i.b16 %v1994, %v1993
      %v1998 = vunpack.c.l.s4 1983009808
      %v1999 = vunpack.c.0.s8 %v1998
      %v2000 = vlaneseq
      %v2001 = vshrl.u32 %v2000, 7
      %v2002 = vsub.s32 %v1999, %v2001
      %v2003 = vrot.slane %v1974, %v2002
      %v2006 = vunpack.c.l.s4 1983009808
      %v2007 = vunpack.c.0.s8 %v2006
      %v2008 = vlaneseq
      %v2009 = vshrl.u32 %v2008, 7
      %v2010 = vsub.s32 %v2007, %v2009
      %v2011 = vrot.slane %v1980, %v2010
      %v2012 = vcombine.low %v2003, %v2011
      %v2013 = vcombine.high %v2003, %v2011
      %v2015 = vunpack.c.l.s4 1934713408
      %v2016 = vunpack.c.0.s8 %v2015
      %v2017 = vlaneseq
      %v2018 = vshrl.u32 %v2017, 7
      %v2019 = vsub.s32 %v2016, %v2018
      %v2020 = vrot.slane %v2012, %v2019
      %v2022 = vunpack.c.l.s4 1934713408
      %v2023 = vunpack.c.0.s8 %v2022
      %v2024 = vlaneseq
      %v2025 = vshrl.u32 %v2024, 7
      %v2026 = vsub.s32 %v2023, %v2025
      %v2027 = vrot.slane %v2013, %v2026
      %v2028 = vcombine.high %v2020, 0
      %v2029 = vcombine.high %v2027, 0
      %v2032 = vunpack.c.l.s4 1983009808
      %v2033 = vunpack.c.0.s8 %v2032
      %v2034 = vlaneseq
      %v2035 = vshrl.u32 %v2034, 7
      %v2036 = vsub.s32 %v2033, %v2035
      %v2037 = vrot.slane %v1977, %v2036
      %v2040 = vunpack.c.l.s4 1983009808
      %v2041 = vunpack.c.0.s8 %v2040
      %v2042 = vlaneseq
      %v2043 = vshrl.u32 %v2042, 7
      %v2044 = vsub.s32 %v2041, %v2043
      %v2045 = vrot.slane %v1983, %v2044
      %v2046 = vcombine.low %v2037, %v2045
      %v2047 = vcombine.high %v2037, %v2045
      %v2049 = vunpack.c.l.s4 1934713408
      %v2050 = vunpack.c.0.s8 %v2049
      %v2051 = vlaneseq
      %v2052 = vshrl.u32 %v2051, 7
      %v2053 = vsub.s32 %v2050, %v2052
      %v2054 = vrot.slane %v2046, %v2053
      %v2056 = vunpack.c.l.s4 1934713408
      %v2057 = vunpack.c.0.s8 %v2056
      %v2058 = vlaneseq
      %v2059 = vshrl.u32 %v2058, 7
      %v2060 = vsub.s32 %v2057, %v2059
      %v2061 = vrot.slane %v2047, %v2060
      %v2062 = vcombine.high %v2054, 0
      %v2063 = vcombine.high %v2061, 0
      %v2066 = vunpack.c.l.s4 1983009808
      %v2067 = vunpack.c.0.s8 %v2066
      %v2068 = vlaneseq
      %v2069 = vshrl.u32 %v2068, 7
      %v2070 = vsub.s32 %v2067, %v2069
      %v2071 = vrot.slane %v1986, %v2070
      %v2074 = vunpack.c.l.s4 1983009808
      %v2075 = vunpack.c.0.s8 %v2074
      %v2076 = vlaneseq
      %v2077 = vshrl.u32 %v2076, 7
      %v2078 = vsub.s32 %v2075, %v2077
      %v2079 = vrot.slane %v1992, %v2078
      %v2080 = vcombine.low %v2071, %v2079
      %v2081 = vcombine.high %v2071, %v2079
      %v2083 = vunpack.c.l.s4 1934713408
      %v2084 = vunpack.c.0.s8 %v2083
      %v2085 = vlaneseq
      %v2086 = vshrl.u32 %v2085, 7
      %v2087 = vsub.s32 %v2084, %v2086
      %v2088 = vrot.slane %v2080, %v2087
      %v2090 = vunpack.c.l.s4 1934713408
      %v2091 = vunpack.c.0.s8 %v2090
      %v2092 = vlaneseq
      %v2093 = vshrl.u32 %v2092, 7
      %v2094 = vsub.s32 %v2091, %v2093
      %v2095 = vrot.slane %v2081, %v2094
      %v2096 = vcombine.high %v2088, 0
      %v2097 = vcombine.high %v2095, 0
      %v2100 = vunpack.c.l.s4 1983009808
      %v2101 = vunpack.c.0.s8 %v2100
      %v2102 = vlaneseq
      %v2103 = vshrl.u32 %v2102, 7
      %v2104 = vsub.s32 %v2101, %v2103
      %v2105 = vrot.slane %v1989, %v2104
      %v2108 = vunpack.c.l.s4 1983009808
      %v2109 = vunpack.c.0.s8 %v2108
      %v2110 = vlaneseq
      %v2111 = vshrl.u32 %v2110, 7
      %v2112 = vsub.s32 %v2109, %v2111
      %v2113 = vrot.slane %v1995, %v2112
      %v2114 = vcombine.low %v2105, %v2113
      %v2115 = vcombine.high %v2105, %v2113
      %v2117 = vunpack.c.l.s4 1934713408
      %v2118 = vunpack.c.0.s8 %v2117
      %v2119 = vlaneseq
      %v2120 = vshrl.u32 %v2119, 7
      %v2121 = vsub.s32 %v2118, %v2120
      %v2122 = vrot.slane %v2114, %v2121
      %v2124 = vunpack.c.l.s4 1934713408
      %v2125 = vunpack.c.0.s8 %v2124
      %v2126 = vlaneseq
      %v2127 = vshrl.u32 %v2126, 7
      %v2128 = vsub.s32 %v2125, %v2127
      %v2129 = vrot.slane %v2115, %v2128
      %v2130 = vcombine.high %v2122, 0
      %v2131 = vcombine.high %v2129, 0
      %v2133 = vunpack.c.l.b16 %v2054
      %v2134 = vpack.c.b16 %v2133, %v2133
      %2135 = vrot.lane.b32.xlu0 %v2134, 16
      %v2136 = vpop.permute.xlu0 %2135
      %v2138 = vunpack.c.l.b16 %v2028
      %v2139 = vpack.c.b16 %v2138, %v2138
      %2140 = vrot.lane.b32.xlu0 %v2139, 32
      %v2141 = vpop.permute.xlu0 %2140
      %v2143 = vunpack.c.l.b16 %v2062
      %v2144 = vpack.c.b16 %v2143, %v2143
      %2145 = vrot.lane.b32.xlu0 %v2144, 48
      %v2146 = vpop.permute.xlu0 %2145
      %v2148 = vunpack.c.l.b16 %v2027
      %v2149 = vpack.c.b16 %v2148, %v2148
      %2150 = vrot.lane.b32.xlu0 %v2149, 64
      %v2151 = vpop.permute.xlu0 %2150
      %v2153 = vunpack.c.l.b16 %v2061
      %v2154 = vpack.c.b16 %v2153, %v2153
      %2155 = vrot.lane.b32.xlu0 %v2154, 80
      %v2156 = vpop.permute.xlu0 %2155
      %v2158 = vunpack.c.l.b16 %v2029
      %v2159 = vpack.c.b16 %v2158, %v2158
      %2160 = vrot.lane.b32.xlu0 %v2159, 96
      %v2161 = vpop.permute.xlu0 %2160
      %v2163 = vunpack.c.l.b16 %v2063
      %v2164 = vpack.c.b16 %v2163, %v2163
      %2165 = vrot.lane.b32.xlu0 %v2164, 112
      %v2166 = vpop.permute.xlu0 %2165
      %v2168 = vunpack.c.l.b16 %v2122
      %v2169 = vpack.c.b16 %v2168, %v2168
      %2170 = vrot.lane.b32.xlu0 %v2169, 16
      %v2171 = vpop.permute.xlu0 %2170
      %v2173 = vunpack.c.l.b16 %v2096
      %v2174 = vpack.c.b16 %v2173, %v2173
      %2175 = vrot.lane.b32.xlu0 %v2174, 32
      %v2176 = vpop.permute.xlu0 %2175
      %v2178 = vunpack.c.l.b16 %v2130
      %v2179 = vpack.c.b16 %v2178, %v2178
      %2180 = vrot.lane.b32.xlu0 %v2179, 48
      %v2181 = vpop.permute.xlu0 %2180
      %v2183 = vunpack.c.l.b16 %v2095
      %v2184 = vpack.c.b16 %v2183, %v2183
      %2185 = vrot.lane.b32.xlu0 %v2184, 64
      %v2186 = vpop.permute.xlu0 %2185
      %v2188 = vunpack.c.l.b16 %v2129
      %v2189 = vpack.c.b16 %v2188, %v2188
      %2190 = vrot.lane.b32.xlu0 %v2189, 80
      %v2191 = vpop.permute.xlu0 %2190
      %v2193 = vunpack.c.l.b16 %v2097
      %v2194 = vpack.c.b16 %v2193, %v2193
      %2195 = vrot.lane.b32.xlu0 %v2194, 96
      %v2196 = vpop.permute.xlu0 %2195
      %v2198 = vunpack.c.l.b16 %v2131
      %v2199 = vpack.c.b16 %v2198, %v2198
      %2200 = vrot.lane.b32.xlu0 %v2199, 112
      %v2201 = vpop.permute.xlu0 %2200
      %v2204 = vsel %vm433, %v2020, %v2136
      %v2206 = vsel %vm437, %v2204, %v2141
      %v2208 = vsel %vm440, %v2206, %v2146
      %v2210 = vsel %vm443, %v2208, %v2151
      %v2212 = vsel %vm446, %v2210, %v2156
      %v2214 = vsel %vm449, %v2212, %v2161
      %v2216 = vsel %vm452, %v2214, %v2166
      %v2219 = vsel %vm433, %v2088, %v2171
      %v2221 = vsel %vm437, %v2219, %v2176
      %v2223 = vsel %vm440, %v2221, %v2181
      %v2225 = vsel %vm443, %v2223, %v2186
      %v2227 = vsel %vm446, %v2225, %v2191
      %v2229 = vsel %vm449, %v2227, %v2196
      %v2231 = vsel %vm452, %v2229, %v2201
      %2232 = vrot.lane.b32.xlu0 %v1947, 127
      %v2233 = vpop.permute.xlu0 %2232
      %2234 = vrot.lane.b32.xlu0 %v1950, 127
      %v2235 = vpop.permute.xlu0 %2234
      %2236 = vrot.lane.b32.xlu0 %v1954, 127
      %v2237 = vpop.permute.xlu0 %2236
      %2238 = vrot.lane.b32.xlu0 %v1957, 127
      %v2239 = vpop.permute.xlu0 %2238
      %2240 = vrot.lane.b32.xlu0 %v1961, 127
      %v2241 = vpop.permute.xlu0 %2240
      %2242 = vrot.lane.b32.xlu0 %v1964, 127
      %v2243 = vpop.permute.xlu0 %2242
      %2244 = vrot.lane.b32.xlu0 %v1968, 127
      %v2245 = vpop.permute.xlu0 %2244
      %2246 = vrot.lane.b32.xlu0 %v1971, 127
      %v2247 = vpop.permute.xlu0 %2246
      %v2250 = vpack.i.b16 %v2237, %v2233
      %v2251 = vshrl.u32 %v2233, 16
      %v2252 = vshrl.u32 %v2237, 16
      %v2253 = vpack.i.b16 %v2252, %v2251
      %v2256 = vpack.i.b16 %v2245, %v2241
      %v2257 = vshrl.u32 %v2241, 16
      %v2258 = vshrl.u32 %v2245, 16
      %v2259 = vpack.i.b16 %v2258, %v2257
      %v2262 = vpack.i.b16 %v2239, %v2235
      %v2263 = vshrl.u32 %v2235, 16
      %v2264 = vshrl.u32 %v2239, 16
      %v2265 = vpack.i.b16 %v2264, %v2263
      %v2268 = vpack.i.b16 %v2247, %v2243
      %v2269 = vshrl.u32 %v2243, 16
      %v2270 = vshrl.u32 %v2247, 16
      %v2271 = vpack.i.b16 %v2270, %v2269
      %v2274 = vunpack.c.l.s4 1983009808
      %v2275 = vunpack.c.0.s8 %v2274
      %v2276 = vlaneseq
      %v2277 = vshrl.u32 %v2276, 7
      %v2278 = vsub.s32 %v2275, %v2277
      %v2279 = vrot.slane %v2250, %v2278
      %v2282 = vunpack.c.l.s4 1983009808
      %v2283 = vunpack.c.0.s8 %v2282
      %v2284 = vlaneseq
      %v2285 = vshrl.u32 %v2284, 7
      %v2286 = vsub.s32 %v2283, %v2285
      %v2287 = vrot.slane %v2256, %v2286
      %v2288 = vcombine.low %v2279, %v2287
      %v2289 = vcombine.high %v2279, %v2287
      %v2291 = vunpack.c.l.s4 1934713408
      %v2292 = vunpack.c.0.s8 %v2291
      %v2293 = vlaneseq
      %v2294 = vshrl.u32 %v2293, 7
      %v2295 = vsub.s32 %v2292, %v2294
      %v2296 = vrot.slane %v2288, %v2295
      %v2298 = vunpack.c.l.s4 1934713408
      %v2299 = vunpack.c.0.s8 %v2298
      %v2300 = vlaneseq
      %v2301 = vshrl.u32 %v2300, 7
      %v2302 = vsub.s32 %v2299, %v2301
      %v2303 = vrot.slane %v2289, %v2302
      %v2304 = vcombine.high %v2296, 0
      %v2305 = vcombine.high %v2303, 0
      %v2308 = vunpack.c.l.s4 1983009808
      %v2309 = vunpack.c.0.s8 %v2308
      %v2310 = vlaneseq
      %v2311 = vshrl.u32 %v2310, 7
      %v2312 = vsub.s32 %v2309, %v2311
      %v2313 = vrot.slane %v2253, %v2312
      %v2316 = vunpack.c.l.s4 1983009808
      %v2317 = vunpack.c.0.s8 %v2316
      %v2318 = vlaneseq
      %v2319 = vshrl.u32 %v2318, 7
      %v2320 = vsub.s32 %v2317, %v2319
      %v2321 = vrot.slane %v2259, %v2320
      %v2322 = vcombine.low %v2313, %v2321
      %v2323 = vcombine.high %v2313, %v2321
      %v2325 = vunpack.c.l.s4 1934713408
      %v2326 = vunpack.c.0.s8 %v2325
      %v2327 = vlaneseq
      %v2328 = vshrl.u32 %v2327, 7
      %v2329 = vsub.s32 %v2326, %v2328
      %v2330 = vrot.slane %v2322, %v2329
      %v2332 = vunpack.c.l.s4 1934713408
      %v2333 = vunpack.c.0.s8 %v2332
      %v2334 = vlaneseq
      %v2335 = vshrl.u32 %v2334, 7
      %v2336 = vsub.s32 %v2333, %v2335
      %v2337 = vrot.slane %v2323, %v2336
      %v2338 = vcombine.high %v2330, 0
      %v2339 = vcombine.high %v2337, 0
      %v2342 = vunpack.c.l.s4 1983009808
      %v2343 = vunpack.c.0.s8 %v2342
      %v2344 = vlaneseq
      %v2345 = vshrl.u32 %v2344, 7
      %v2346 = vsub.s32 %v2343, %v2345
      %v2347 = vrot.slane %v2262, %v2346
      %v2350 = vunpack.c.l.s4 1983009808
      %v2351 = vunpack.c.0.s8 %v2350
      %v2352 = vlaneseq
      %v2353 = vshrl.u32 %v2352, 7
      %v2354 = vsub.s32 %v2351, %v2353
      %v2355 = vrot.slane %v2268, %v2354
      %v2356 = vcombine.low %v2347, %v2355
      %v2357 = vcombine.high %v2347, %v2355
      %v2359 = vunpack.c.l.s4 1934713408
      %v2360 = vunpack.c.0.s8 %v2359
      %v2361 = vlaneseq
      %v2362 = vshrl.u32 %v2361, 7
      %v2363 = vsub.s32 %v2360, %v2362
      %v2364 = vrot.slane %v2356, %v2363
      %v2366 = vunpack.c.l.s4 1934713408
      %v2367 = vunpack.c.0.s8 %v2366
      %v2368 = vlaneseq
      %v2369 = vshrl.u32 %v2368, 7
      %v2370 = vsub.s32 %v2367, %v2369
      %v2371 = vrot.slane %v2357, %v2370
      %v2372 = vcombine.high %v2364, 0
      %v2373 = vcombine.high %v2371, 0
      %v2376 = vunpack.c.l.s4 1983009808
      %v2377 = vunpack.c.0.s8 %v2376
      %v2378 = vlaneseq
      %v2379 = vshrl.u32 %v2378, 7
      %v2380 = vsub.s32 %v2377, %v2379
      %v2381 = vrot.slane %v2265, %v2380
      %v2384 = vunpack.c.l.s4 1983009808
      %v2385 = vunpack.c.0.s8 %v2384
      %v2386 = vlaneseq
      %v2387 = vshrl.u32 %v2386, 7
      %v2388 = vsub.s32 %v2385, %v2387
      %v2389 = vrot.slane %v2271, %v2388
      %v2390 = vcombine.low %v2381, %v2389
      %v2391 = vcombine.high %v2381, %v2389
      %v2393 = vunpack.c.l.s4 1934713408
      %v2394 = vunpack.c.0.s8 %v2393
      %v2395 = vlaneseq
      %v2396 = vshrl.u32 %v2395, 7
      %v2397 = vsub.s32 %v2394, %v2396
      %v2398 = vrot.slane %v2390, %v2397
      %v2400 = vunpack.c.l.s4 1934713408
      %v2401 = vunpack.c.0.s8 %v2400
      %v2402 = vlaneseq
      %v2403 = vshrl.u32 %v2402, 7
      %v2404 = vsub.s32 %v2401, %v2403
      %v2405 = vrot.slane %v2391, %v2404
      %v2406 = vcombine.high %v2398, 0
      %v2407 = vcombine.high %v2405, 0
      %v2409 = vunpack.c.l.b16 %v2330
      %v2410 = vpack.c.b16 %v2409, %v2409
      %2411 = vrot.lane.b32.xlu0 %v2410, 16
      %v2412 = vpop.permute.xlu0 %2411
      %v2414 = vunpack.c.l.b16 %v2304
      %v2415 = vpack.c.b16 %v2414, %v2414
      %2416 = vrot.lane.b32.xlu0 %v2415, 32
      %v2417 = vpop.permute.xlu0 %2416
      %v2419 = vunpack.c.l.b16 %v2338
      %v2420 = vpack.c.b16 %v2419, %v2419
      %2421 = vrot.lane.b32.xlu0 %v2420, 48
      %v2422 = vpop.permute.xlu0 %2421
      %v2424 = vunpack.c.l.b16 %v2303
      %v2425 = vpack.c.b16 %v2424, %v2424
      %2426 = vrot.lane.b32.xlu0 %v2425, 64
      %v2427 = vpop.permute.xlu0 %2426
      %v2429 = vunpack.c.l.b16 %v2337
      %v2430 = vpack.c.b16 %v2429, %v2429
      %2431 = vrot.lane.b32.xlu0 %v2430, 80
      %v2432 = vpop.permute.xlu0 %2431
      %v2434 = vunpack.c.l.b16 %v2305
      %v2435 = vpack.c.b16 %v2434, %v2434
      %2436 = vrot.lane.b32.xlu0 %v2435, 96
      %v2437 = vpop.permute.xlu0 %2436
      %v2439 = vunpack.c.l.b16 %v2339
      %v2440 = vpack.c.b16 %v2439, %v2439
      %2441 = vrot.lane.b32.xlu0 %v2440, 112
      %v2442 = vpop.permute.xlu0 %2441
      %v2444 = vunpack.c.l.b16 %v2398
      %v2445 = vpack.c.b16 %v2444, %v2444
      %2446 = vrot.lane.b32.xlu0 %v2445, 16
      %v2447 = vpop.permute.xlu0 %2446
      %v2449 = vunpack.c.l.b16 %v2372
      %v2450 = vpack.c.b16 %v2449, %v2449
      %2451 = vrot.lane.b32.xlu0 %v2450, 32
      %v2452 = vpop.permute.xlu0 %2451
      %v2454 = vunpack.c.l.b16 %v2406
      %v2455 = vpack.c.b16 %v2454, %v2454
      %2456 = vrot.lane.b32.xlu0 %v2455, 48
      %v2457 = vpop.permute.xlu0 %2456
      %v2459 = vunpack.c.l.b16 %v2371
      %v2460 = vpack.c.b16 %v2459, %v2459
      %2461 = vrot.lane.b32.xlu0 %v2460, 64
      %v2462 = vpop.permute.xlu0 %2461
      %v2464 = vunpack.c.l.b16 %v2405
      %v2465 = vpack.c.b16 %v2464, %v2464
      %2466 = vrot.lane.b32.xlu0 %v2465, 80
      %v2467 = vpop.permute.xlu0 %2466
      %v2469 = vunpack.c.l.b16 %v2373
      %v2470 = vpack.c.b16 %v2469, %v2469
      %2471 = vrot.lane.b32.xlu0 %v2470, 96
      %v2472 = vpop.permute.xlu0 %2471
      %v2474 = vunpack.c.l.b16 %v2407
      %v2475 = vpack.c.b16 %v2474, %v2474
      %2476 = vrot.lane.b32.xlu0 %v2475, 112
      %v2477 = vpop.permute.xlu0 %2476
      %v2480 = vsel %vm433, %v2296, %v2412
      %v2482 = vsel %vm437, %v2480, %v2417
      %v2484 = vsel %vm440, %v2482, %v2422
      %v2486 = vsel %vm443, %v2484, %v2427
      %v2488 = vsel %vm446, %v2486, %v2432
      %v2490 = vsel %vm449, %v2488, %v2437
      %v2492 = vsel %vm452, %v2490, %v2442
      %v2495 = vsel %vm433, %v2364, %v2447
      %v2497 = vsel %vm437, %v2495, %v2452
      %v2499 = vsel %vm440, %v2497, %v2457
      %v2501 = vsel %vm443, %v2499, %v2462
      %v2503 = vsel %vm446, %v2501, %v2467
      %v2505 = vsel %vm449, %v2503, %v2472
      %v2507 = vsel %vm452, %v2505, %v2477
      %2508 = vrot.lane.b32.xlu0 %v1947, 126
      %v2509 = vpop.permute.xlu0 %2508
      %2510 = vrot.lane.b32.xlu0 %v1950, 126
      %v2511 = vpop.permute.xlu0 %2510
      %2512 = vrot.lane.b32.xlu0 %v1954, 126
      %v2513 = vpop.permute.xlu0 %2512
      %2514 = vrot.lane.b32.xlu0 %v1957, 126
      %v2515 = vpop.permute.xlu0 %2514
      %2516 = vrot.lane.b32.xlu0 %v1961, 126
      %v2517 = vpop.permute.xlu0 %2516
      %2518 = vrot.lane.b32.xlu0 %v1964, 126
      %v2519 = vpop.permute.xlu0 %2518
      %2520 = vrot.lane.b32.xlu0 %v1968, 126
      %v2521 = vpop.permute.xlu0 %2520
      %2522 = vrot.lane.b32.xlu0 %v1971, 126
      %v2523 = vpop.permute.xlu0 %2522
      %v2526 = vpack.i.b16 %v2513, %v2509
      %v2527 = vshrl.u32 %v2509, 16
      %v2528 = vshrl.u32 %v2513, 16
      %v2529 = vpack.i.b16 %v2528, %v2527
      %v2532 = vpack.i.b16 %v2521, %v2517
      %v2533 = vshrl.u32 %v2517, 16
      %v2534 = vshrl.u32 %v2521, 16
      %v2535 = vpack.i.b16 %v2534, %v2533
      %v2538 = vpack.i.b16 %v2515, %v2511
      %v2539 = vshrl.u32 %v2511, 16
      %v2540 = vshrl.u32 %v2515, 16
      %v2541 = vpack.i.b16 %v2540, %v2539
      %v2544 = vpack.i.b16 %v2523, %v2519
      %v2545 = vshrl.u32 %v2519, 16
      %v2546 = vshrl.u32 %v2523, 16
      %v2547 = vpack.i.b16 %v2546, %v2545
      %v2550 = vunpack.c.l.s4 1983009808
      %v2551 = vunpack.c.0.s8 %v2550
      %v2552 = vlaneseq
      %v2553 = vshrl.u32 %v2552, 7
      %v2554 = vsub.s32 %v2551, %v2553
      %v2555 = vrot.slane %v2526, %v2554
      %v2558 = vunpack.c.l.s4 1983009808
      %v2559 = vunpack.c.0.s8 %v2558
      %v2560 = vlaneseq
      %v2561 = vshrl.u32 %v2560, 7
      %v2562 = vsub.s32 %v2559, %v2561
      %v2563 = vrot.slane %v2532, %v2562
      %v2564 = vcombine.low %v2555, %v2563
      %v2565 = vcombine.high %v2555, %v2563
      %v2567 = vunpack.c.l.s4 1934713408
      %v2568 = vunpack.c.0.s8 %v2567
      %v2569 = vlaneseq
      %v2570 = vshrl.u32 %v2569, 7
      %v2571 = vsub.s32 %v2568, %v2570
      %v2572 = vrot.slane %v2564, %v2571
      %v2574 = vunpack.c.l.s4 1934713408
      %v2575 = vunpack.c.0.s8 %v2574
      %v2576 = vlaneseq
      %v2577 = vshrl.u32 %v2576, 7
      %v2578 = vsub.s32 %v2575, %v2577
      %v2579 = vrot.slane %v2565, %v2578
      %v2580 = vcombine.high %v2572, 0
      %v2581 = vcombine.high %v2579, 0
      %v2584 = vunpack.c.l.s4 1983009808
      %v2585 = vunpack.c.0.s8 %v2584
      %v2586 = vlaneseq
      %v2587 = vshrl.u32 %v2586, 7
      %v2588 = vsub.s32 %v2585, %v2587
      %v2589 = vrot.slane %v2529, %v2588
      %v2592 = vunpack.c.l.s4 1983009808
      %v2593 = vunpack.c.0.s8 %v2592
      %v2594 = vlaneseq
      %v2595 = vshrl.u32 %v2594, 7
      %v2596 = vsub.s32 %v2593, %v2595
      %v2597 = vrot.slane %v2535, %v2596
      %v2598 = vcombine.low %v2589, %v2597
      %v2599 = vcombine.high %v2589, %v2597
      %v2601 = vunpack.c.l.s4 1934713408
      %v2602 = vunpack.c.0.s8 %v2601
      %v2603 = vlaneseq
      %v2604 = vshrl.u32 %v2603, 7
      %v2605 = vsub.s32 %v2602, %v2604
      %v2606 = vrot.slane %v2598, %v2605
      %v2608 = vunpack.c.l.s4 1934713408
      %v2609 = vunpack.c.0.s8 %v2608
      %v2610 = vlaneseq
      %v2611 = vshrl.u32 %v2610, 7
      %v2612 = vsub.s32 %v2609, %v2611
      %v2613 = vrot.slane %v2599, %v2612
      %v2614 = vcombine.high %v2606, 0
      %v2615 = vcombine.high %v2613, 0
      %v2618 = vunpack.c.l.s4 1983009808
      %v2619 = vunpack.c.0.s8 %v2618
      %v2620 = vlaneseq
      %v2621 = vshrl.u32 %v2620, 7
      %v2622 = vsub.s32 %v2619, %v2621
      %v2623 = vrot.slane %v2538, %v2622
      %v2626 = vunpack.c.l.s4 1983009808
      %v2627 = vunpack.c.0.s8 %v2626
      %v2628 = vlaneseq
      %v2629 = vshrl.u32 %v2628, 7
      %v2630 = vsub.s32 %v2627, %v2629
      %v2631 = vrot.slane %v2544, %v2630
      %v2632 = vcombine.low %v2623, %v2631
      %v2633 = vcombine.high %v2623, %v2631
      %v2635 = vunpack.c.l.s4 1934713408
      %v2636 = vunpack.c.0.s8 %v2635
      %v2637 = vlaneseq
      %v2638 = vshrl.u32 %v2637, 7
      %v2639 = vsub.s32 %v2636, %v2638
      %v2640 = vrot.slane %v2632, %v2639
      %v2642 = vunpack.c.l.s4 1934713408
      %v2643 = vunpack.c.0.s8 %v2642
      %v2644 = vlaneseq
      %v2645 = vshrl.u32 %v2644, 7
      %v2646 = vsub.s32 %v2643, %v2645
      %v2647 = vrot.slane %v2633, %v2646
      %v2648 = vcombine.high %v2640, 0
      %v2649 = vcombine.high %v2647, 0
      %v2652 = vunpack.c.l.s4 1983009808
      %v2653 = vunpack.c.0.s8 %v2652
      %v2654 = vlaneseq
      %v2655 = vshrl.u32 %v2654, 7
      %v2656 = vsub.s32 %v2653, %v2655
      %v2657 = vrot.slane %v2541, %v2656
      %v2660 = vunpack.c.l.s4 1983009808
      %v2661 = vunpack.c.0.s8 %v2660
      %v2662 = vlaneseq
      %v2663 = vshrl.u32 %v2662, 7
      %v2664 = vsub.s32 %v2661, %v2663
      %v2665 = vrot.slane %v2547, %v2664
      %v2666 = vcombine.low %v2657, %v2665
      %v2667 = vcombine.high %v2657, %v2665
      %v2669 = vunpack.c.l.s4 1934713408
      %v2670 = vunpack.c.0.s8 %v2669
      %v2671 = vlaneseq
      %v2672 = vshrl.u32 %v2671, 7
      %v2673 = vsub.s32 %v2670, %v2672
      %v2674 = vrot.slane %v2666, %v2673
      %v2676 = vunpack.c.l.s4 1934713408
      %v2677 = vunpack.c.0.s8 %v2676
      %v2678 = vlaneseq
      %v2679 = vshrl.u32 %v2678, 7
      %v2680 = vsub.s32 %v2677, %v2679
      %v2681 = vrot.slane %v2667, %v2680
      %v2682 = vcombine.high %v2674, 0
      %v2683 = vcombine.high %v2681, 0
      %v2685 = vunpack.c.l.b16 %v2606
      %v2686 = vpack.c.b16 %v2685, %v2685
      %2687 = vrot.lane.b32.xlu0 %v2686, 16
      %v2688 = vpop.permute.xlu0 %2687
      %v2690 = vunpack.c.l.b16 %v2580
      %v2691 = vpack.c.b16 %v2690, %v2690
      %2692 = vrot.lane.b32.xlu0 %v2691, 32
      %v2693 = vpop.permute.xlu0 %2692
      %v2695 = vunpack.c.l.b16 %v2614
      %v2696 = vpack.c.b16 %v2695, %v2695
      %2697 = vrot.lane.b32.xlu0 %v2696, 48
      %v2698 = vpop.permute.xlu0 %2697
      %v2700 = vunpack.c.l.b16 %v2579
      %v2701 = vpack.c.b16 %v2700, %v2700
      %2702 = vrot.lane.b32.xlu0 %v2701, 64
      %v2703 = vpop.permute.xlu0 %2702
      %v2705 = vunpack.c.l.b16 %v2613
      %v2706 = vpack.c.b16 %v2705, %v2705
      %2707 = vrot.lane.b32.xlu0 %v2706, 80
      %v2708 = vpop.permute.xlu0 %2707
      %v2710 = vunpack.c.l.b16 %v2581
      %v2711 = vpack.c.b16 %v2710, %v2710
      %2712 = vrot.lane.b32.xlu0 %v2711, 96
      %v2713 = vpop.permute.xlu0 %2712
      %v2715 = vunpack.c.l.b16 %v2615
      %v2716 = vpack.c.b16 %v2715, %v2715
      %2717 = vrot.lane.b32.xlu0 %v2716, 112
      %v2718 = vpop.permute.xlu0 %2717
      %v2720 = vunpack.c.l.b16 %v2674
      %v2721 = vpack.c.b16 %v2720, %v2720
      %2722 = vrot.lane.b32.xlu0 %v2721, 16
      %v2723 = vpop.permute.xlu0 %2722
      %v2725 = vunpack.c.l.b16 %v2648
      %v2726 = vpack.c.b16 %v2725, %v2725
      %2727 = vrot.lane.b32.xlu0 %v2726, 32
      %v2728 = vpop.permute.xlu0 %2727
      %v2730 = vunpack.c.l.b16 %v2682
      %v2731 = vpack.c.b16 %v2730, %v2730
      %2732 = vrot.lane.b32.xlu0 %v2731, 48
      %v2733 = vpop.permute.xlu0 %2732
      %v2735 = vunpack.c.l.b16 %v2647
      %v2736 = vpack.c.b16 %v2735, %v2735
      %2737 = vrot.lane.b32.xlu0 %v2736, 64
      %v2738 = vpop.permute.xlu0 %2737
      %v2740 = vunpack.c.l.b16 %v2681
      %v2741 = vpack.c.b16 %v2740, %v2740
      %2742 = vrot.lane.b32.xlu0 %v2741, 80
      %v2743 = vpop.permute.xlu0 %2742
      %v2745 = vunpack.c.l.b16 %v2649
      %v2746 = vpack.c.b16 %v2745, %v2745
      %2747 = vrot.lane.b32.xlu0 %v2746, 96
      %v2748 = vpop.permute.xlu0 %2747
      %v2750 = vunpack.c.l.b16 %v2683
      %v2751 = vpack.c.b16 %v2750, %v2750
      %2752 = vrot.lane.b32.xlu0 %v2751, 112
      %v2753 = vpop.permute.xlu0 %2752
      %v2756 = vsel %vm433, %v2572, %v2688
      %v2758 = vsel %vm437, %v2756, %v2693
      %v2760 = vsel %vm440, %v2758, %v2698
      %v2762 = vsel %vm443, %v2760, %v2703
      %v2764 = vsel %vm446, %v2762, %v2708
      %v2766 = vsel %vm449, %v2764, %v2713
      %v2768 = vsel %vm452, %v2766, %v2718
      %v2771 = vsel %vm433, %v2640, %v2723
      %v2773 = vsel %vm437, %v2771, %v2728
      %v2775 = vsel %vm440, %v2773, %v2733
      %v2777 = vsel %vm443, %v2775, %v2738
      %v2779 = vsel %vm446, %v2777, %v2743
      %v2781 = vsel %vm449, %v2779, %v2748
      %v2783 = vsel %vm452, %v2781, %v2753
      %v2786 = vrot.slane %v738, 6
      %v2787 = vrot.slane %v753, 6
      %v2790 = vrot.slane %v1014, 4
      %v2791 = vrot.slane %v1029, 4
      %v2794 = vrot.slane %v1361, 2
      %v2795 = vrot.slane %v1376, 2
      %v2798 = vrot.slane %v1913, 6
      %v2799 = vrot.slane %v1928, 6
      %v2802 = vrot.slane %v2216, 4
      %v2803 = vrot.slane %v2231, 4
      %v2806 = vrot.slane %v2492, 2
      %v2807 = vrot.slane %v2507, 2
      %vm2808 = vcmask 1041408
      %v2810 = vsel %vm2808, %v454, %v2786
      %v2812 = vsel %vm2808, %v469, %v2787
      %vm2813 = vcmask 1043456
      %v2815 = vsel %vm2813, %v2810, %v2790
      %v2817 = vsel %vm2813, %v2812, %v2791
      %vm2818 = vcmask 1045504
      %v2820 = vsel %vm2818, %v2815, %v2794
      %v2823 = vsel %vm2818, %v2817, %v2795
      %v2826 = vsel %vm2808, %v1637, %v2798
      %v2828 = vsel %vm2808, %v1652, %v2799
      %v2830 = vsel %vm2813, %v2826, %v2802
      %v2832 = vsel %vm2813, %v2828, %v2803
      %v2834 = vsel %vm2818, %v2830, %v2806
      %v2837 = vsel %vm2818, %v2832, %v2807
      %v2839 = vld [vmem:[%s1] sm:$0xf]
      %v2840 = vld [vmem:[%s2] sm:$0xff]
      %2842 = vset.pattern.permute.xlu0 0
      %2843 = vperm.xlu0 %2842, %v2840
      %v2844 = vpop.permute.xlu0 %2843
      %vm2846 = vcmask 293888
      %v2848 = vsel %vm2846, %v2839, 0
      %v2850 = vsel %vm2808, %v2768, 0
      %v2852 = vsel %vm2808, %v2783, 0
      %2854 = vmatprep.subr.bf16.mxu0 0
      %2855 = vmatpush1.bf16.msra.mxu0 0
      %2856 = vmatprep.subr.bf16.mxu0 0
      %2857 = vmatpush1.bf16.msra.mxu0 0
      %2858 = vmatprep.subr.bf16.mxu0 0
      %2859 = vmatpush1.bf16.msra.mxu0 0
      %2860 = vmatprep.subr.bf16.mxu0 0
      %2861 = vmatpush1.bf16.msra.mxu0 0
      %2862 = vmatprep.subr.bf16.mxu0 0
      %2863 = vmatpush1.bf16.msra.mxu0 0
      %2864 = vmatprep.subr.bf16.mxu0 %v2852
      %2865 = vmatpush1.bf16.msra.mxu0 %v2850
      %2866 = vmatprep.subr.bf16.mxu0 %v2837
      %2867 = vmatpush1.bf16.msra.mxu0 %v2834
      %2868 = vmatprep.subr.bf16.mxu0 %v2823
      %2869 = vmatpush1.bf16.msra.mxu0 %v2820
      %2870 = vmatprep.subr.bf16.mxu0 0
      %2871 = vmatpush2.bf16.msra.mxu0 0
      %2872 = vmatprep.subr.bf16.mxu0 0
      %2873 = vmatpush2.bf16.msra.mxu0 0
      %2874 = vmatprep.subr.bf16.mxu0 0
      %2875 = vmatpush2.bf16.msra.mxu0 0
      %2876 = vmatprep.subr.bf16.mxu0 0
      %2877 = vmatpush2.bf16.msra.mxu0 0
      %2878 = vmatprep.subr.bf16.mxu0 0
      %2879 = vmatpush2.bf16.msra.mxu0 0
      %2880 = vmatprep.subr.bf16.mxu0 0
      %2881 = vmatpush2.bf16.msra.mxu0 0
      %2882 = vmatprep.subr.bf16.mxu0 0
      %2883 = vmatpush2.bf16.msra.mxu0 0
      %2884 = vmatprep.subr.bf16.mxu0 0
      %2885 = vmatpush2.bf16.msra.mxu0 0
      %2886 = vmatprep.mubr.bf16.mxu0 0
      %2887 = vmatmul.mubr.bf16.gmra.mxu0 %v2848
      %v2888 = vpop.f32.mrf.mxu0
      %v2889 = vadd.f32 %v2844, %v2888
      %v2890 = vpop.f32.mrf.mxu0
      %v2891 = vadd.f32 %v2844, %v2890
      %v2892 = vpop.f32.mrf.mxu0
      %v2893 = vpop.f32.mrf.mxu0
      %2894 = vdwg.mxu0
      %v2895 = vmax.f32 %v2889, 0.0
      %v2896 = vmax.f32 %v2891, 0.0
      %2897 = vst [vmem:[%s192] sm:$0xff] %v2895
      %2898 = vst [vmem:[%s192 + $0x8] sm:$0xff] %v2896
      %s2899 = smul.u32 2, %s19
      %p2900 = scmp.lt.s32.totalorder %s18, 1
      %s2901 = scalar_select %p2900, %s18, 1
      %p2902 = scmp.lt.s32.totalorder %s2899, 1
      %s2903 = scalar_select %p2902, %s2899, 1
      %s2904 = smul.addr %s2901, 2
      %s2905 = sadd.s32 %s2903, %s2904
      %s2906 = smul.addr %s2905, 8
      %s2907 = scalar_lea.vmem %s3, %s2906
      // Predicated region
      $region33: #{_basic_conv2d_impl.1} parent=31 // pred_check
        %p2908 = pneg %p114
      $region34: #{_basic_conv2d_impl.1} parent=31 // pred_check_branch
        %2910 = sbr.rel (%p2908) target = $region36
      $region35: #{_basic_conv2d_impl.1} parent=31 // pred_region
        %s2911 = smul.u32 2, %s19
      $region36: #{_basic_conv2d_impl.1} parent=31 // pred_fallthru
        _
    $region32: #{_basic_conv2d_impl.1} parent=5 // pred_fallthru
      _
    %p2912 = scmp.le.s32.totalorder 2, %s9
    // Predicated region
    $region37: #{_basic_conv2d_impl.1} parent=5 // pred_check
      %p2913 = pneg %p2912
    $region38: #{_basic_conv2d_impl.1} parent=5 // pred_check_branch
      %2915 = sbr.rel (%p2913) target = $region40
    $region39: #{_basic_conv2d_impl.1} parent=5 // pred_region
      %s2916 = ssub.s32 %s9, 2
      // Predicated region
      $region41: #{_basic_conv2d_impl.1} parent=39 // pred_check
        %p2917 = pneg %p120
      $region42: #{_basic_conv2d_impl.1} parent=39 // pred_check_branch
        %2919 = sbr.rel (%p2917) target = $region44
      $region43: #{_basic_conv2d_impl.1} parent=39 // pred_region
        %s2920 = smul.u32 2, %s21
        %p2921 = scmp.lt.s32.totalorder %s20, 1
        %s2922 = scalar_select %p2921, %s20, 1
        %p2923 = scmp.lt.s32.totalorder %s2920, 1
        %s2924 = scalar_select %p2923, %s2920, 1
        %s2925 = smul.addr %s2922, 2
        %s2926 = sadd.s32 %s2924, %s2925
        %s2927 = smul.addr %s2926, 8
        %s2928 = scalar_lea.vmem %s3, %s2927
      $region44: #{_basic_conv2d_impl.1} parent=39 // pred_fallthru
        _
    $region40: #{_basic_conv2d_impl.1} parent=5 // pred_fallthru
      _
  $region6: #{_basic_conv2d_impl.1} parent=0 // loop_footer
    %s13 = sadd.s32 1, %s9
  $region7: #{_basic_conv2d_impl.1} parent=0 // loop_footer_branch
    %8 = sbr.rel target = $region3
  $region8: #{_basic_conv2d_impl.1} parent=0 // loop_exit
    _

</llo_original>
